<compile_context>
chip_gen: v6e
topology: v6e:2x2x1
jax: 0.10.0
libtpu: 0.0.40
codegen_flags: <defaults>
</compile_context>

<pallas_src>
import jax
import jax.numpy as jnp
from jax import lax
from jax.experimental import pallas as pl
from jax.experimental.pallas import tpu as pltpu

LN_EPS = 1e-6   # LayerNorm eps in the module
BN_EPS = 1e-5   # BatchNorm default eps

# Precision knobs -------------------------------------------------------------
# MATMUL_DTYPE: MXU operand dtype for fc1/fc2 (accumulation is always f32) and the
#   storage dtype of the FFN-conv staging buffer.  bfloat16 (default): 2-4x MXU
#   throughput + halved weight/staging traffic.  float32 + EXACT_GELU=True restores
#   1e-3 parity with the f32 PyTorch module.
MATMUL_DTYPE = jnp.bfloat16
EXACT_GELU = False

_SQRT_2_OVER_PI = 0.7978845608028654
_INV_SQRT2 = 0.7071067811865476


def _gelu(x, exact):
    if exact:   # PyTorch nn.GELU default (erf)
        return 0.5 * x * (1.0 + lax.erf(x * _INV_SQRT2))
    # tanh approximation -> tanh runs on the EUP slot instead of a VALU polynomial
    u = _SQRT_2_OVER_PI * (x + 0.044715 * (x * x * x))
    return 0.5 * x * (1.0 + jnp.tanh(u))


def block_kernel(x_ref, wpos_ref, bpos_ref, lng_ref, lnb_ref,
                 wfc1_ref, bfc1_ref, wdw_ref, bdw_ref, wfc2_ref, bfc2_ref,
                 o_ref, pad_h_ref):
    _, tH, W, C = o_ref.shape
    tHe = tH + 2                       # tile rows + 1-row recompute halo each side
    Hid = pad_h_ref.shape[-1]
    i = pl.program_id(1)
    base = i * tH                      # row offset into the (H+4)-padded input

    # ---- pos_embed: ResDWC depthwise 3x3 on the halo-extended window ---------
    # x_ref holds the whole zero-padded (1, H+4, W+2, C) image for this batch
    # element (constant block index along the H-tile axis => resident in VMEM),
    # so each tap is a shifted read straight out of VMEM: no staging copy,
    # no per-step memset.
    def x_tap(dy, dx):
        return x_ref[0, pl.ds(base + dy, tHe), dx:dx + W, :].astype(jnp.float32)

    wpos = wpos_ref[...]
    xp = x_tap(0, 0) * wpos[0] + bpos_ref[0]          # first tap initialises the acc
    for dy in range(3):
        for dx in range(3):
            if dy == 0 and dx == 0:
                continue
            xp += x_tap(dy, dx) * wpos[dy * 3 + dx]

    # ---- norm1 (channel LayerNorm) + identity token_mixer + residual --------
    mean = jnp.mean(xp, axis=-1, keepdims=True)
    cent = xp - mean
    var = jnp.mean(cent * cent, axis=-1, keepdims=True)
    x1 = xp + (cent * lax.rsqrt(var + LN_EPS)) * lng_ref[0] + lnb_ref[0]   # rsqrt -> EUP

    # ---- ConvFFN (norm2 / eval BatchNorm already folded into fc1) -----------
    mm_dtype = wfc1_ref.dtype
    h = jnp.dot(x1.reshape(tHe * W, C).astype(mm_dtype), wfc1_ref[...],
                preferred_element_type=jnp.float32) + bfc1_ref[0]
    h = _gelu(h, EXACT_GELU)

    # Stage h (tile + row halo) into the column-padded scratch.  Only the two
    # 1-wide border columns are re-zeroed each step (interior fully overwritten;
    # robust under megacore grid splitting); out-of-image halo rows are zeroed
    # for the first / last tile so the FFN conv sees correct zero padding.
    pdt = pad_h_ref.dtype
    pad_h_ref[0:tHe, 1:W + 1, :] = h.reshape(tHe, W, Hid).astype(pdt)
    pad_h_ref[0:tHe, 0:1, :] = jnp.zeros((tHe, 1, Hid), pdt)
    pad_h_ref[0:tHe, W + 1:W + 2, :] = jnp.zeros((tHe, 1, Hid), pdt)

    @pl.when(i == 0)
    def _():                                           # halo row above the image
        pad_h_ref[0:1, 0:W + 2, :] = jnp.zeros((1, W + 2, Hid), pdt)

    @pl.when(i == pl.num_programs(1) - 1)
    def _():                                           # halo row below the image
        pad_h_ref[tHe - 1:tHe, 0:W + 2, :] = jnp.zeros((1, W + 2, Hid), pdt)

    # FFN depthwise 3x3 (identity tap folded in); f32 accumulate, bf16 staging loads.
    wdw = wdw_ref[...]
    hc = pad_h_ref[0:tH, 0:W, :].astype(jnp.float32) * wdw[0] + bdw_ref[0]
    for dy in range(3):
        for dx in range(3):
            if dy == 0 and dx == 0:
                continue
            hc += pad_h_ref[dy:dy + tH, dx:dx + W, :].astype(jnp.float32) * wdw[dy * 3 + dx]

    out = jnp.dot(hc.reshape(tH * W, Hid).astype(mm_dtype), wfc2_ref[...],
                  preferred_element_type=jnp.float32) + bfc2_ref[0]
    out = x1[1:tH + 1] + out.reshape(tH, W, C)         # residual: centre rows only
    o_ref[0] = out.astype(o_ref.dtype)


def _pick_tile_h(H, target=16):
    """Largest divisor of H that is <= target (whole image for awkward H)."""
    if H <= target:
        return H
    for t in range(target, 3, -1):
        if H % t == 0:
            return t
    return H


def block_forward_nhwc(x_nhwc, p, tile_h=None):
    """Core entry point: NHWC in, NHWC out (no boundary transposes, caller dtype kept)."""
    B, H, W, C = x_nhwc.shape
    Hid = p['w_fc1_fold'].shape[1]
    tH = tile_h or _pick_tile_h(H)
    assert H % tH == 0, f"tile_h={tH} must divide H={H}"
    nH = H // tH

    # Zero-pad once in the wrapper (H by the 2-row halo of the two stacked 3x3
    # convs, W by 1) so the kernel needs no boundary special-casing and no
    # input-side staging copy at all.
    x_p = jnp.pad(x_nhwc, ((0, 0), (2, 2), (1, 1), (0, 0)))

    def wspec(shape):                      # weights: constant index, single-buffered
        n = len(shape)
        return pl.BlockSpec(shape, lambda b, i, n=n: (0,) * n,
                            pipeline_mode=pl.Buffered(1))

    in_specs = [
        # whole padded image per batch element; constant along the H-tile axis
        # so it is DMA'd once per batch element and stays resident in VMEM.
        pl.BlockSpec((1, H + 4, W + 2, C), lambda b, i: (b, 0, 0, 0)),
        wspec((9, C)), wspec((1, C)),                  # pos dwc taps / bias
        wspec((1, C)), wspec((1, C)),                  # LN gamma / beta
        wspec((C, Hid)), wspec((1, Hid)),              # fc1 (BN folded in)
        wspec((9, Hid)), wspec((1, Hid)),              # FFN dwc taps / bias
        wspec((Hid, C)), wspec((1, C)),                # fc2
    ]

    Wp = (W + 2 + 7) // 8 * 8              # round staging-buffer sublane axis to 8

    out = pl.pallas_call(
        block_kernel,
        out_shape=jax.ShapeDtypeStruct((B, H, W, C), x_nhwc.dtype),
        grid_spec=pltpu.PrefetchScalarGridSpec(
            num_scalar_prefetch=0,
            grid=(B, nH),
            in_specs=in_specs,
            out_specs=pl.BlockSpec((1, tH, W, C), lambda b, i: (b, i, 0, 0)),
            scratch_shapes=[
                # column-zero-padded staging buffer for the FFN depthwise conv
                pltpu.VMEM((tH + 2, Wp, Hid), MATMUL_DTYPE),
            ],
        ),
        compiler_params=pltpu.CompilerParams(
            dimension_semantics=("parallel", "parallel"),
            vmem_limit_bytes=32 * 1024 * 1024,
        ),
    )(x_p,
      p['w_pos9'], p['b_pos'][None],
      p['ln_g'][None], p['ln_b'][None],
      p['w_fc1_fold'].astype(MATMUL_DTYPE), p['b_fc1_fold'][None],
      p['w_dw9'], p['b_dw'][None],
      p['w_fc2'].astype(MATMUL_DTYPE), p['b_fc2'][None])
    return out


def block_forward(x_nchw, p, tile_h=None):
    """PyTorch-layout (NCHW) convenience wrapper around the NHWC kernel."""
    x = jnp.transpose(x_nchw, (0, 2, 3, 1))
    out = block_forward_nhwc(x, p, tile_h=tile_h)
    return jnp.transpose(out, (0, 3, 1, 2))


def init_params(key, dim, hidden):
    ks = jax.random.split(key, 14)

    def rnd(k, shape, scale=0.1):
        return (scale * jax.random.normal(k, shape)).astype(jnp.float32)

    w_pos = rnd(ks[0], (dim, 3, 3))           # Conv2d(dim, dim, 3, groups=dim).weight[:, 0]
    b_pos = rnd(ks[1], (dim,))
    ln_g = 1.0 + rnd(ks[2], (dim,))
    ln_b = rnd(ks[3], (dim,))
    bn_g = 1.0 + rnd(ks[4], (dim,))
    bn_b = rnd(ks[5], (dim,))
    bn_mean = rnd(ks[6], (dim,))
    bn_var = 1.0 + jnp.abs(rnd(ks[7], (dim,)))
    w_fc1_t = rnd(ks[8], (hidden, dim))       # torch 1x1 conv weight (out, in)
    b_fc1 = rnd(ks[9], (hidden,))
    w_dw = rnd(ks[10], (hidden, 3, 3))
    b_dw = rnd(ks[11], (hidden,))
    w_fc2_t = rnd(ks[12], (dim, hidden))
    b_fc2 = rnd(ks[13], (dim,))

    # ResDWC: conv_constant has a 1 at the center tap -> fold identity into weights
    ident = jnp.zeros((3, 3), jnp.float32).at[1, 1].set(1.0)
    w_pos_eff = w_pos + ident
    w_dw_eff = w_dw + ident

    # BatchNorm (eval) folded to per-channel affine, then into fc1 (exact):
    #   (x*s + t) @ W + b == x @ (diag(s) W) + (t @ W + b)
    bn_scale = bn_g / jnp.sqrt(bn_var + BN_EPS)
    bn_shift = bn_b - bn_mean * bn_scale
    w_fc1 = w_fc1_t.T                         # (dim, hidden)
    w_fc2 = w_fc2_t.T                         # (hidden, dim)
    w_fc1_fold = bn_scale[:, None] * w_fc1
    b_fc1_fold = b_fc1 + bn_shift @ w_fc1

    to9 = lambda w: jnp.transpose(w, (1, 2, 0)).reshape(9, w.shape[0])
    return dict(
        w_pos_eff=w_pos_eff, w_pos9=to9(w_pos_eff), b_pos=b_pos,
        ln_g=ln_g, ln_b=ln_b,
        bn_scale=bn_scale, bn_shift=bn_shift,
        w_fc1=w_fc1, b_fc1=b_fc1,
        w_fc1_fold=w_fc1_fold, b_fc1_fold=b_fc1_fold,
        w_dw_eff=w_dw_eff, w_dw9=to9(w_dw_eff), b_dw=b_dw,
        w_fc2=w_fc2, b_fc2=b_fc2,
    )


def block_ref(x_nchw, p, exact_gelu=EXACT_GELU):
    """Pure-JAX f32 reference (same math as the PyTorch module in eval mode, unfolded)."""
    x = jnp.transpose(x_nchw, (0, 2, 3, 1)).astype(jnp.float32)

    def dwconv(t, w_eff, b):
        D = w_eff.shape[0]
        k = jnp.transpose(w_eff, (1, 2, 0)).reshape(3, 3, 1, D)
        y = lax.conv_general_dilated(
            t, k, (1, 1), 'SAME',
            dimension_numbers=('NHWC', 'HWIO', 'NHWC'),
            feature_group_count=D)
        return y + b

    x = dwconv(x, p['w_pos_eff'], p['b_pos'])
    mean = jnp.mean(x, -1, keepdims=True)
    var = jnp.var(x, -1, keepdims=True)
    xn = (x - mean) / jnp.sqrt(var + LN_EPS) * p['ln_g'] + p['ln_b']
    x = x + xn
    y = x * p['bn_scale'] + p['bn_shift']
    h = jnp.einsum('bhwc,cd->bhwd', y, p['w_fc1']) + p['b_fc1']
    h = _gelu(h, exact_gelu)
    h = dwconv(h, p['w_dw_eff'], p['b_dw'])
    o = jnp.einsum('bhwd,dc->bhwc', h, p['w_fc2']) + p['b_fc2']
    x = x + o
    return jnp.transpose(x, (0, 3, 1, 2))


if __name__ == "__main__":
    # TODO(synk): DropPath/Dropout are identity (p=0 defaults); BatchNorm is implemented
    # in eval mode (running stats folded into fc1) — the training batch-stat path is not modeled.
    B, C, H, W = 2, 32, 16, 16
    hidden = 4 * C

    key = jax.random.PRNGKey(0)
    kx, kp = jax.random.split(key)
    x = jax.random.normal(kx, (B, C, H, W), dtype=jnp.float32)   # PyTorch-style NCHW input
    params = init_params(kp, C, hidden)

    ref = jax.block_until_ready(block_ref(x, params))
    # f32 + exact erf -> 1e-3 parity; default bf16 MXU + tanh GELU -> relaxed gate.
    tol = 1e-3 if (MATMUL_DTYPE == jnp.float32 and EXACT_GELU) else 5e-2

    ok = True
    # Default tiling plus an explicit 4-row tiling so the first / interior / last
    # H-tile paths (halo recompute + out-of-image row zeroing) are all exercised.
    for th in (None, 4):
        out = jax.block_until_ready(block_forward(x, params, tile_h=th))
        err = float(jnp.max(jnp.abs(out - ref)))
        if out.shape != (B, C, H, W) or not (err < tol):
            ok = False
            print("MISMATCH tile_h=", th, "max_abs_err=", err)
    if ok:
        print("KERNEL_OK")
</pallas_src>

<mosaic_0001>
module attributes {stable_mosaic.version = 11 : i64} {
  func.func @block_kernel(%arg0: i32, %arg1: i32, %arg2: memref<1x20x18x32xf32, #tpu.memory_space<vmem>>, %arg3: memref<9x32xf32, #tpu.memory_space<vmem>>, %arg4: memref<1x32xf32, #tpu.memory_space<vmem>>, %arg5: memref<1x32xf32, #tpu.memory_space<vmem>>, %arg6: memref<1x32xf32, #tpu.memory_space<vmem>>, %arg7: memref<32x128xbf16, #tpu.memory_space<vmem>>, %arg8: memref<1x128xf32, #tpu.memory_space<vmem>>, %arg9: memref<9x128xf32, #tpu.memory_space<vmem>>, %arg10: memref<1x128xf32, #tpu.memory_space<vmem>>, %arg11: memref<128x32xbf16, #tpu.memory_space<vmem>>, %arg12: memref<1x32xf32, #tpu.memory_space<vmem>>, %arg13: memref<1x16x16x32xf32, #tpu.memory_space<vmem>>, %arg14: memref<18x24x128xbf16, #tpu.memory_space<vmem>>) attributes {dimension_semantics = [#tpu.dimension_semantics<parallel>, #tpu.dimension_semantics<parallel>], iteration_bounds = array<i64: 2, 1>, scalar_prefetch = 0 : i64, scratch_operands = 1 : i64, tpu.core_type = #tpu.core_type<tc>, window_params = [{transform_indices = @transform_0, window_bounds = array<i64: 1, 20, 18, 32>}, {pipeline_mode = #tpu.pipeline_mode<synchronous>, transform_indices = @transform_1, window_bounds = array<i64: 9, 32>}, {pipeline_mode = #tpu.pipeline_mode<synchronous>, transform_indices = @transform_2, window_bounds = array<i64: 1, 32>}, {pipeline_mode = #tpu.pipeline_mode<synchronous>, transform_indices = @transform_3, window_bounds = array<i64: 1, 32>}, {pipeline_mode = #tpu.pipeline_mode<synchronous>, transform_indices = @transform_4, window_bounds = array<i64: 1, 32>}, {pipeline_mode = #tpu.pipeline_mode<synchronous>, transform_indices = @transform_5, window_bounds = array<i64: 32, 128>}, {pipeline_mode = #tpu.pipeline_mode<synchronous>, transform_indices = @transform_6, window_bounds = array<i64: 1, 128>}, {pipeline_mode = #tpu.pipeline_mode<synchronous>, transform_indices = @transform_7, window_bounds = array<i64: 9, 128>}, {pipeline_mode = #tpu.pipeline_mode<synchronous>, transform_indices = @transform_8, window_bounds = array<i64: 1, 128>}, {pipeline_mode = #tpu.pipeline_mode<synchronous>, transform_indices = @transform_9, window_bounds = array<i64: 128, 32>}, {pipeline_mode = #tpu.pipeline_mode<synchronous>, transform_indices = @transform_10, window_bounds = array<i64: 1, 32>}, {transform_indices = @transform_11, window_bounds = array<i64: 1, 16, 16, 32>}]} {
    %c16_i32 = arith.constant 16 : i32
    %0 = arith.muli %arg1, %c16_i32 : i32
    %c0 = arith.constant 0 : index
    %c0_0 = arith.constant 0 : index
    %1 = vector.load %arg3[%c0, %c0_0] : memref<9x32xf32, #tpu.memory_space<vmem>>, vector<9x32xf32>
    %c0_i32 = arith.constant 0 : i32
    %2 = arith.addi %0, %c0_i32 : i32
    %c0_1 = arith.constant 0 : index
    %3 = arith.index_cast %2 : i32 to index
    %c0_2 = arith.constant 0 : index
    %c0_3 = arith.constant 0 : index
    %4 = vector.load %arg2[%c0_1, %3, %c0_2, %c0_3] : memref<1x20x18x32xf32, #tpu.memory_space<vmem>>, vector<1x18x16x32xf32>
    %5 = vector.shape_cast %4 : vector<1x18x16x32xf32> to vector<18x16x32xf32>
    %6 = vector.extract_strided_slice %1 {offsets = [0, 0], sizes = [1, 32], strides = [1, 1]} : vector<9x32xf32> to vector<1x32xf32>
    %7 = vector.shape_cast %6 : vector<1x32xf32> to vector<32xf32>
    %8 = vector.shape_cast %7 : vector<32xf32> to vector<1x1x32xf32>
    %9 = vector.broadcast %8 : vector<1x1x32xf32> to vector<18x16x32xf32>
    %10 = arith.mulf %5, %9 : vector<18x16x32xf32>
    %c0_4 = arith.constant 0 : index
    %c0_5 = arith.constant 0 : index
    %11 = vector.load %arg4[%c0_4, %c0_5] : memref<1x32xf32, #tpu.memory_space<vmem>>, vector<1x32xf32>
    %12 = vector.shape_cast %11 : vector<1x32xf32> to vector<32xf32>
    %13 = vector.shape_cast %12 : vector<32xf32> to vector<1x1x32xf32>
    %14 = vector.broadcast %13 : vector<1x1x32xf32> to vector<18x16x32xf32>
    %15 = arith.addf %10, %14 : vector<18x16x32xf32>
    %c0_i32_6 = arith.constant 0 : i32
    %16 = arith.addi %0, %c0_i32_6 : i32
    %c0_7 = arith.constant 0 : index
    %17 = arith.index_cast %16 : i32 to index
    %c1 = arith.constant 1 : index
    %c0_8 = arith.constant 0 : index
    %18 = vector.load %arg2[%c0_7, %17, %c1, %c0_8] : memref<1x20x18x32xf32, #tpu.memory_space<vmem>>, vector<1x18x16x32xf32>
    %19 = vector.shape_cast %18 : vector<1x18x16x32xf32> to vector<18x16x32xf32>
    %20 = vector.extract_strided_slice %1 {offsets = [1, 0], sizes = [1, 32], strides = [1, 1]} : vector<9x32xf32> to vector<1x32xf32>
    %21 = vector.shape_cast %20 : vector<1x32xf32> to vector<32xf32>
    %22 = vector.shape_cast %21 : vector<32xf32> to vector<1x1x32xf32>
    %23 = vector.broadcast %22 : vector<1x1x32xf32> to vector<18x16x32xf32>
    %24 = arith.mulf %19, %23 : vector<18x16x32xf32>
    %25 = arith.addf %15, %24 : vector<18x16x32xf32>
    %c0_i32_9 = arith.constant 0 : i32
    %26 = arith.addi %0, %c0_i32_9 : i32
    %c0_10 = arith.constant 0 : index
    %27 = arith.index_cast %26 : i32 to index
    %c2 = arith.constant 2 : index
    %c0_11 = arith.constant 0 : index
    %28 = vector.load %arg2[%c0_10, %27, %c2, %c0_11] : memref<1x20x18x32xf32, #tpu.memory_space<vmem>>, vector<1x18x16x32xf32>
    %29 = vector.shape_cast %28 : vector<1x18x16x32xf32> to vector<18x16x32xf32>
    %30 = vector.extract_strided_slice %1 {offsets = [2, 0], sizes = [1, 32], strides = [1, 1]} : vector<9x32xf32> to vector<1x32xf32>
    %31 = vector.shape_cast %30 : vector<1x32xf32> to vector<32xf32>
    %32 = vector.shape_cast %31 : vector<32xf32> to vector<1x1x32xf32>
    %33 = vector.broadcast %32 : vector<1x1x32xf32> to vector<18x16x32xf32>
    %34 = arith.mulf %29, %33 : vector<18x16x32xf32>
    %35 = arith.addf %25, %34 : vector<18x16x32xf32>
    %c1_i32 = arith.constant 1 : i32
    %36 = arith.addi %0, %c1_i32 : i32
    %c0_12 = arith.constant 0 : index
    %37 = arith.index_cast %36 : i32 to index
    %c0_13 = arith.constant 0 : index
    %c0_14 = arith.constant 0 : index
    %38 = vector.load %arg2[%c0_12, %37, %c0_13, %c0_14] : memref<1x20x18x32xf32, #tpu.memory_space<vmem>>, vector<1x18x16x32xf32>
    %39 = vector.shape_cast %38 : vector<1x18x16x32xf32> to vector<18x16x32xf32>
    %40 = vector.extract_strided_slice %1 {offsets = [3, 0], sizes = [1, 32], strides = [1, 1]} : vector<9x32xf32> to vector<1x32xf32>
    %41 = vector.shape_cast %40 : vector<1x32xf32> to vector<32xf32>
    %42 = vector.shape_cast %41 : vector<32xf32> to vector<1x1x32xf32>
    %43 = vector.broadcast %42 : vector<1x1x32xf32> to vector<18x16x32xf32>
    %44 = arith.mulf %39, %43 : vector<18x16x32xf32>
    %45 = arith.addf %35, %44 : vector<18x16x32xf32>
    %c1_i32_15 = arith.constant 1 : i32
    %46 = arith.addi %0, %c1_i32_15 : i32
    %c0_16 = arith.constant 0 : index
    %47 = arith.index_cast %46 : i32 to index
    %c1_17 = arith.constant 1 : index
    %c0_18 = arith.constant 0 : index
    %48 = vector.load %arg2[%c0_16, %47, %c1_17, %c0_18] : memref<1x20x18x32xf32, #tpu.memory_space<vmem>>, vector<1x18x16x32xf32>
    %49 = vector.shape_cast %48 : vector<1x18x16x32xf32> to vector<18x16x32xf32>
    %50 = vector.extract_strided_slice %1 {offsets = [4, 0], sizes = [1, 32], strides = [1, 1]} : vector<9x32xf32> to vector<1x32xf32>
    %51 = vector.shape_cast %50 : vector<1x32xf32> to vector<32xf32>
    %52 = vector.shape_cast %51 : vector<32xf32> to vector<1x1x32xf32>
    %53 = vector.broadcast %52 : vector<1x1x32xf32> to vector<18x16x32xf32>
    %54 = arith.mulf %49, %53 : vector<18x16x32xf32>
    %55 = arith.addf %45, %54 : vector<18x16x32xf32>
    %c1_i32_19 = arith.constant 1 : i32
    %56 = arith.addi %0, %c1_i32_19 : i32
    %c0_20 = arith.constant 0 : index
    %57 = arith.index_cast %56 : i32 to index
    %c2_21 = arith.constant 2 : index
    %c0_22 = arith.constant 0 : index
    %58 = vector.load %arg2[%c0_20, %57, %c2_21, %c0_22] : memref<1x20x18x32xf32, #tpu.memory_space<vmem>>, vector<1x18x16x32xf32>
    %59 = vector.shape_cast %58 : vector<1x18x16x32xf32> to vector<18x16x32xf32>
    %60 = vector.extract_strided_slice %1 {offsets = [5, 0], sizes = [1, 32], strides = [1, 1]} : vector<9x32xf32> to vector<1x32xf32>
    %61 = vector.shape_cast %60 : vector<1x32xf32> to vector<32xf32>
    %62 = vector.shape_cast %61 : vector<32xf32> to vector<1x1x32xf32>
    %63 = vector.broadcast %62 : vector<1x1x32xf32> to vector<18x16x32xf32>
    %64 = arith.mulf %59, %63 : vector<18x16x32xf32>
    %65 = arith.addf %55, %64 : vector<18x16x32xf32>
    %c2_i32 = arith.constant 2 : i32
    %66 = arith.addi %0, %c2_i32 : i32
    %c0_23 = arith.constant 0 : index
    %67 = arith.index_cast %66 : i32 to index
    %c0_24 = arith.constant 0 : index
    %c0_25 = arith.constant 0 : index
    %68 = vector.load %arg2[%c0_23, %67, %c0_24, %c0_25] : memref<1x20x18x32xf32, #tpu.memory_space<vmem>>, vector<1x18x16x32xf32>
    %69 = vector.shape_cast %68 : vector<1x18x16x32xf32> to vector<18x16x32xf32>
    %70 = vector.extract_strided_slice %1 {offsets = [6, 0], sizes = [1, 32], strides = [1, 1]} : vector<9x32xf32> to vector<1x32xf32>
    %71 = vector.shape_cast %70 : vector<1x32xf32> to vector<32xf32>
    %72 = vector.shape_cast %71 : vector<32xf32> to vector<1x1x32xf32>
    %73 = vector.broadcast %72 : vector<1x1x32xf32> to vector<18x16x32xf32>
    %74 = arith.mulf %69, %73 : vector<18x16x32xf32>
    %75 = arith.addf %65, %74 : vector<18x16x32xf32>
    %c2_i32_26 = arith.constant 2 : i32
    %76 = arith.addi %0, %c2_i32_26 : i32
    %c0_27 = arith.constant 0 : index
    %77 = arith.index_cast %76 : i32 to index
    %c1_28 = arith.constant 1 : index
    %c0_29 = arith.constant 0 : index
    %78 = vector.load %arg2[%c0_27, %77, %c1_28, %c0_29] : memref<1x20x18x32xf32, #tpu.memory_space<vmem>>, vector<1x18x16x32xf32>
    %79 = vector.shape_cast %78 : vector<1x18x16x32xf32> to vector<18x16x32xf32>
    %80 = vector.extract_strided_slice %1 {offsets = [7, 0], sizes = [1, 32], strides = [1, 1]} : vector<9x32xf32> to vector<1x32xf32>
    %81 = vector.shape_cast %80 : vector<1x32xf32> to vector<32xf32>
    %82 = vector.shape_cast %81 : vector<32xf32> to vector<1x1x32xf32>
    %83 = vector.broadcast %82 : vector<1x1x32xf32> to vector<18x16x32xf32>
    %84 = arith.mulf %79, %83 : vector<18x16x32xf32>
    %85 = arith.addf %75, %84 : vector<18x16x32xf32>
    %c2_i32_30 = arith.constant 2 : i32
    %86 = arith.addi %0, %c2_i32_30 : i32
    %c0_31 = arith.constant 0 : index
    %87 = arith.index_cast %86 : i32 to index
    %c2_32 = arith.constant 2 : index
    %c0_33 = arith.constant 0 : index
    %88 = vector.load %arg2[%c0_31, %87, %c2_32, %c0_33] : memref<1x20x18x32xf32, #tpu.memory_space<vmem>>, vector<1x18x16x32xf32>
    %89 = vector.shape_cast %88 : vector<1x18x16x32xf32> to vector<18x16x32xf32>
    %90 = vector.extract_strided_slice %1 {offsets = [8, 0], sizes = [1, 32], strides = [1, 1]} : vector<9x32xf32> to vector<1x32xf32>
    %91 = vector.shape_cast %90 : vector<1x32xf32> to vector<32xf32>
    %92 = vector.shape_cast %91 : vector<32xf32> to vector<1x1x32xf32>
    %93 = vector.broadcast %92 : vector<1x1x32xf32> to vector<18x16x32xf32>
    %94 = arith.mulf %89, %93 : vector<18x16x32xf32>
    %95 = arith.addf %85, %94 : vector<18x16x32xf32>
    %cst = arith.constant dense<0.000000e+00> : vector<18x16xf32>
    %96 = vector.multi_reduction <add>, %95, %cst [2] : vector<18x16x32xf32> to vector<18x16xf32>
    %97 = vector.shape_cast %96 : vector<18x16xf32> to vector<18x16x1xf32>
    %cst_34 = arith.constant 3.200000e+01 : f32
    %98 = vector.broadcast %cst_34 : f32 to vector<18x16x1xf32>
    %99 = arith.divf %97, %98 : vector<18x16x1xf32>
    %100 = vector.broadcast %99 : vector<18x16x1xf32> to vector<18x16x32xf32>
    %101 = arith.subf %95, %100 : vector<18x16x32xf32>
    %102 = arith.mulf %101, %101 : vector<18x16x32xf32>
    %cst_35 = arith.constant dense<0.000000e+00> : vector<18x16xf32>
    %103 = vector.multi_reduction <add>, %102, %cst_35 [2] : vector<18x16x32xf32> to vector<18x16xf32>
    %104 = vector.shape_cast %103 : vector<18x16xf32> to vector<18x16x1xf32>
    %cst_36 = arith.constant 3.200000e+01 : f32
    %105 = vector.broadcast %cst_36 : f32 to vector<18x16x1xf32>
    %106 = arith.divf %104, %105 : vector<18x16x1xf32>
    %cst_37 = arith.constant 9.99999997E-7 : f32
    %107 = vector.broadcast %cst_37 : f32 to vector<18x16x1xf32>
    %108 = arith.addf %106, %107 : vector<18x16x1xf32>
    %109 = math.rsqrt %108 : vector<18x16x1xf32>
    %110 = vector.broadcast %109 : vector<18x16x1xf32> to vector<18x16x32xf32>
    %111 = arith.mulf %101, %110 : vector<18x16x32xf32>
    %c0_38 = arith.constant 0 : index
    %c0_39 = arith.constant 0 : index
    %112 = vector.load %arg5[%c0_38, %c0_39] : memref<1x32xf32, #tpu.memory_space<vmem>>, vector<1x32xf32>
    %113 = vector.shape_cast %112 : vector<1x32xf32> to vector<32xf32>
    %114 = vector.shape_cast %113 : vector<32xf32> to vector<1x1x32xf32>
    %115 = vector.broadcast %114 : vector<1x1x32xf32> to vector<18x16x32xf32>
    %116 = arith.mulf %111, %115 : vector<18x16x32xf32>
    %117 = arith.addf %95, %116 : vector<18x16x32xf32>
    %c0_40 = arith.constant 0 : index
    %c0_41 = arith.constant 0 : index
    %118 = vector.load %arg6[%c0_40, %c0_41] : memref<1x32xf32, #tpu.memory_space<vmem>>, vector<1x32xf32>
    %119 = vector.shape_cast %118 : vector<1x32xf32> to vector<32xf32>
    %120 = vector.shape_cast %119 : vector<32xf32> to vector<1x1x32xf32>
    %121 = vector.broadcast %120 : vector<1x1x32xf32> to vector<18x16x32xf32>
    %122 = arith.addf %117, %121 : vector<18x16x32xf32>
    %123 = vector.shape_cast %122 : vector<18x16x32xf32> to vector<288x32xf32>
    %124 = arith.truncf %123 : vector<288x32xf32> to vector<288x32xbf16>
    %c0_42 = arith.constant 0 : index
    %c0_43 = arith.constant 0 : index
    %125 = vector.load %arg7[%c0_42, %c0_43] : memref<32x128xbf16, #tpu.memory_space<vmem>>, vector<32x128xbf16>
    %cst_44 = arith.constant dense<0.000000e+00> : vector<288x128xf32>
    %126 = tpu.matmul %124, %125, %cst_44 {dimension_numbers = #tpu.dot_dimension_numbers<[1], [0], [0], [1], [0, 0, 1, 1], [], []>} : vector<288x32xbf16>, vector<32x128xbf16>, vector<288x128xf32> -> vector<288x128xf32>
    %c0_45 = arith.constant 0 : index
    %c0_46 = arith.constant 0 : index
    %127 = vector.load %arg8[%c0_45, %c0_46] : memref<1x128xf32, #tpu.memory_space<vmem>>, vector<1x128xf32>
    %128 = vector.shape_cast %127 : vector<1x128xf32> to vector<128xf32>
    %129 = vector.shape_cast %128 : vector<128xf32> to vector<1x128xf32>
    %130 = vector.broadcast %129 : vector<1x128xf32> to vector<288x128xf32>
    %131 = arith.addf %126, %130 : vector<288x128xf32>
    %132 = arith.mulf %131, %131 : vector<288x128xf32>
    %133 = arith.mulf %132, %131 : vector<288x128xf32>
    %cst_47 = arith.constant 4.471500e-02 : f32
    %134 = vector.broadcast %cst_47 : f32 to vector<288x128xf32>
    %135 = arith.mulf %134, %133 : vector<288x128xf32>
    %136 = arith.addf %131, %135 : vector<288x128xf32>
    %cst_48 = arith.constant 0.797884583 : f32
    %137 = vector.broadcast %cst_48 : f32 to vector<288x128xf32>
    %138 = arith.mulf %137, %136 : vector<288x128xf32>
    %cst_49 = arith.constant 5.000000e-01 : f32
    %139 = vector.broadcast %cst_49 : f32 to vector<288x128xf32>
    %140 = arith.mulf %139, %131 : vector<288x128xf32>
    %141 = math.tanh %138 : vector<288x128xf32>
    %cst_50 = arith.constant 1.000000e+00 : f32
    %142 = vector.broadcast %cst_50 : f32 to vector<288x128xf32>
    %143 = arith.addf %142, %141 : vector<288x128xf32>
    %144 = arith.mulf %140, %143 : vector<288x128xf32>
    %145 = vector.shape_cast %144 : vector<288x128xf32> to vector<18x16x128xf32>
    %146 = arith.truncf %145 : vector<18x16x128xf32> to vector<18x16x128xbf16>
    %c0_51 = arith.constant 0 : index
    %c1_52 = arith.constant 1 : index
    %c0_53 = arith.constant 0 : index
    %147 = vector.load %arg14[%c0_51, %c1_52, %c0_53] : memref<18x24x128xbf16, #tpu.memory_space<vmem>>, vector<18x16x128xbf16>
    tpu.vector_store %arg14[%c0_51, %c1_52, %c0_53], %146 {strides = array<i32>} : memref<18x24x128xbf16, #tpu.memory_space<vmem>>, vector<18x16x128xbf16>,
    %cst_54 = arith.constant 0.000000e+00 : bf16
    %148 = vector.broadcast %cst_54 : bf16 to vector<18x1x128xbf16>
    %c0_55 = arith.constant 0 : index
    %c0_56 = arith.constant 0 : index
    %c0_57 = arith.constant 0 : index
    %149 = vector.load %arg14[%c0_55, %c0_56, %c0_57] : memref<18x24x128xbf16, #tpu.memory_space<vmem>>, vector<18x1x128xbf16>
    tpu.vector_store %arg14[%c0_55, %c0_56, %c0_57], %148 {strides = array<i32>} : memref<18x24x128xbf16, #tpu.memory_space<vmem>>, vector<18x1x128xbf16>,
    %cst_58 = arith.constant 0.000000e+00 : bf16
    %150 = vector.broadcast %cst_58 : bf16 to vector<18x1x128xbf16>
    %c0_59 = arith.constant 0 : index
    %c17 = arith.constant 17 : index
    %c0_60 = arith.constant 0 : index
    %151 = vector.load %arg14[%c0_59, %c17, %c0_60] : memref<18x24x128xbf16, #tpu.memory_space<vmem>>, vector<18x1x128xbf16>
    tpu.vector_store %arg14[%c0_59, %c17, %c0_60], %150 {strides = array<i32>} : memref<18x24x128xbf16, #tpu.memory_space<vmem>>, vector<18x1x128xbf16>,
    %c0_i32_61 = arith.constant 0 : i32
    %152 = arith.cmpi eq, %arg1, %c0_i32_61 : i32
    %153 = arith.extui %152 : i1 to i32
    %c0_i32_62 = arith.constant 0 : i32
    %154 = arith.cmpi ne, %153, %c0_i32_62 : i32
    scf.if %154 {
      %cst_105 = arith.constant 0.000000e+00 : bf16
      %250 = vector.broadcast %cst_105 : bf16 to vector<1x18x128xbf16>
      %c0_106 = arith.constant 0 : index
      %c0_107 = arith.constant 0 : index
      %c0_108 = arith.constant 0 : index
      %251 = vector.load %arg14[%c0_106, %c0_107, %c0_108] : memref<18x24x128xbf16, #tpu.memory_space<vmem>>, vector<1x18x128xbf16>
      tpu.vector_store %arg14[%c0_106, %c0_107, %c0_108], %250 {strides = array<i32>} : memref<18x24x128xbf16, #tpu.memory_space<vmem>>, vector<1x18x128xbf16>,
    } else {
    }
    %c0_i32_63 = arith.constant 0 : i32
    %155 = arith.cmpi eq, %arg1, %c0_i32_63 : i32
    %156 = arith.extui %155 : i1 to i32
    %c0_i32_64 = arith.constant 0 : i32
    %157 = arith.cmpi ne, %156, %c0_i32_64 : i32
    scf.if %157 {
      %cst_105 = arith.constant 0.000000e+00 : bf16
      %250 = vector.broadcast %cst_105 : bf16 to vector<1x18x128xbf16>
      %c17_106 = arith.constant 17 : index
      %c0_107 = arith.constant 0 : index
      %c0_108 = arith.constant 0 : index
      %251 = vector.load %arg14[%c17_106, %c0_107, %c0_108] : memref<18x24x128xbf16, #tpu.memory_space<vmem>>, vector<1x18x128xbf16>
      tpu.vector_store %arg14[%c17_106, %c0_107, %c0_108], %250 {strides = array<i32>} : memref<18x24x128xbf16, #tpu.memory_space<vmem>>, vector<1x18x128xbf16>,
    } else {
    }
    %c0_65 = arith.constant 0 : index
    %c0_66 = arith.constant 0 : index
    %158 = vector.load %arg9[%c0_65, %c0_66] : memref<9x128xf32, #tpu.memory_space<vmem>>, vector<9x128xf32>
    %c0_67 = arith.constant 0 : index
    %c0_68 = arith.constant 0 : index
    %c0_69 = arith.constant 0 : index
    %159 = vector.load %arg14[%c0_67, %c0_68, %c0_69] : memref<18x24x128xbf16, #tpu.memory_space<vmem>>, vector<16x16x128xbf16>
    %160 = arith.extf %159 : vector<16x16x128xbf16> to vector<16x16x128xf32>
    %161 = vector.extract_strided_slice %158 {offsets = [0, 0], sizes = [1, 128], strides = [1, 1]} : vector<9x128xf32> to vector<1x128xf32>
    %162 = vector.shape_cast %161 : vector<1x128xf32> to vector<128xf32>
    %163 = vector.shape_cast %162 : vector<128xf32> to vector<1x1x128xf32>
    %164 = vector.broadcast %163 : vector<1x1x128xf32> to vector<16x16x128xf32>
    %165 = arith.mulf %160, %164 : vector<16x16x128xf32>
    %c0_70 = arith.constant 0 : index
    %c0_71 = arith.constant 0 : index
    %166 = vector.load %arg10[%c0_70, %c0_71] : memref<1x128xf32, #tpu.memory_space<vmem>>, vector<1x128xf32>
    %167 = vector.shape_cast %166 : vector<1x128xf32> to vector<128xf32>
    %168 = vector.shape_cast %167 : vector<128xf32> to vector<1x1x128xf32>
    %169 = vector.broadcast %168 : vector<1x1x128xf32> to vector<16x16x128xf32>
    %170 = arith.addf %165, %169 : vector<16x16x128xf32>
    %c0_72 = arith.constant 0 : index
    %c1_73 = arith.constant 1 : index
    %c0_74 = arith.constant 0 : index
    %171 = vector.load %arg14[%c0_72, %c1_73, %c0_74] : memref<18x24x128xbf16, #tpu.memory_space<vmem>>, vector<16x16x128xbf16>
    %172 = arith.extf %171 : vector<16x16x128xbf16> to vector<16x16x128xf32>
    %173 = vector.extract_strided_slice %158 {offsets = [1, 0], sizes = [1, 128], strides = [1, 1]} : vector<9x128xf32> to vector<1x128xf32>
    %174 = vector.shape_cast %173 : vector<1x128xf32> to vector<128xf32>
    %175 = vector.shape_cast %174 : vector<128xf32> to vector<1x1x128xf32>
    %176 = vector.broadcast %175 : vector<1x1x128xf32> to vector<16x16x128xf32>
    %177 = arith.mulf %172, %176 : vector<16x16x128xf32>
    %178 = arith.addf %170, %177 : vector<16x16x128xf32>
    %c0_75 = arith.constant 0 : index
    %c2_76 = arith.constant 2 : index
    %c0_77 = arith.constant 0 : index
    %179 = vector.load %arg14[%c0_75, %c2_76, %c0_77] : memref<18x24x128xbf16, #tpu.memory_space<vmem>>, vector<16x16x128xbf16>
    %180 = arith.extf %179 : vector<16x16x128xbf16> to vector<16x16x128xf32>
    %181 = vector.extract_strided_slice %158 {offsets = [2, 0], sizes = [1, 128], strides = [1, 1]} : vector<9x128xf32> to vector<1x128xf32>
    %182 = vector.shape_cast %181 : vector<1x128xf32> to vector<128xf32>
    %183 = vector.shape_cast %182 : vector<128xf32> to vector<1x1x128xf32>
    %184 = vector.broadcast %183 : vector<1x1x128xf32> to vector<16x16x128xf32>
    %185 = arith.mulf %180, %184 : vector<16x16x128xf32>
    %186 = arith.addf %178, %185 : vector<16x16x128xf32>
    %c1_78 = arith.constant 1 : index
    %c0_79 = arith.constant 0 : index
    %c0_80 = arith.constant 0 : index
    %187 = vector.load %arg14[%c1_78, %c0_79, %c0_80] : memref<18x24x128xbf16, #tpu.memory_space<vmem>>, vector<16x16x128xbf16>
    %188 = arith.extf %187 : vector<16x16x128xbf16> to vector<16x16x128xf32>
    %189 = vector.extract_strided_slice %158 {offsets = [3, 0], sizes = [1, 128], strides = [1, 1]} : vector<9x128xf32> to vector<1x128xf32>
    %190 = vector.shape_cast %189 : vector<1x128xf32> to vector<128xf32>
    %191 = vector.shape_cast %190 : vector<128xf32> to vector<1x1x128xf32>
    %192 = vector.broadcast %191 : vector<1x1x128xf32> to vector<16x16x128xf32>
    %193 = arith.mulf %188, %192 : vector<16x16x128xf32>
    %194 = arith.addf %186, %193 : vector<16x16x128xf32>
    %c1_81 = arith.constant 1 : index
    %c1_82 = arith.constant 1 : index
    %c0_83 = arith.constant 0 : index
    %195 = vector.load %arg14[%c1_81, %c1_82, %c0_83] : memref<18x24x128xbf16, #tpu.memory_space<vmem>>, vector<16x16x128xbf16>
    %196 = arith.extf %195 : vector<16x16x128xbf16> to vector<16x16x128xf32>
    %197 = vector.extract_strided_slice %158 {offsets = [4, 0], sizes = [1, 128], strides = [1, 1]} : vector<9x128xf32> to vector<1x128xf32>
    %198 = vector.shape_cast %197 : vector<1x128xf32> to vector<128xf32>
    %199 = vector.shape_cast %198 : vector<128xf32> to vector<1x1x128xf32>
    %200 = vector.broadcast %199 : vector<1x1x128xf32> to vector<16x16x128xf32>
    %201 = arith.mulf %196, %200 : vector<16x16x128xf32>
    %202 = arith.addf %194, %201 : vector<16x16x128xf32>
    %c1_84 = arith.constant 1 : index
    %c2_85 = arith.constant 2 : index
    %c0_86 = arith.constant 0 : index
    %203 = vector.load %arg14[%c1_84, %c2_85, %c0_86] : memref<18x24x128xbf16, #tpu.memory_space<vmem>>, vector<16x16x128xbf16>
    %204 = arith.extf %203 : vector<16x16x128xbf16> to vector<16x16x128xf32>
    %205 = vector.extract_strided_slice %158 {offsets = [5, 0], sizes = [1, 128], strides = [1, 1]} : vector<9x128xf32> to vector<1x128xf32>
    %206 = vector.shape_cast %205 : vector<1x128xf32> to vector<128xf32>
    %207 = vector.shape_cast %206 : vector<128xf32> to vector<1x1x128xf32>
    %208 = vector.broadcast %207 : vector<1x1x128xf32> to vector<16x16x128xf32>
    %209 = arith.mulf %204, %208 : vector<16x16x128xf32>
    %210 = arith.addf %202, %209 : vector<16x16x128xf32>
    %c2_87 = arith.constant 2 : index
    %c0_88 = arith.constant 0 : index
    %c0_89 = arith.constant 0 : index
    %211 = vector.load %arg14[%c2_87, %c0_88, %c0_89] : memref<18x24x128xbf16, #tpu.memory_space<vmem>>, vector<16x16x128xbf16>
    %212 = arith.extf %211 : vector<16x16x128xbf16> to vector<16x16x128xf32>
    %213 = vector.extract_strided_slice %158 {offsets = [6, 0], sizes = [1, 128], strides = [1, 1]} : vector<9x128xf32> to vector<1x128xf32>
    %214 = vector.shape_cast %213 : vector<1x128xf32> to vector<128xf32>
    %215 = vector.shape_cast %214 : vector<128xf32> to vector<1x1x128xf32>
    %216 = vector.broadcast %215 : vector<1x1x128xf32> to vector<16x16x128xf32>
    %217 = arith.mulf %212, %216 : vector<16x16x128xf32>
    %218 = arith.addf %210, %217 : vector<16x16x128xf32>
    %c2_90 = arith.constant 2 : index
    %c1_91 = arith.constant 1 : index
    %c0_92 = arith.constant 0 : index
    %219 = vector.load %arg14[%c2_90, %c1_91, %c0_92] : memref<18x24x128xbf16, #tpu.memory_space<vmem>>, vector<16x16x128xbf16>
    %220 = arith.extf %219 : vector<16x16x128xbf16> to vector<16x16x128xf32>
    %221 = vector.extract_strided_slice %158 {offsets = [7, 0], sizes = [1, 128], strides = [1, 1]} : vector<9x128xf32> to vector<1x128xf32>
    %222 = vector.shape_cast %221 : vector<1x128xf32> to vector<128xf32>
    %223 = vector.shape_cast %222 : vector<128xf32> to vector<1x1x128xf32>
    %224 = vector.broadcast %223 : vector<1x1x128xf32> to vector<16x16x128xf32>
    %225 = arith.mulf %220, %224 : vector<16x16x128xf32>
    %226 = arith.addf %218, %225 : vector<16x16x128xf32>
    %c2_93 = arith.constant 2 : index
    %c2_94 = arith.constant 2 : index
    %c0_95 = arith.constant 0 : index
    %227 = vector.load %arg14[%c2_93, %c2_94, %c0_95] : memref<18x24x128xbf16, #tpu.memory_space<vmem>>, vector<16x16x128xbf16>
    %228 = arith.extf %227 : vector<16x16x128xbf16> to vector<16x16x128xf32>
    %229 = vector.extract_strided_slice %158 {offsets = [8, 0], sizes = [1, 128], strides = [1, 1]} : vector<9x128xf32> to vector<1x128xf32>
    %230 = vector.shape_cast %229 : vector<1x128xf32> to vector<128xf32>
    %231 = vector.shape_cast %230 : vector<128xf32> to vector<1x1x128xf32>
    %232 = vector.broadcast %231 : vector<1x1x128xf32> to vector<16x16x128xf32>
    %233 = arith.mulf %228, %232 : vector<16x16x128xf32>
    %234 = arith.addf %226, %233 : vector<16x16x128xf32>
    %235 = vector.shape_cast %234 : vector<16x16x128xf32> to vector<256x128xf32>
    %236 = arith.truncf %235 : vector<256x128xf32> to vector<256x128xbf16>
    %c0_96 = arith.constant 0 : index
    %c0_97 = arith.constant 0 : index
    %237 = vector.load %arg11[%c0_96, %c0_97] : memref<128x32xbf16, #tpu.memory_space<vmem>>, vector<128x32xbf16>
    %cst_98 = arith.constant dense<0.000000e+00> : vector<256x32xf32>
    %238 = tpu.matmul %236, %237, %cst_98 {dimension_numbers = #tpu.dot_dimension_numbers<[1], [0], [0], [1], [0, 0, 1, 1], [], []>} : vector<256x128xbf16>, vector<128x32xbf16>, vector<256x32xf32> -> vector<256x32xf32>
    %c0_99 = arith.constant 0 : index
    %c0_100 = arith.constant 0 : index
    %239 = vector.load %arg12[%c0_99, %c0_100] : memref<1x32xf32, #tpu.memory_space<vmem>>, vector<1x32xf32>
    %240 = vector.shape_cast %239 : vector<1x32xf32> to vector<32xf32>
    %241 = vector.shape_cast %240 : vector<32xf32> to vector<1x32xf32>
    %242 = vector.broadcast %241 : vector<1x32xf32> to vector<256x32xf32>
    %243 = arith.addf %238, %242 : vector<256x32xf32>
    %244 = vector.extract_strided_slice %122 {offsets = [1, 0, 0], sizes = [16, 16, 32], strides = [1, 1, 1]} : vector<18x16x32xf32> to vector<16x16x32xf32>
    %245 = vector.shape_cast %243 : vector<256x32xf32> to vector<16x16x32xf32>
    %246 = arith.addf %244, %245 : vector<16x16x32xf32>
    %c0_101 = arith.constant 0 : index
    %c0_102 = arith.constant 0 : index
    %c0_103 = arith.constant 0 : index
    %c0_104 = arith.constant 0 : index
    %247 = vector.load %arg13[%c0_101, %c0_102, %c0_103, %c0_104] : memref<1x16x16x32xf32, #tpu.memory_space<vmem>>, vector<1x16x16x32xf32>
    %248 = vector.shape_cast %247 : vector<1x16x16x32xf32> to vector<16x16x32xf32>
    %249 = vector.shape_cast %246 : vector<16x16x32xf32> to vector<1x16x16x32xf32>
    tpu.vector_store %arg13[%c0_101, %c0_102, %c0_103, %c0_104], %249 {strides = array<i32>} : memref<1x16x16x32xf32, #tpu.memory_space<vmem>>, vector<1x16x16x32xf32>,
    return
  }
  func.func @transform_0(%arg0: i32, %arg1: i32) -> (i32, i32, i32, i32) {
    %c0_i32 = arith.constant 0 : i32
    %c0_i32_0 = arith.constant 0 : i32
    %c0_i32_1 = arith.constant 0 : i32
    %c0_i32_2 = arith.constant 0 : i32
    return %arg0, %c0_i32, %c0_i32_0, %c0_i32_1 : i32, i32, i32, i32
  }
  func.func @transform_1(%arg0: i32, %arg1: i32) -> (i32, i32) {
    %c0_i32 = arith.constant 0 : i32
    %c0_i32_0 = arith.constant 0 : i32
    %c0_i32_1 = arith.constant 0 : i32
    return %c0_i32, %c0_i32_0 : i32, i32
  }
  func.func @transform_2(%arg0: i32, %arg1: i32) -> (i32, i32) {
    %c0_i32 = arith.constant 0 : i32
    %c0_i32_0 = arith.constant 0 : i32
    %c0_i32_1 = arith.constant 0 : i32
    return %c0_i32, %c0_i32_0 : i32, i32
  }
  func.func @transform_3(%arg0: i32, %arg1: i32) -> (i32, i32) {
    %c0_i32 = arith.constant 0 : i32
    %c0_i32_0 = arith.constant 0 : i32
    %c0_i32_1 = arith.constant 0 : i32
    return %c0_i32, %c0_i32_0 : i32, i32
  }
  func.func @transform_4(%arg0: i32, %arg1: i32) -> (i32, i32) {
    %c0_i32 = arith.constant 0 : i32
    %c0_i32_0 = arith.constant 0 : i32
    %c0_i32_1 = arith.constant 0 : i32
    return %c0_i32, %c0_i32_0 : i32, i32
  }
  func.func @transform_5(%arg0: i32, %arg1: i32) -> (i32, i32) {
    %c0_i32 = arith.constant 0 : i32
    %c0_i32_0 = arith.constant 0 : i32
    %c0_i32_1 = arith.constant 0 : i32
    return %c0_i32, %c0_i32_0 : i32, i32
  }
  func.func @transform_6(%arg0: i32, %arg1: i32) -> (i32, i32) {
    %c0_i32 = arith.constant 0 : i32
    %c0_i32_0 = arith.constant 0 : i32
    %c0_i32_1 = arith.constant 0 : i32
    return %c0_i32, %c0_i32_0 : i32, i32
  }
  func.func @transform_7(%arg0: i32, %arg1: i32) -> (i32, i32) {
    %c0_i32 = arith.constant 0 : i32
    %c0_i32_0 = arith.constant 0 : i32
    %c0_i32_1 = arith.constant 0 : i32
    return %c0_i32, %c0_i32_0 : i32, i32
  }
  func.func @transform_8(%arg0: i32, %arg1: i32) -> (i32, i32) {
    %c0_i32 = arith.constant 0 : i32
    %c0_i32_0 = arith.constant 0 : i32
    %c0_i32_1 = arith.constant 0 : i32
    return %c0_i32, %c0_i32_0 : i32, i32
  }
  func.func @transform_9(%arg0: i32, %arg1: i32) -> (i32, i32) {
    %c0_i32 = arith.constant 0 : i32
    %c0_i32_0 = arith.constant 0 : i32
    %c0_i32_1 = arith.constant 0 : i32
    return %c0_i32, %c0_i32_0 : i32, i32
  }
  func.func @transform_10(%arg0: i32, %arg1: i32) -> (i32, i32) {
    %c0_i32 = arith.constant 0 : i32
    %c0_i32_0 = arith.constant 0 : i32
    %c0_i32_1 = arith.constant 0 : i32
    return %c0_i32, %c0_i32_0 : i32, i32
  }
  func.func @transform_11(%arg0: i32, %arg1: i32) -> (i32, i32, i32, i32) {
    %c0_i32 = arith.constant 0 : i32
    %c0_i32_0 = arith.constant 0 : i32
    %c0_i32_1 = arith.constant 0 : i32
    return %arg0, %arg1, %c0_i32, %c0_i32_0 : i32, i32, i32, i32
  }
}

</mosaic_0001>

<llo_original>
// kernel: tpu_custom_call.1
$region0: #{tpu_custom_call.1}
  #allocation0 [shape = 'u32[]', space=smem, size = 0x4, offset = 0x4, fixed_abs, tag = 'smem constant byte address 0x4 - core index']
  #allocation1 [shape = 'u32[144,128]{1,0:T(1,128)}', space=vmem, size = 0x12000, scoped, tag = 'internal scratch']
  #allocation2 [shape = 'bf16[18,24,128]{2,1,0:T(8,128)(2,1)}', space=vmem, size = 0x1b000, scoped, tag = 'scratch operand']
  %s0 = inlined_call_operand.vmem [shape: f32[2,20,18,32], index: 0, kind: input, shape index: {}]
  %s1 = inlined_call_operand.vmem [shape: f32[9,32], index: 1, kind: input, shape index: {}]
  %s2 = inlined_call_operand.vmem [shape: f32[1,32], index: 2, kind: input, shape index: {}]
  %s3 = inlined_call_operand.vmem [shape: f32[1,32], index: 3, kind: input, shape index: {}]
  %s4 = inlined_call_operand.vmem [shape: f32[1,32], index: 4, kind: input, shape index: {}]
  %s5 = inlined_call_operand.vmem [shape: bf16[32,128], index: 5, kind: input, shape index: {}]
  %s6 = inlined_call_operand.vmem [shape: f32[1,128], index: 6, kind: input, shape index: {}]
  %s7 = inlined_call_operand.vmem [shape: f32[9,128], index: 7, kind: input, shape index: {}]
  %s8 = inlined_call_operand.vmem [shape: f32[1,128], index: 8, kind: input, shape index: {}]
  %s9 = inlined_call_operand.vmem [shape: bf16[128,32], index: 9, kind: input, shape index: {}]
  %s10 = inlined_call_operand.vmem [shape: f32[1,32], index: 10, kind: input, shape index: {}]
  %s11 = inlined_call_operand.hbm [shape: f32[2,16,16,32], index: 11, kind: output, shape index: {}]
  %s12 = sld [smem:[#allocation0]]
  $region81: #{tpu_custom_call.1} parent=0
    _
  %s14 = ssub.s32 1, %s12
  %s15 = scalar_select 0, %s14, %s12
  $region1: #{tpu_custom_call.1} parent=0
    #allocation3 [shape = 'u8[262144]{0}', space=vmem, size = 0x40000, scoped, tag = 'output window, operand 0']
    #allocation4 [shape = 's32[2]{0}', space=sflag, size = 0x8, scoped, tag = 'scoped memory for tpu_custom_call.1']
    %16 = vsyncpa [#allocation4], 0
    %s17 = scalar_lea.sflag [#allocation4], 1
    %18 = vsyncpa %s17, 0
    loop: start=0, step=1, limit=4
    $region2: #{tpu_custom_call.1} parent=1 // loop_pre_header
      _
    $region3: #{tpu_custom_call.1} parent=1 // loop_header
      %s20 = sphi 0, %s24
      %p21 = scmp.ge.s32.totalorder %s20, 4
      %s27 = sphi 0, %s39
      %s28 = sphi 0, %s35
      %s29 = sphi 0, %s27
      %s30 = sphi 0, %s28
      %s31 = sphi 0, %s29
      %s32 = sphi 0, %s30
      %s42 = sphi 0, %s44
      %s45 = sphi 0, %s42
      %s46 = sphi 0, %s45
      %s62 = sphi 0, %s46
      %s66 = sphi 0, %s66
      %s68 = sphi 0, %s66
      %s69 = sphi 0, %s68
      %s83 = sphi 0, %s69
      %s87 = sphi 0, %s87
      %s89 = sphi 0, %s87
      %s90 = sphi 0, %s89
      %s104 = sphi 0, %s90
      %s108 = sphi 0, %s108
      %s110 = sphi 0, %s108
      %s111 = sphi 0, %s110
      %s125 = sphi 0, %s111
      %s129 = sphi 0, %s129
      %s131 = sphi 0, %s129
      %s132 = sphi 0, %s131
      %s146 = sphi 0, %s132
      %s150 = sphi 0, %s150
      %s152 = sphi 0, %s150
      %s153 = sphi 0, %s152
      %s167 = sphi 0, %s153
      %s171 = sphi 0, %s171
      %s173 = sphi 0, %s171
      %s174 = sphi 0, %s173
      %s188 = sphi 0, %s174
      %s192 = sphi 0, %s192
      %s194 = sphi 0, %s192
      %s195 = sphi 0, %s194
      %s209 = sphi 0, %s195
      %s213 = sphi 0, %s213
      %s215 = sphi 0, %s213
      %s216 = sphi 0, %s215
      %s230 = sphi 0, %s216
      %s234 = sphi 0, %s234
      %s236 = sphi 0, %s234
      %s237 = sphi 0, %s236
      %s251 = sphi 0, %s237
      %s255 = sphi 0, %s255
      %s257 = sphi 0, %s255
      %s258 = sphi 0, %s257
      %s272 = sphi 0, %s258
      %s280 = sphi 0, %s282
      %s283 = sphi 0, %s280
      %s284 = sphi 0, %s283
      %s300 = sphi 0, %s284
    $region4: #{tpu_custom_call.1} parent=1 // loop_header_branch
      %23 = sbr.rel (%p21) target = $region8
    $region5: #{tpu_custom_call.1} parent=1 // loop_body
      %s25 = ssub.s32 %s20, 1
      %s26 = ssub.s32 %s20, 2
      %s33 = sadd.s32 1, %s28
      %p34 = scmp.ge.s32.totalorder %s33, 1
      %s35 = scalar_select %p34, 0, %s33
      %s36 = sadd.s32 1, %s27
      %s37 = scalar_select %p34, %s36, %s27
      %p38 = scmp.ge.s32.totalorder %s37, 2
      %s39 = scalar_select %p38, 0, %s37
      %s40 = ssub.s32 %s27, %s39
      %p41 = scmp.eq.s32.totalorder %s40, 0
      %s43 = sadd.s32 %s42, 1
      %s44 = scalar_select %p41, %s42, %s43
      %p47 = pneg %p41
      %p48 = scmp.eq.s32.totalorder %s20, 1
      %p49 = por %p47, %p48
      %p50 = scmp.ne.s32.totalorder %s42, %s45
      %p51 = scmp.eq.s32.totalorder %s20, 0
      %p52 = por %p50, %p51
      %p53 = scmp.ne.s32.totalorder %s42, %s45
      %p54 = scmp.eq.s32.totalorder %s25, 1
      %p55 = por %p53, %p54
      %p56 = scmp.ne.s32.totalorder %s45, %s46
      %p57 = scmp.eq.s32.totalorder %s25, 0
      %p58 = por %p56, %p57
      %p59 = scmp.ne.s32.totalorder %s45, %s46
      %p60 = scmp.eq.s32.totalorder %s26, 1
      %p61 = por %p59, %p60
      %p63 = scmp.ne.s32.totalorder %s46, %s62
      %p64 = scmp.eq.s32.totalorder %s26, 0
      %p65 = por %p63, %p64
      %s67 = sadd.s32 %s66, 1
      %p70 = scmp.eq.s32.totalorder %s20, 1
      %p71 = scmp.ne.s32.totalorder %s66, %s68
      %p72 = scmp.eq.s32.totalorder %s20, 0
      %p73 = por %p71, %p72
      %p74 = scmp.ne.s32.totalorder %s66, %s68
      %p75 = scmp.eq.s32.totalorder %s25, 1
      %p76 = por %p74, %p75
      %p77 = scmp.ne.s32.totalorder %s68, %s69
      %p78 = scmp.eq.s32.totalorder %s25, 0
      %p79 = por %p77, %p78
      %p80 = scmp.ne.s32.totalorder %s68, %s69
      %p81 = scmp.eq.s32.totalorder %s26, 1
      %p82 = por %p80, %p81
      %p84 = scmp.ne.s32.totalorder %s69, %s83
      %p85 = scmp.eq.s32.totalorder %s26, 0
      %p86 = por %p84, %p85
      %s88 = sadd.s32 %s87, 1
      %p91 = scmp.eq.s32.totalorder %s20, 1
      %p92 = scmp.ne.s32.totalorder %s87, %s89
      %p93 = scmp.eq.s32.totalorder %s20, 0
      %p94 = por %p92, %p93
      %p95 = scmp.ne.s32.totalorder %s87, %s89
      %p96 = scmp.eq.s32.totalorder %s25, 1
      %p97 = por %p95, %p96
      %p98 = scmp.ne.s32.totalorder %s89, %s90
      %p99 = scmp.eq.s32.totalorder %s25, 0
      %p100 = por %p98, %p99
      %p101 = scmp.ne.s32.totalorder %s89, %s90
      %p102 = scmp.eq.s32.totalorder %s26, 1
      %p103 = por %p101, %p102
      %p105 = scmp.ne.s32.totalorder %s90, %s104
      %p106 = scmp.eq.s32.totalorder %s26, 0
      %p107 = por %p105, %p106
      %s109 = sadd.s32 %s108, 1
      %p112 = scmp.eq.s32.totalorder %s20, 1
      %p113 = scmp.ne.s32.totalorder %s108, %s110
      %p114 = scmp.eq.s32.totalorder %s20, 0
      %p115 = por %p113, %p114
      %p116 = scmp.ne.s32.totalorder %s108, %s110
      %p117 = scmp.eq.s32.totalorder %s25, 1
      %p118 = por %p116, %p117
      %p119 = scmp.ne.s32.totalorder %s110, %s111
      %p120 = scmp.eq.s32.totalorder %s25, 0
      %p121 = por %p119, %p120
      %p122 = scmp.ne.s32.totalorder %s110, %s111
      %p123 = scmp.eq.s32.totalorder %s26, 1
      %p124 = por %p122, %p123
      %p126 = scmp.ne.s32.totalorder %s111, %s125
      %p127 = scmp.eq.s32.totalorder %s26, 0
      %p128 = por %p126, %p127
      %s130 = sadd.s32 %s129, 1
      %p133 = scmp.eq.s32.totalorder %s20, 1
      %p134 = scmp.ne.s32.totalorder %s129, %s131
      %p135 = scmp.eq.s32.totalorder %s20, 0
      %p136 = por %p134, %p135
      %p137 = scmp.ne.s32.totalorder %s129, %s131
      %p138 = scmp.eq.s32.totalorder %s25, 1
      %p139 = por %p137, %p138
      %p140 = scmp.ne.s32.totalorder %s131, %s132
      %p141 = scmp.eq.s32.totalorder %s25, 0
      %p142 = por %p140, %p141
      %p143 = scmp.ne.s32.totalorder %s131, %s132
      %p144 = scmp.eq.s32.totalorder %s26, 1
      %p145 = por %p143, %p144
      %p147 = scmp.ne.s32.totalorder %s132, %s146
      %p148 = scmp.eq.s32.totalorder %s26, 0
      %p149 = por %p147, %p148
      %s151 = sadd.s32 %s150, 1
      %p154 = scmp.eq.s32.totalorder %s20, 1
      %p155 = scmp.ne.s32.totalorder %s150, %s152
      %p156 = scmp.eq.s32.totalorder %s20, 0
      %p157 = por %p155, %p156
      %p158 = scmp.ne.s32.totalorder %s150, %s152
      %p159 = scmp.eq.s32.totalorder %s25, 1
      %p160 = por %p158, %p159
      %p161 = scmp.ne.s32.totalorder %s152, %s153
      %p162 = scmp.eq.s32.totalorder %s25, 0
      %p163 = por %p161, %p162
      %p164 = scmp.ne.s32.totalorder %s152, %s153
      %p165 = scmp.eq.s32.totalorder %s26, 1
      %p166 = por %p164, %p165
      %p168 = scmp.ne.s32.totalorder %s153, %s167
      %p169 = scmp.eq.s32.totalorder %s26, 0
      %p170 = por %p168, %p169
      %s172 = sadd.s32 %s171, 1
      %p175 = scmp.eq.s32.totalorder %s20, 1
      %p176 = scmp.ne.s32.totalorder %s171, %s173
      %p177 = scmp.eq.s32.totalorder %s20, 0
      %p178 = por %p176, %p177
      %p179 = scmp.ne.s32.totalorder %s171, %s173
      %p180 = scmp.eq.s32.totalorder %s25, 1
      %p181 = por %p179, %p180
      %p182 = scmp.ne.s32.totalorder %s173, %s174
      %p183 = scmp.eq.s32.totalorder %s25, 0
      %p184 = por %p182, %p183
      %p185 = scmp.ne.s32.totalorder %s173, %s174
      %p186 = scmp.eq.s32.totalorder %s26, 1
      %p187 = por %p185, %p186
      %p189 = scmp.ne.s32.totalorder %s174, %s188
      %p190 = scmp.eq.s32.totalorder %s26, 0
      %p191 = por %p189, %p190
      %s193 = sadd.s32 %s192, 1
      %p196 = scmp.eq.s32.totalorder %s20, 1
      %p197 = scmp.ne.s32.totalorder %s192, %s194
      %p198 = scmp.eq.s32.totalorder %s20, 0
      %p199 = por %p197, %p198
      %p200 = scmp.ne.s32.totalorder %s192, %s194
      %p201 = scmp.eq.s32.totalorder %s25, 1
      %p202 = por %p200, %p201
      %p203 = scmp.ne.s32.totalorder %s194, %s195
      %p204 = scmp.eq.s32.totalorder %s25, 0
      %p205 = por %p203, %p204
      %p206 = scmp.ne.s32.totalorder %s194, %s195
      %p207 = scmp.eq.s32.totalorder %s26, 1
      %p208 = por %p206, %p207
      %p210 = scmp.ne.s32.totalorder %s195, %s209
      %p211 = scmp.eq.s32.totalorder %s26, 0
      %p212 = por %p210, %p211
      %s214 = sadd.s32 %s213, 1
      %p217 = scmp.eq.s32.totalorder %s20, 1
      %p218 = scmp.ne.s32.totalorder %s213, %s215
      %p219 = scmp.eq.s32.totalorder %s20, 0
      %p220 = por %p218, %p219
      %p221 = scmp.ne.s32.totalorder %s213, %s215
      %p222 = scmp.eq.s32.totalorder %s25, 1
      %p223 = por %p221, %p222
      %p224 = scmp.ne.s32.totalorder %s215, %s216
      %p225 = scmp.eq.s32.totalorder %s25, 0
      %p226 = por %p224, %p225
      %p227 = scmp.ne.s32.totalorder %s215, %s216
      %p228 = scmp.eq.s32.totalorder %s26, 1
      %p229 = por %p227, %p228
      %p231 = scmp.ne.s32.totalorder %s216, %s230
      %p232 = scmp.eq.s32.totalorder %s26, 0
      %p233 = por %p231, %p232
      %s235 = sadd.s32 %s234, 1
      %p238 = scmp.eq.s32.totalorder %s20, 1
      %p239 = scmp.ne.s32.totalorder %s234, %s236
      %p240 = scmp.eq.s32.totalorder %s20, 0
      %p241 = por %p239, %p240
      %p242 = scmp.ne.s32.totalorder %s234, %s236
      %p243 = scmp.eq.s32.totalorder %s25, 1
      %p244 = por %p242, %p243
      %p245 = scmp.ne.s32.totalorder %s236, %s237
      %p246 = scmp.eq.s32.totalorder %s25, 0
      %p247 = por %p245, %p246
      %p248 = scmp.ne.s32.totalorder %s236, %s237
      %p249 = scmp.eq.s32.totalorder %s26, 1
      %p250 = por %p248, %p249
      %p252 = scmp.ne.s32.totalorder %s237, %s251
      %p253 = scmp.eq.s32.totalorder %s26, 0
      %p254 = por %p252, %p253
      %s256 = sadd.s32 %s255, 1
      %p259 = scmp.eq.s32.totalorder %s20, 1
      %p260 = scmp.ne.s32.totalorder %s255, %s257
      %p261 = scmp.eq.s32.totalorder %s20, 0
      %p262 = por %p260, %p261
      %p263 = scmp.ne.s32.totalorder %s255, %s257
      %p264 = scmp.eq.s32.totalorder %s25, 1
      %p265 = por %p263, %p264
      %p266 = scmp.ne.s32.totalorder %s257, %s258
      %p267 = scmp.eq.s32.totalorder %s25, 0
      %p268 = por %p266, %p267
      %p269 = scmp.ne.s32.totalorder %s257, %s258
      %p270 = scmp.eq.s32.totalorder %s26, 1
      %p271 = por %p269, %p270
      %p273 = scmp.ne.s32.totalorder %s258, %s272
      %p274 = scmp.eq.s32.totalorder %s26, 0
      %p275 = por %p273, %p274
      %s276 = ssub.s32 %s27, %s39
      %s277 = ssub.s32 %s28, %s35
      %s278 = sor.u32 %s276, %s277
      %p279 = scmp.eq.s32.totalorder %s278, 0
      %s281 = sadd.s32 %s280, 1
      %s282 = scalar_select %p279, %s280, %s281
      %p285 = pneg %p279
      %p286 = scmp.eq.s32.totalorder %s20, 1
      %p287 = por %p285, %p286
      %p288 = scmp.ne.s32.totalorder %s280, %s283
      %p289 = scmp.eq.s32.totalorder %s20, 0
      %p290 = por %p288, %p289
      %p291 = scmp.ne.s32.totalorder %s280, %s283
      %p292 = scmp.eq.s32.totalorder %s25, 1
      %p293 = por %p291, %p292
      %p294 = scmp.ne.s32.totalorder %s283, %s284
      %p295 = scmp.eq.s32.totalorder %s25, 0
      %p296 = por %p294, %p295
      %p297 = scmp.ne.s32.totalorder %s283, %s284
      %p298 = scmp.eq.s32.totalorder %s26, 1
      %p299 = por %p297, %p298
      %p301 = scmp.ne.s32.totalorder %s284, %s300
      %p302 = scmp.eq.s32.totalorder %s26, 0
      %p303 = por %p301, %p302
      %p304 = scmp.le.s32.totalorder 1, %s20
      %p305 = scmp.lt.s32.totalorder %s20, 3
      %p306 = pnand %p304, %p305
      %p307 = pneg %p306
      // Predicated region
      $region9: #{tpu_custom_call.1} parent=5 // pred_check
        _
      $region10: #{tpu_custom_call.1} parent=5 // pred_check_branch
        %309 = sbr.rel (%p306) target = $region12
      $region11: #{tpu_custom_call.1} parent=5 // pred_region
        %s310 = ssub.s32 %s20, 1
        // Predicated region
        $region13: #{tpu_custom_call.1} parent=11 // pred_check
          %p311 = pneg %p79
        $region14: #{tpu_custom_call.1} parent=11 // pred_check_branch
          %313 = sbr.rel (%p311) target = $region16
        $region15: #{tpu_custom_call.1} parent=11 // pred_region
          _
        $region16: #{tpu_custom_call.1} parent=11 // pred_fallthru
          _
        // Predicated region
        $region17: #{tpu_custom_call.1} parent=11 // pred_check
          %p314 = pneg %p100
        $region18: #{tpu_custom_call.1} parent=11 // pred_check_branch
          %316 = sbr.rel (%p314) target = $region20
        $region19: #{tpu_custom_call.1} parent=11 // pred_region
          _
        $region20: #{tpu_custom_call.1} parent=11 // pred_fallthru
          _
        // Predicated region
        $region21: #{tpu_custom_call.1} parent=11 // pred_check
          %p317 = pneg %p121
        $region22: #{tpu_custom_call.1} parent=11 // pred_check_branch
          %319 = sbr.rel (%p317) target = $region24
        $region23: #{tpu_custom_call.1} parent=11 // pred_region
          _
        $region24: #{tpu_custom_call.1} parent=11 // pred_fallthru
          _
        // Predicated region
        $region25: #{tpu_custom_call.1} parent=11 // pred_check
          %p320 = pneg %p142
        $region26: #{tpu_custom_call.1} parent=11 // pred_check_branch
          %322 = sbr.rel (%p320) target = $region28
        $region27: #{tpu_custom_call.1} parent=11 // pred_region
          _
        $region28: #{tpu_custom_call.1} parent=11 // pred_fallthru
          _
        // Predicated region
        $region29: #{tpu_custom_call.1} parent=11 // pred_check
          %p323 = pneg %p163
        $region30: #{tpu_custom_call.1} parent=11 // pred_check_branch
          %325 = sbr.rel (%p323) target = $region32
        $region31: #{tpu_custom_call.1} parent=11 // pred_region
          _
        $region32: #{tpu_custom_call.1} parent=11 // pred_fallthru
          _
        // Predicated region
        $region33: #{tpu_custom_call.1} parent=11 // pred_check
          %p326 = pneg %p184
        $region34: #{tpu_custom_call.1} parent=11 // pred_check_branch
          %328 = sbr.rel (%p326) target = $region36
        $region35: #{tpu_custom_call.1} parent=11 // pred_region
          _
        $region36: #{tpu_custom_call.1} parent=11 // pred_fallthru
          _
        // Predicated region
        $region37: #{tpu_custom_call.1} parent=11 // pred_check
          %p329 = pneg %p205
        $region38: #{tpu_custom_call.1} parent=11 // pred_check_branch
          %331 = sbr.rel (%p329) target = $region40
        $region39: #{tpu_custom_call.1} parent=11 // pred_region
          _
        $region40: #{tpu_custom_call.1} parent=11 // pred_fallthru
          _
        // Predicated region
        $region41: #{tpu_custom_call.1} parent=11 // pred_check
          %p332 = pneg %p226
        $region42: #{tpu_custom_call.1} parent=11 // pred_check_branch
          %334 = sbr.rel (%p332) target = $region44
        $region43: #{tpu_custom_call.1} parent=11 // pred_region
          _
        $region44: #{tpu_custom_call.1} parent=11 // pred_fallthru
          _
        // Predicated region
        $region45: #{tpu_custom_call.1} parent=11 // pred_check
          %p335 = pneg %p247
        $region46: #{tpu_custom_call.1} parent=11 // pred_check_branch
          %337 = sbr.rel (%p335) target = $region48
        $region47: #{tpu_custom_call.1} parent=11 // pred_region
          _
        $region48: #{tpu_custom_call.1} parent=11 // pred_fallthru
          _
        // Predicated region
        $region49: #{tpu_custom_call.1} parent=11 // pred_check
          %p338 = pneg %p268
        $region50: #{tpu_custom_call.1} parent=11 // pred_check_branch
          %340 = sbr.rel (%p338) target = $region52
        $region51: #{tpu_custom_call.1} parent=11 // pred_region
          _
        $region52: #{tpu_custom_call.1} parent=11 // pred_fallthru
          _
      $region12: #{tpu_custom_call.1} parent=5 // pred_fallthru
        _
      %p341 = scmp.lt.s32.totalorder %s20, 2
      // Predicated region
      $region53: #{tpu_custom_call.1} parent=5 // pred_check
        %p342 = pneg %p341
      $region54: #{tpu_custom_call.1} parent=5 // pred_check_branch
        %344 = sbr.rel (%p342) target = $region56
      $region55: #{tpu_custom_call.1} parent=5 // pred_region
        // Predicated region
        $region57: #{tpu_custom_call.1} parent=55 // pred_check
          %p345 = pneg %p52
        $region58: #{tpu_custom_call.1} parent=55 // pred_check_branch
          %347 = sbr.rel (%p345) target = $region60
        $region59: #{tpu_custom_call.1} parent=55 // pred_region
          %p348 = scmp.lt.s32.totalorder %s27, 1
          %s349 = scalar_select %p348, %s27, 1
          %s350 = smul.addr %s349, 60
          %s351 = smul.addr %s350, 8
          %s352 = scalar_lea.vmem %s0, %s351
        $region60: #{tpu_custom_call.1} parent=55 // pred_fallthru
          _
      $region56: #{tpu_custom_call.1} parent=5 // pred_fallthru
        _
      %p353 = scmp.le.s32.totalorder 1, %s20
      %p354 = scmp.lt.s32.totalorder %s20, 3
      %p355 = pnand %p353, %p354
      %p356 = pneg %p355
      // Predicated region
      $region61: #{tpu_custom_call.1} parent=5 // pred_check
        _
      $region62: #{tpu_custom_call.1} parent=5 // pred_check_branch
        %358 = sbr.rel (%p355) target = $region64
      $region63: #{tpu_custom_call.1} parent=5 // pred_region
        %s359 = ssub.s32 %s20, 1
        %p360 = scmp.lt.s32.totalorder %s29, 1
        %s361 = scalar_select %p360, %s29, 1
        %s362 = smul.addr %s361, 60
        %s363 = smul.addr %s362, 8
        %s364 = scalar_lea.vmem %s0, %s363
        %p365 = pneg %p58
        %p366 = pneg %p55
        %p367 = pneg %p79
        %p368 = pneg %p76
        %p369 = pneg %p100
        %p370 = pneg %p97
        %p371 = pneg %p121
        %p372 = pneg %p118
        %p373 = pneg %p142
        %p374 = pneg %p139
        %p375 = pneg %p163
        %p376 = pneg %p160
        %p377 = pneg %p184
        %p378 = pneg %p181
        %p379 = pneg %p205
        %p380 = pneg %p202
        %p381 = pneg %p226
        %p382 = pneg %p223
        %p383 = pneg %p247
        %p384 = pneg %p244
        %p385 = pneg %p268
        %p386 = pneg %p265
        %p387 = pneg %p296
        %p388 = pneg %p293
        %s389 = sand.u32 %s283, 1
        %s390 = scalar_lea.sflag [#allocation4], %s389
        %s391 = sand.u32 %s283, 1
        %s392 = smul.addr %s391, 256
        %s393 = scalar_lea.vmem [#allocation3], %s392
        %p394 = scmp.lt.s32.totalorder %s29, 1
        %s395 = scalar_select %p394, %s29, 1
        %s396 = smul.addr %s395, 60
        %s397 = smul.addr %s396, 8
        %s398 = scalar_lea.vmem %s0, %s397
        %s399 = smul.u32 16, %s30
        %s401 = smul.u32 %s30, 16
        %v402 = vld [vmem:[%s1] sm:$0xff]
        %v403 = vld [vmem:[%s1 + $0x8] sm:$0x1]
        %s404 = smul.u32 %s401, 24
        %s405 = scalar_lea.vmem %s398, %s404
        %v406 = vld [vmem:[%s405] sm:$0xff]
        %v407 = vld [vmem:[%s405 + $0x8] sm:$0xff]
        %v408 = vld [vmem:[%s405 + $0x18] sm:$0xff]
        %v409 = vld [vmem:[%s405 + $0x20] sm:$0xff]
        %v410 = vld [vmem:[%s405 + $0x30] sm:$0xff]
        %v411 = vld [vmem:[%s405 + $0x38] sm:$0xff]
        %v412 = vld [vmem:[%s405 + $0x48] sm:$0xff]
        %v413 = vld [vmem:[%s405 + $0x50] sm:$0xff]
        %v414 = vld [vmem:[%s405 + $0x60] sm:$0xff]
        %v415 = vld [vmem:[%s405 + $0x68] sm:$0xff]
        %v416 = vld [vmem:[%s405 + $0x78] sm:$0xff]
        %v417 = vld [vmem:[%s405 + $0x80] sm:$0xff]
        %v418 = vld [vmem:[%s405 + $0x90] sm:$0xff]
        %v419 = vld [vmem:[%s405 + $0x98] sm:$0xff]
        %v420 = vld [vmem:[%s405 + $0xa8] sm:$0xff]
        %v421 = vld [vmem:[%s405 + $0xb0] sm:$0xff]
        %v422 = vld [vmem:[%s405 + $0xc0] sm:$0xff]
        %v423 = vld [vmem:[%s405 + $0xc8] sm:$0xff]
        %v424 = vld [vmem:[%s405 + $0xd8] sm:$0xff]
        %v425 = vld [vmem:[%s405 + $0xe0] sm:$0xff]
        %v426 = vld [vmem:[%s405 + $0xf0] sm:$0xff]
        %v427 = vld [vmem:[%s405 + $0xf8] sm:$0xff]
        %v428 = vld [vmem:[%s405 + $0x108] sm:$0xff]
        %v429 = vld [vmem:[%s405 + $0x110] sm:$0xff]
        %v430 = vld [vmem:[%s405 + $0x120] sm:$0xff]
        %v431 = vld [vmem:[%s405 + $0x128] sm:$0xff]
        %v432 = vld [vmem:[%s405 + $0x138] sm:$0xff]
        %v433 = vld [vmem:[%s405 + $0x140] sm:$0xff]
        %v434 = vld [vmem:[%s405 + $0x150] sm:$0xff]
        %v435 = vld [vmem:[%s405 + $0x158] sm:$0xff]
        %v436 = vld [vmem:[%s405 + $0x168] sm:$0xff]
        %v437 = vld [vmem:[%s405 + $0x170] sm:$0xff]
        %v438 = vld [vmem:[%s405 + $0x180] sm:$0xff]
        %v439 = vld [vmem:[%s405 + $0x188] sm:$0xff]
        %v440 = vld [vmem:[%s405 + $0x198] sm:$0xff]
        %v441 = vld [vmem:[%s405 + $0x1a0] sm:$0xff]
        %v442 = vlaneseq
        %v443 = vshrl.u32 %v442, 7
        %v444 = vsub.s32 0, %v443
        %v445 = vrot.slane %v402, %v444
        %v446 = vmul.f32 %v406, %v445
        %v447 = vmul.f32 %v407, %v445
        %v448 = vmul.f32 %v408, %v445
        %v449 = vmul.f32 %v409, %v445
        %v450 = vmul.f32 %v410, %v445
        %v451 = vmul.f32 %v411, %v445
        %v452 = vmul.f32 %v412, %v445
        %v453 = vmul.f32 %v413, %v445
        %v454 = vmul.f32 %v414, %v445
        %v455 = vmul.f32 %v415, %v445
        %v456 = vmul.f32 %v416, %v445
        %v457 = vmul.f32 %v417, %v445
        %v458 = vmul.f32 %v418, %v445
        %v459 = vmul.f32 %v419, %v445
        %v460 = vmul.f32 %v420, %v445
        %v461 = vmul.f32 %v421, %v445
        %v462 = vmul.f32 %v422, %v445
        %v463 = vmul.f32 %v423, %v445
        %v464 = vmul.f32 %v424, %v445
        %v465 = vmul.f32 %v425, %v445
        %v466 = vmul.f32 %v426, %v445
        %v467 = vmul.f32 %v427, %v445
        %v468 = vmul.f32 %v428, %v445
        %v469 = vmul.f32 %v429, %v445
        %v470 = vmul.f32 %v430, %v445
        %v471 = vmul.f32 %v431, %v445
        %v472 = vmul.f32 %v432, %v445
        %v473 = vmul.f32 %v433, %v445
        %v474 = vmul.f32 %v434, %v445
        %v475 = vmul.f32 %v435, %v445
        %v476 = vmul.f32 %v436, %v445
        %v477 = vmul.f32 %v437, %v445
        %v478 = vmul.f32 %v438, %v445
        %v479 = vmul.f32 %v439, %v445
        %v480 = vmul.f32 %v440, %v445
        %v481 = vmul.f32 %v441, %v445
        %v482 = vld [vmem:[%s2] sm:$0x1]
        %v484 = vlaneseq
        %v485 = vshrl.u32 %v484, 7
        %v486 = vsub.s32 0, %v485
        %v487 = vrot.slane %v482, %v486
        %v489 = vadd.f32 %v446, %v487
        %v490 = vadd.f32 %v447, %v487
        %v491 = vadd.f32 %v448, %v487
        %v492 = vadd.f32 %v449, %v487
        %v493 = vadd.f32 %v450, %v487
        %v494 = vadd.f32 %v451, %v487
        %v495 = vadd.f32 %v452, %v487
        %v496 = vadd.f32 %v453, %v487
        %v497 = vadd.f32 %v454, %v487
        %v498 = vadd.f32 %v455, %v487
        %v499 = vadd.f32 %v456, %v487
        %v500 = vadd.f32 %v457, %v487
        %v501 = vadd.f32 %v458, %v487
        %v502 = vadd.f32 %v459, %v487
        %v503 = vadd.f32 %v460, %v487
        %v504 = vadd.f32 %v461, %v487
        %v505 = vadd.f32 %v462, %v487
        %v506 = vadd.f32 %v463, %v487
        %v507 = vadd.f32 %v464, %v487
        %v508 = vadd.f32 %v465, %v487
        %v509 = vadd.f32 %v466, %v487
        %v510 = vadd.f32 %v467, %v487
        %v511 = vadd.f32 %v468, %v487
        %v512 = vadd.f32 %v469, %v487
        %v513 = vadd.f32 %v470, %v487
        %v514 = vadd.f32 %v471, %v487
        %v515 = vadd.f32 %v472, %v487
        %v516 = vadd.f32 %v473, %v487
        %v517 = vadd.f32 %v474, %v487
        %v518 = vadd.f32 %v475, %v487
        %v519 = vadd.f32 %v476, %v487
        %v520 = vadd.f32 %v477, %v487
        %v521 = vadd.f32 %v478, %v487
        %v522 = vadd.f32 %v479, %v487
        %v523 = vadd.f32 %v480, %v487
        %v524 = vadd.f32 %v481, %v487
        %v525 = vld [vmem:[%s405 + $0x1] sm:$0xff]
        %v526 = vld [vmem:[%s405 + $0x9] sm:$0xff]
        %v527 = vld [vmem:[%s405 + $0x19] sm:$0xff]
        %v528 = vld [vmem:[%s405 + $0x21] sm:$0xff]
        %v529 = vld [vmem:[%s405 + $0x31] sm:$0xff]
        %v530 = vld [vmem:[%s405 + $0x39] sm:$0xff]
        %v531 = vld [vmem:[%s405 + $0x49] sm:$0xff]
        %v532 = vld [vmem:[%s405 + $0x51] sm:$0xff]
        %v533 = vld [vmem:[%s405 + $0x61] sm:$0xff]
        %v534 = vld [vmem:[%s405 + $0x69] sm:$0xff]
        %v535 = vld [vmem:[%s405 + $0x79] sm:$0xff]
        %v536 = vld [vmem:[%s405 + $0x81] sm:$0xff]
        %v537 = vld [vmem:[%s405 + $0x91] sm:$0xff]
        %v538 = vld [vmem:[%s405 + $0x99] sm:$0xff]
        %v539 = vld [vmem:[%s405 + $0xa9] sm:$0xff]
        %v540 = vld [vmem:[%s405 + $0xb1] sm:$0xff]
        %v541 = vld [vmem:[%s405 + $0xc1] sm:$0xff]
        %v542 = vld [vmem:[%s405 + $0xc9] sm:$0xff]
        %v543 = vld [vmem:[%s405 + $0xd9] sm:$0xff]
        %v544 = vld [vmem:[%s405 + $0xe1] sm:$0xff]
        %v545 = vld [vmem:[%s405 + $0xf1] sm:$0xff]
        %v546 = vld [vmem:[%s405 + $0xf9] sm:$0xff]
        %v547 = vld [vmem:[%s405 + $0x109] sm:$0xff]
        %v548 = vld [vmem:[%s405 + $0x111] sm:$0xff]
        %v549 = vld [vmem:[%s405 + $0x121] sm:$0xff]
        %v550 = vld [vmem:[%s405 + $0x129] sm:$0xff]
        %v551 = vld [vmem:[%s405 + $0x139] sm:$0xff]
        %v552 = vld [vmem:[%s405 + $0x141] sm:$0xff]
        %v553 = vld [vmem:[%s405 + $0x151] sm:$0xff]
        %v554 = vld [vmem:[%s405 + $0x159] sm:$0xff]
        %v555 = vld [vmem:[%s405 + $0x169] sm:$0xff]
        %v556 = vld [vmem:[%s405 + $0x171] sm:$0xff]
        %v557 = vld [vmem:[%s405 + $0x181] sm:$0xff]
        %v558 = vld [vmem:[%s405 + $0x189] sm:$0xff]
        %v559 = vld [vmem:[%s405 + $0x199] sm:$0xff]
        %v560 = vld [vmem:[%s405 + $0x1a1] sm:$0xff]
        %v561 = vlaneseq
        %v562 = vshrl.u32 %v561, 7
        %v563 = vsub.s32 1, %v562
        %v564 = vrot.slane %v402, %v563
        %v565 = vmul.f32 %v525, %v564
        %v566 = vmul.f32 %v526, %v564
        %v567 = vmul.f32 %v527, %v564
        %v568 = vmul.f32 %v528, %v564
        %v569 = vmul.f32 %v529, %v564
        %v570 = vmul.f32 %v530, %v564
        %v571 = vmul.f32 %v531, %v564
        %v572 = vmul.f32 %v532, %v564
        %v573 = vmul.f32 %v533, %v564
        %v574 = vmul.f32 %v534, %v564
        %v575 = vmul.f32 %v535, %v564
        %v576 = vmul.f32 %v536, %v564
        %v577 = vmul.f32 %v537, %v564
        %v578 = vmul.f32 %v538, %v564
        %v579 = vmul.f32 %v539, %v564
        %v580 = vmul.f32 %v540, %v564
        %v581 = vmul.f32 %v541, %v564
        %v582 = vmul.f32 %v542, %v564
        %v583 = vmul.f32 %v543, %v564
        %v584 = vmul.f32 %v544, %v564
        %v585 = vmul.f32 %v545, %v564
        %v586 = vmul.f32 %v546, %v564
        %v587 = vmul.f32 %v547, %v564
        %v588 = vmul.f32 %v548, %v564
        %v589 = vmul.f32 %v549, %v564
        %v590 = vmul.f32 %v550, %v564
        %v591 = vmul.f32 %v551, %v564
        %v592 = vmul.f32 %v552, %v564
        %v593 = vmul.f32 %v553, %v564
        %v594 = vmul.f32 %v554, %v564
        %v595 = vmul.f32 %v555, %v564
        %v596 = vmul.f32 %v556, %v564
        %v597 = vmul.f32 %v557, %v564
        %v598 = vmul.f32 %v558, %v564
        %v599 = vmul.f32 %v559, %v564
        %v600 = vmul.f32 %v560, %v564
        %v601 = vadd.f32 %v489, %v565
        %v602 = vadd.f32 %v490, %v566
        %v603 = vadd.f32 %v491, %v567
        %v604 = vadd.f32 %v492, %v568
        %v605 = vadd.f32 %v493, %v569
        %v606 = vadd.f32 %v494, %v570
        %v607 = vadd.f32 %v495, %v571
        %v608 = vadd.f32 %v496, %v572
        %v609 = vadd.f32 %v497, %v573
        %v610 = vadd.f32 %v498, %v574
        %v611 = vadd.f32 %v499, %v575
        %v612 = vadd.f32 %v500, %v576
        %v613 = vadd.f32 %v501, %v577
        %v614 = vadd.f32 %v502, %v578
        %v615 = vadd.f32 %v503, %v579
        %v616 = vadd.f32 %v504, %v580
        %v617 = vadd.f32 %v505, %v581
        %v618 = vadd.f32 %v506, %v582
        %v619 = vadd.f32 %v507, %v583
        %v620 = vadd.f32 %v508, %v584
        %v621 = vadd.f32 %v509, %v585
        %v622 = vadd.f32 %v510, %v586
        %v623 = vadd.f32 %v511, %v587
        %v624 = vadd.f32 %v512, %v588
        %v625 = vadd.f32 %v513, %v589
        %v626 = vadd.f32 %v514, %v590
        %v627 = vadd.f32 %v515, %v591
        %v628 = vadd.f32 %v516, %v592
        %v629 = vadd.f32 %v517, %v593
        %v630 = vadd.f32 %v518, %v594
        %v631 = vadd.f32 %v519, %v595
        %v632 = vadd.f32 %v520, %v596
        %v633 = vadd.f32 %v521, %v597
        %v634 = vadd.f32 %v522, %v598
        %v635 = vadd.f32 %v523, %v599
        %v636 = vadd.f32 %v524, %v600
        %v637 = vld [vmem:[%s405 + $0x2] sm:$0xff]
        %v638 = vld [vmem:[%s405 + $0xa] sm:$0xff]
        %v639 = vld [vmem:[%s405 + $0x1a] sm:$0xff]
        %v640 = vld [vmem:[%s405 + $0x22] sm:$0xff]
        %v641 = vld [vmem:[%s405 + $0x32] sm:$0xff]
        %v642 = vld [vmem:[%s405 + $0x3a] sm:$0xff]
        %v643 = vld [vmem:[%s405 + $0x4a] sm:$0xff]
        %v644 = vld [vmem:[%s405 + $0x52] sm:$0xff]
        %v645 = vld [vmem:[%s405 + $0x62] sm:$0xff]
        %v646 = vld [vmem:[%s405 + $0x6a] sm:$0xff]
        %v647 = vld [vmem:[%s405 + $0x7a] sm:$0xff]
        %v648 = vld [vmem:[%s405 + $0x82] sm:$0xff]
        %v649 = vld [vmem:[%s405 + $0x92] sm:$0xff]
        %v650 = vld [vmem:[%s405 + $0x9a] sm:$0xff]
        %v651 = vld [vmem:[%s405 + $0xaa] sm:$0xff]
        %v652 = vld [vmem:[%s405 + $0xb2] sm:$0xff]
        %v653 = vld [vmem:[%s405 + $0xc2] sm:$0xff]
        %v654 = vld [vmem:[%s405 + $0xca] sm:$0xff]
        %v655 = vld [vmem:[%s405 + $0xda] sm:$0xff]
        %v656 = vld [vmem:[%s405 + $0xe2] sm:$0xff]
        %v657 = vld [vmem:[%s405 + $0xf2] sm:$0xff]
        %v658 = vld [vmem:[%s405 + $0xfa] sm:$0xff]
        %v659 = vld [vmem:[%s405 + $0x10a] sm:$0xff]
        %v660 = vld [vmem:[%s405 + $0x112] sm:$0xff]
        %v661 = vld [vmem:[%s405 + $0x122] sm:$0xff]
        %v662 = vld [vmem:[%s405 + $0x12a] sm:$0xff]
        %v663 = vld [vmem:[%s405 + $0x13a] sm:$0xff]
        %v664 = vld [vmem:[%s405 + $0x142] sm:$0xff]
        %v665 = vld [vmem:[%s405 + $0x152] sm:$0xff]
        %v666 = vld [vmem:[%s405 + $0x15a] sm:$0xff]
        %v667 = vld [vmem:[%s405 + $0x16a] sm:$0xff]
        %v668 = vld [vmem:[%s405 + $0x172] sm:$0xff]
        %v669 = vld [vmem:[%s405 + $0x182] sm:$0xff]
        %v670 = vld [vmem:[%s405 + $0x18a] sm:$0xff]
        %v671 = vld [vmem:[%s405 + $0x19a] sm:$0xff]
        %v672 = vld [vmem:[%s405 + $0x1a2] sm:$0xff]
        %v673 = vlaneseq
        %v674 = vshrl.u32 %v673, 7
        %v675 = vsub.s32 2, %v674
        %v676 = vrot.slane %v402, %v675
        %v677 = vmul.f32 %v637, %v676
        %v678 = vmul.f32 %v638, %v676
        %v679 = vmul.f32 %v639, %v676
        %v680 = vmul.f32 %v640, %v676
        %v681 = vmul.f32 %v641, %v676
        %v682 = vmul.f32 %v642, %v676
        %v683 = vmul.f32 %v643, %v676
        %v684 = vmul.f32 %v644, %v676
        %v685 = vmul.f32 %v645, %v676
        %v686 = vmul.f32 %v646, %v676
        %v687 = vmul.f32 %v647, %v676
        %v688 = vmul.f32 %v648, %v676
        %v689 = vmul.f32 %v649, %v676
        %v690 = vmul.f32 %v650, %v676
        %v691 = vmul.f32 %v651, %v676
        %v692 = vmul.f32 %v652, %v676
        %v693 = vmul.f32 %v653, %v676
        %v694 = vmul.f32 %v654, %v676
        %v695 = vmul.f32 %v655, %v676
        %v696 = vmul.f32 %v656, %v676
        %v697 = vmul.f32 %v657, %v676
        %v698 = vmul.f32 %v658, %v676
        %v699 = vmul.f32 %v659, %v676
        %v700 = vmul.f32 %v660, %v676
        %v701 = vmul.f32 %v661, %v676
        %v702 = vmul.f32 %v662, %v676
        %v703 = vmul.f32 %v663, %v676
        %v704 = vmul.f32 %v664, %v676
        %v705 = vmul.f32 %v665, %v676
        %v706 = vmul.f32 %v666, %v676
        %v707 = vmul.f32 %v667, %v676
        %v708 = vmul.f32 %v668, %v676
        %v709 = vmul.f32 %v669, %v676
        %v710 = vmul.f32 %v670, %v676
        %v711 = vmul.f32 %v671, %v676
        %v712 = vmul.f32 %v672, %v676
        %v713 = vadd.f32 %v601, %v677
        %v714 = vadd.f32 %v602, %v678
        %v715 = vadd.f32 %v603, %v679
        %v716 = vadd.f32 %v604, %v680
        %v717 = vadd.f32 %v605, %v681
        %v718 = vadd.f32 %v606, %v682
        %v719 = vadd.f32 %v607, %v683
        %v720 = vadd.f32 %v608, %v684
        %v721 = vadd.f32 %v609, %v685
        %v722 = vadd.f32 %v610, %v686
        %v723 = vadd.f32 %v611, %v687
        %v724 = vadd.f32 %v612, %v688
        %v725 = vadd.f32 %v613, %v689
        %v726 = vadd.f32 %v614, %v690
        %v727 = vadd.f32 %v615, %v691
        %v728 = vadd.f32 %v616, %v692
        %v729 = vadd.f32 %v617, %v693
        %v730 = vadd.f32 %v618, %v694
        %v731 = vadd.f32 %v619, %v695
        %v732 = vadd.f32 %v620, %v696
        %v733 = vadd.f32 %v621, %v697
        %v734 = vadd.f32 %v622, %v698
        %v735 = vadd.f32 %v623, %v699
        %v736 = vadd.f32 %v624, %v700
        %v737 = vadd.f32 %v625, %v701
        %v738 = vadd.f32 %v626, %v702
        %v739 = vadd.f32 %v627, %v703
        %v740 = vadd.f32 %v628, %v704
        %v741 = vadd.f32 %v629, %v705
        %v742 = vadd.f32 %v630, %v706
        %v743 = vadd.f32 %v631, %v707
        %v744 = vadd.f32 %v632, %v708
        %v745 = vadd.f32 %v633, %v709
        %v746 = vadd.f32 %v634, %v710
        %v747 = vadd.f32 %v635, %v711
        %v748 = vadd.f32 %v636, %v712
        %s749 = sadd.s32 %s401, 1
        %s750 = smul.u32 %s749, 24
        %s751 = scalar_lea.vmem %s398, %s750
        %v752 = vld [vmem:[%s751] sm:$0xff]
        %v753 = vld [vmem:[%s751 + $0x8] sm:$0xff]
        %v754 = vld [vmem:[%s751 + $0x18] sm:$0xff]
        %v755 = vld [vmem:[%s751 + $0x20] sm:$0xff]
        %v756 = vld [vmem:[%s751 + $0x30] sm:$0xff]
        %v757 = vld [vmem:[%s751 + $0x38] sm:$0xff]
        %v758 = vld [vmem:[%s751 + $0x48] sm:$0xff]
        %v759 = vld [vmem:[%s751 + $0x50] sm:$0xff]
        %v760 = vld [vmem:[%s751 + $0x60] sm:$0xff]
        %v761 = vld [vmem:[%s751 + $0x68] sm:$0xff]
        %v762 = vld [vmem:[%s751 + $0x78] sm:$0xff]
        %v763 = vld [vmem:[%s751 + $0x80] sm:$0xff]
        %v764 = vld [vmem:[%s751 + $0x90] sm:$0xff]
        %v765 = vld [vmem:[%s751 + $0x98] sm:$0xff]
        %v766 = vld [vmem:[%s751 + $0xa8] sm:$0xff]
        %v767 = vld [vmem:[%s751 + $0xb0] sm:$0xff]
        %v768 = vld [vmem:[%s751 + $0xc0] sm:$0xff]
        %v769 = vld [vmem:[%s751 + $0xc8] sm:$0xff]
        %v770 = vld [vmem:[%s751 + $0xd8] sm:$0xff]
        %v771 = vld [vmem:[%s751 + $0xe0] sm:$0xff]
        %v772 = vld [vmem:[%s751 + $0xf0] sm:$0xff]
        %v773 = vld [vmem:[%s751 + $0xf8] sm:$0xff]
        %v774 = vld [vmem:[%s751 + $0x108] sm:$0xff]
        %v775 = vld [vmem:[%s751 + $0x110] sm:$0xff]
        %v776 = vld [vmem:[%s751 + $0x120] sm:$0xff]
        %v777 = vld [vmem:[%s751 + $0x128] sm:$0xff]
        %v778 = vld [vmem:[%s751 + $0x138] sm:$0xff]
        %v779 = vld [vmem:[%s751 + $0x140] sm:$0xff]
        %v780 = vld [vmem:[%s751 + $0x150] sm:$0xff]
        %v781 = vld [vmem:[%s751 + $0x158] sm:$0xff]
        %v782 = vld [vmem:[%s751 + $0x168] sm:$0xff]
        %v783 = vld [vmem:[%s751 + $0x170] sm:$0xff]
        %v784 = vld [vmem:[%s751 + $0x180] sm:$0xff]
        %v785 = vld [vmem:[%s751 + $0x188] sm:$0xff]
        %v786 = vld [vmem:[%s751 + $0x198] sm:$0xff]
        %v787 = vld [vmem:[%s751 + $0x1a0] sm:$0xff]
        %v788 = vlaneseq
        %v789 = vshrl.u32 %v788, 7
        %v790 = vsub.s32 3, %v789
        %v791 = vrot.slane %v402, %v790
        %v792 = vmul.f32 %v752, %v791
        %v793 = vmul.f32 %v753, %v791
        %v794 = vmul.f32 %v754, %v791
        %v795 = vmul.f32 %v755, %v791
        %v796 = vmul.f32 %v756, %v791
        %v797 = vmul.f32 %v757, %v791
        %v798 = vmul.f32 %v758, %v791
        %v799 = vmul.f32 %v759, %v791
        %v800 = vmul.f32 %v760, %v791
        %v801 = vmul.f32 %v761, %v791
        %v802 = vmul.f32 %v762, %v791
        %v803 = vmul.f32 %v763, %v791
        %v804 = vmul.f32 %v764, %v791
        %v805 = vmul.f32 %v765, %v791
        %v806 = vmul.f32 %v766, %v791
        %v807 = vmul.f32 %v767, %v791
        %v808 = vmul.f32 %v768, %v791
        %v809 = vmul.f32 %v769, %v791
        %v810 = vmul.f32 %v770, %v791
        %v811 = vmul.f32 %v771, %v791
        %v812 = vmul.f32 %v772, %v791
        %v813 = vmul.f32 %v773, %v791
        %v814 = vmul.f32 %v774, %v791
        %v815 = vmul.f32 %v775, %v791
        %v816 = vmul.f32 %v776, %v791
        %v817 = vmul.f32 %v777, %v791
        %v818 = vmul.f32 %v778, %v791
        %v819 = vmul.f32 %v779, %v791
        %v820 = vmul.f32 %v780, %v791
        %v821 = vmul.f32 %v781, %v791
        %v822 = vmul.f32 %v782, %v791
        %v823 = vmul.f32 %v783, %v791
        %v824 = vmul.f32 %v784, %v791
        %v825 = vmul.f32 %v785, %v791
        %v826 = vmul.f32 %v786, %v791
        %v827 = vmul.f32 %v787, %v791
        %v828 = vadd.f32 %v713, %v792
        %v829 = vadd.f32 %v714, %v793
        %v830 = vadd.f32 %v715, %v794
        %v831 = vadd.f32 %v716, %v795
        %v832 = vadd.f32 %v717, %v796
        %v833 = vadd.f32 %v718, %v797
        %v834 = vadd.f32 %v719, %v798
        %v835 = vadd.f32 %v720, %v799
        %v836 = vadd.f32 %v721, %v800
        %v837 = vadd.f32 %v722, %v801
        %v838 = vadd.f32 %v723, %v802
        %v839 = vadd.f32 %v724, %v803
        %v840 = vadd.f32 %v725, %v804
        %v841 = vadd.f32 %v726, %v805
        %v842 = vadd.f32 %v727, %v806
        %v843 = vadd.f32 %v728, %v807
        %v844 = vadd.f32 %v729, %v808
        %v845 = vadd.f32 %v730, %v809
        %v846 = vadd.f32 %v731, %v810
        %v847 = vadd.f32 %v732, %v811
        %v848 = vadd.f32 %v733, %v812
        %v849 = vadd.f32 %v734, %v813
        %v850 = vadd.f32 %v735, %v814
        %v851 = vadd.f32 %v736, %v815
        %v852 = vadd.f32 %v737, %v816
        %v853 = vadd.f32 %v738, %v817
        %v854 = vadd.f32 %v739, %v818
        %v855 = vadd.f32 %v740, %v819
        %v856 = vadd.f32 %v741, %v820
        %v857 = vadd.f32 %v742, %v821
        %v858 = vadd.f32 %v743, %v822
        %v859 = vadd.f32 %v744, %v823
        %v860 = vadd.f32 %v745, %v824
        %v861 = vadd.f32 %v746, %v825
        %v862 = vadd.f32 %v747, %v826
        %v863 = vadd.f32 %v748, %v827
        %v864 = vld [vmem:[%s751 + $0x1] sm:$0xff]
        %v865 = vld [vmem:[%s751 + $0x9] sm:$0xff]
        %v866 = vld [vmem:[%s751 + $0x19] sm:$0xff]
        %v867 = vld [vmem:[%s751 + $0x21] sm:$0xff]
        %v868 = vld [vmem:[%s751 + $0x31] sm:$0xff]
        %v869 = vld [vmem:[%s751 + $0x39] sm:$0xff]
        %v870 = vld [vmem:[%s751 + $0x49] sm:$0xff]
        %v871 = vld [vmem:[%s751 + $0x51] sm:$0xff]
        %v872 = vld [vmem:[%s751 + $0x61] sm:$0xff]
        %v873 = vld [vmem:[%s751 + $0x69] sm:$0xff]
        %v874 = vld [vmem:[%s751 + $0x79] sm:$0xff]
        %v875 = vld [vmem:[%s751 + $0x81] sm:$0xff]
        %v876 = vld [vmem:[%s751 + $0x91] sm:$0xff]
        %v877 = vld [vmem:[%s751 + $0x99] sm:$0xff]
        %v878 = vld [vmem:[%s751 + $0xa9] sm:$0xff]
        %v879 = vld [vmem:[%s751 + $0xb1] sm:$0xff]
        %v880 = vld [vmem:[%s751 + $0xc1] sm:$0xff]
        %v881 = vld [vmem:[%s751 + $0xc9] sm:$0xff]
        %v882 = vld [vmem:[%s751 + $0xd9] sm:$0xff]
        %v883 = vld [vmem:[%s751 + $0xe1] sm:$0xff]
        %v884 = vld [vmem:[%s751 + $0xf1] sm:$0xff]
        %v885 = vld [vmem:[%s751 + $0xf9] sm:$0xff]
        %v886 = vld [vmem:[%s751 + $0x109] sm:$0xff]
        %v887 = vld [vmem:[%s751 + $0x111] sm:$0xff]
        %v888 = vld [vmem:[%s751 + $0x121] sm:$0xff]
        %v889 = vld [vmem:[%s751 + $0x129] sm:$0xff]
        %v890 = vld [vmem:[%s751 + $0x139] sm:$0xff]
        %v891 = vld [vmem:[%s751 + $0x141] sm:$0xff]
        %v892 = vld [vmem:[%s751 + $0x151] sm:$0xff]
        %v893 = vld [vmem:[%s751 + $0x159] sm:$0xff]
        %v894 = vld [vmem:[%s751 + $0x169] sm:$0xff]
        %v895 = vld [vmem:[%s751 + $0x171] sm:$0xff]
        %v896 = vld [vmem:[%s751 + $0x181] sm:$0xff]
        %v897 = vld [vmem:[%s751 + $0x189] sm:$0xff]
        %v898 = vld [vmem:[%s751 + $0x199] sm:$0xff]
        %v899 = vld [vmem:[%s751 + $0x1a1] sm:$0xff]
        %v900 = vlaneseq
        %v901 = vshrl.u32 %v900, 7
        %v902 = vsub.s32 4, %v901
        %v903 = vrot.slane %v402, %v902
        %v904 = vmul.f32 %v864, %v903
        %v905 = vmul.f32 %v865, %v903
        %v906 = vmul.f32 %v866, %v903
        %v907 = vmul.f32 %v867, %v903
        %v908 = vmul.f32 %v868, %v903
        %v909 = vmul.f32 %v869, %v903
        %v910 = vmul.f32 %v870, %v903
        %v911 = vmul.f32 %v871, %v903
        %v912 = vmul.f32 %v872, %v903
        %v913 = vmul.f32 %v873, %v903
        %v914 = vmul.f32 %v874, %v903
        %v915 = vmul.f32 %v875, %v903
        %v916 = vmul.f32 %v876, %v903
        %v917 = vmul.f32 %v877, %v903
        %v918 = vmul.f32 %v878, %v903
        %v919 = vmul.f32 %v879, %v903
        %v920 = vmul.f32 %v880, %v903
        %v921 = vmul.f32 %v881, %v903
        %v922 = vmul.f32 %v882, %v903
        %v923 = vmul.f32 %v883, %v903
        %v924 = vmul.f32 %v884, %v903
        %v925 = vmul.f32 %v885, %v903
        %v926 = vmul.f32 %v886, %v903
        %v927 = vmul.f32 %v887, %v903
        %v928 = vmul.f32 %v888, %v903
        %v929 = vmul.f32 %v889, %v903
        %v930 = vmul.f32 %v890, %v903
        %v931 = vmul.f32 %v891, %v903
        %v932 = vmul.f32 %v892, %v903
        %v933 = vmul.f32 %v893, %v903
        %v934 = vmul.f32 %v894, %v903
        %v935 = vmul.f32 %v895, %v903
        %v936 = vmul.f32 %v896, %v903
        %v937 = vmul.f32 %v897, %v903
        %v938 = vmul.f32 %v898, %v903
        %v939 = vmul.f32 %v899, %v903
        %v940 = vadd.f32 %v828, %v904
        %v941 = vadd.f32 %v829, %v905
        %v942 = vadd.f32 %v830, %v906
        %v943 = vadd.f32 %v831, %v907
        %v944 = vadd.f32 %v832, %v908
        %v945 = vadd.f32 %v833, %v909
        %v946 = vadd.f32 %v834, %v910
        %v947 = vadd.f32 %v835, %v911
        %v948 = vadd.f32 %v836, %v912
        %v949 = vadd.f32 %v837, %v913
        %v950 = vadd.f32 %v838, %v914
        %v951 = vadd.f32 %v839, %v915
        %v952 = vadd.f32 %v840, %v916
        %v953 = vadd.f32 %v841, %v917
        %v954 = vadd.f32 %v842, %v918
        %v955 = vadd.f32 %v843, %v919
        %v956 = vadd.f32 %v844, %v920
        %v957 = vadd.f32 %v845, %v921
        %v958 = vadd.f32 %v846, %v922
        %v959 = vadd.f32 %v847, %v923
        %v960 = vadd.f32 %v848, %v924
        %v961 = vadd.f32 %v849, %v925
        %v962 = vadd.f32 %v850, %v926
        %v963 = vadd.f32 %v851, %v927
        %v964 = vadd.f32 %v852, %v928
        %v965 = vadd.f32 %v853, %v929
        %v966 = vadd.f32 %v854, %v930
        %v967 = vadd.f32 %v855, %v931
        %v968 = vadd.f32 %v856, %v932
        %v969 = vadd.f32 %v857, %v933
        %v970 = vadd.f32 %v858, %v934
        %v971 = vadd.f32 %v859, %v935
        %v972 = vadd.f32 %v860, %v936
        %v973 = vadd.f32 %v861, %v937
        %v974 = vadd.f32 %v862, %v938
        %v975 = vadd.f32 %v863, %v939
        %v976 = vld [vmem:[%s751 + $0x2] sm:$0xff]
        %v977 = vld [vmem:[%s751 + $0xa] sm:$0xff]
        %v978 = vld [vmem:[%s751 + $0x1a] sm:$0xff]
        %v979 = vld [vmem:[%s751 + $0x22] sm:$0xff]
        %v980 = vld [vmem:[%s751 + $0x32] sm:$0xff]
        %v981 = vld [vmem:[%s751 + $0x3a] sm:$0xff]
        %v982 = vld [vmem:[%s751 + $0x4a] sm:$0xff]
        %v983 = vld [vmem:[%s751 + $0x52] sm:$0xff]
        %v984 = vld [vmem:[%s751 + $0x62] sm:$0xff]
        %v985 = vld [vmem:[%s751 + $0x6a] sm:$0xff]
        %v986 = vld [vmem:[%s751 + $0x7a] sm:$0xff]
        %v987 = vld [vmem:[%s751 + $0x82] sm:$0xff]
        %v988 = vld [vmem:[%s751 + $0x92] sm:$0xff]
        %v989 = vld [vmem:[%s751 + $0x9a] sm:$0xff]
        %v990 = vld [vmem:[%s751 + $0xaa] sm:$0xff]
        %v991 = vld [vmem:[%s751 + $0xb2] sm:$0xff]
        %v992 = vld [vmem:[%s751 + $0xc2] sm:$0xff]
        %v993 = vld [vmem:[%s751 + $0xca] sm:$0xff]
        %v994 = vld [vmem:[%s751 + $0xda] sm:$0xff]
        %v995 = vld [vmem:[%s751 + $0xe2] sm:$0xff]
        %v996 = vld [vmem:[%s751 + $0xf2] sm:$0xff]
        %v997 = vld [vmem:[%s751 + $0xfa] sm:$0xff]
        %v998 = vld [vmem:[%s751 + $0x10a] sm:$0xff]
        %v999 = vld [vmem:[%s751 + $0x112] sm:$0xff]
        %v1000 = vld [vmem:[%s751 + $0x122] sm:$0xff]
        %v1001 = vld [vmem:[%s751 + $0x12a] sm:$0xff]
        %v1002 = vld [vmem:[%s751 + $0x13a] sm:$0xff]
        %v1003 = vld [vmem:[%s751 + $0x142] sm:$0xff]
        %v1004 = vld [vmem:[%s751 + $0x152] sm:$0xff]
        %v1005 = vld [vmem:[%s751 + $0x15a] sm:$0xff]
        %v1006 = vld [vmem:[%s751 + $0x16a] sm:$0xff]
        %v1007 = vld [vmem:[%s751 + $0x172] sm:$0xff]
        %v1008 = vld [vmem:[%s751 + $0x182] sm:$0xff]
        %v1009 = vld [vmem:[%s751 + $0x18a] sm:$0xff]
        %v1010 = vld [vmem:[%s751 + $0x19a] sm:$0xff]
        %v1011 = vld [vmem:[%s751 + $0x1a2] sm:$0xff]
        %v1012 = vlaneseq
        %v1013 = vshrl.u32 %v1012, 7
        %v1014 = vsub.s32 5, %v1013
        %v1015 = vrot.slane %v402, %v1014
        %v1016 = vmul.f32 %v976, %v1015
        %v1017 = vmul.f32 %v977, %v1015
        %v1018 = vmul.f32 %v978, %v1015
        %v1019 = vmul.f32 %v979, %v1015
        %v1020 = vmul.f32 %v980, %v1015
        %v1021 = vmul.f32 %v981, %v1015
        %v1022 = vmul.f32 %v982, %v1015
        %v1023 = vmul.f32 %v983, %v1015
        %v1024 = vmul.f32 %v984, %v1015
        %v1025 = vmul.f32 %v985, %v1015
        %v1026 = vmul.f32 %v986, %v1015
        %v1027 = vmul.f32 %v987, %v1015
        %v1028 = vmul.f32 %v988, %v1015
        %v1029 = vmul.f32 %v989, %v1015
        %v1030 = vmul.f32 %v990, %v1015
        %v1031 = vmul.f32 %v991, %v1015
        %v1032 = vmul.f32 %v992, %v1015
        %v1033 = vmul.f32 %v993, %v1015
        %v1034 = vmul.f32 %v994, %v1015
        %v1035 = vmul.f32 %v995, %v1015
        %v1036 = vmul.f32 %v996, %v1015
        %v1037 = vmul.f32 %v997, %v1015
        %v1038 = vmul.f32 %v998, %v1015
        %v1039 = vmul.f32 %v999, %v1015
        %v1040 = vmul.f32 %v1000, %v1015
        %v1041 = vmul.f32 %v1001, %v1015
        %v1042 = vmul.f32 %v1002, %v1015
        %v1043 = vmul.f32 %v1003, %v1015
        %v1044 = vmul.f32 %v1004, %v1015
        %v1045 = vmul.f32 %v1005, %v1015
        %v1046 = vmul.f32 %v1006, %v1015
        %v1047 = vmul.f32 %v1007, %v1015
        %v1048 = vmul.f32 %v1008, %v1015
        %v1049 = vmul.f32 %v1009, %v1015
        %v1050 = vmul.f32 %v1010, %v1015
        %v1051 = vmul.f32 %v1011, %v1015
        %v1052 = vadd.f32 %v940, %v1016
        %v1053 = vadd.f32 %v941, %v1017
        %v1054 = vadd.f32 %v942, %v1018
        %v1055 = vadd.f32 %v943, %v1019
        %v1056 = vadd.f32 %v944, %v1020
        %v1057 = vadd.f32 %v945, %v1021
        %v1058 = vadd.f32 %v946, %v1022
        %v1059 = vadd.f32 %v947, %v1023
        %v1060 = vadd.f32 %v948, %v1024
        %v1061 = vadd.f32 %v949, %v1025
        %v1062 = vadd.f32 %v950, %v1026
        %v1063 = vadd.f32 %v951, %v1027
        %v1064 = vadd.f32 %v952, %v1028
        %v1065 = vadd.f32 %v953, %v1029
        %v1066 = vadd.f32 %v954, %v1030
        %v1067 = vadd.f32 %v955, %v1031
        %v1068 = vadd.f32 %v956, %v1032
        %v1069 = vadd.f32 %v957, %v1033
        %v1070 = vadd.f32 %v958, %v1034
        %v1071 = vadd.f32 %v959, %v1035
        %v1072 = vadd.f32 %v960, %v1036
        %v1073 = vadd.f32 %v961, %v1037
        %v1074 = vadd.f32 %v962, %v1038
        %v1075 = vadd.f32 %v963, %v1039
        %v1076 = vadd.f32 %v964, %v1040
        %v1077 = vadd.f32 %v965, %v1041
        %v1078 = vadd.f32 %v966, %v1042
        %v1079 = vadd.f32 %v967, %v1043
        %v1080 = vadd.f32 %v968, %v1044
        %v1081 = vadd.f32 %v969, %v1045
        %v1082 = vadd.f32 %v970, %v1046
        %v1083 = vadd.f32 %v971, %v1047
        %v1084 = vadd.f32 %v972, %v1048
        %v1085 = vadd.f32 %v973, %v1049
        %v1086 = vadd.f32 %v974, %v1050
        %v1087 = vadd.f32 %v975, %v1051
        %s1088 = sadd.s32 %s401, 2
        %s1089 = smul.u32 %s1088, 24
        %s1090 = scalar_lea.vmem %s398, %s1089
        %v1091 = vld [vmem:[%s1090] sm:$0xff]
        %v1092 = vld [vmem:[%s1090 + $0x8] sm:$0xff]
        %v1093 = vld [vmem:[%s1090 + $0x18] sm:$0xff]
        %v1094 = vld [vmem:[%s1090 + $0x20] sm:$0xff]
        %v1095 = vld [vmem:[%s1090 + $0x30] sm:$0xff]
        %v1096 = vld [vmem:[%s1090 + $0x38] sm:$0xff]
        %v1097 = vld [vmem:[%s1090 + $0x48] sm:$0xff]
        %v1098 = vld [vmem:[%s1090 + $0x50] sm:$0xff]
        %v1099 = vld [vmem:[%s1090 + $0x60] sm:$0xff]
        %v1100 = vld [vmem:[%s1090 + $0x68] sm:$0xff]
        %v1101 = vld [vmem:[%s1090 + $0x78] sm:$0xff]
        %v1102 = vld [vmem:[%s1090 + $0x80] sm:$0xff]
        %v1103 = vld [vmem:[%s1090 + $0x90] sm:$0xff]
        %v1104 = vld [vmem:[%s1090 + $0x98] sm:$0xff]
        %v1105 = vld [vmem:[%s1090 + $0xa8] sm:$0xff]
        %v1106 = vld [vmem:[%s1090 + $0xb0] sm:$0xff]
        %v1107 = vld [vmem:[%s1090 + $0xc0] sm:$0xff]
        %v1108 = vld [vmem:[%s1090 + $0xc8] sm:$0xff]
        %v1109 = vld [vmem:[%s1090 + $0xd8] sm:$0xff]
        %v1110 = vld [vmem:[%s1090 + $0xe0] sm:$0xff]
        %v1111 = vld [vmem:[%s1090 + $0xf0] sm:$0xff]
        %v1112 = vld [vmem:[%s1090 + $0xf8] sm:$0xff]
        %v1113 = vld [vmem:[%s1090 + $0x108] sm:$0xff]
        %v1114 = vld [vmem:[%s1090 + $0x110] sm:$0xff]
        %v1115 = vld [vmem:[%s1090 + $0x120] sm:$0xff]
        %v1116 = vld [vmem:[%s1090 + $0x128] sm:$0xff]
        %v1117 = vld [vmem:[%s1090 + $0x138] sm:$0xff]
        %v1118 = vld [vmem:[%s1090 + $0x140] sm:$0xff]
        %v1119 = vld [vmem:[%s1090 + $0x150] sm:$0xff]
        %v1120 = vld [vmem:[%s1090 + $0x158] sm:$0xff]
        %v1121 = vld [vmem:[%s1090 + $0x168] sm:$0xff]
        %v1122 = vld [vmem:[%s1090 + $0x170] sm:$0xff]
        %v1123 = vld [vmem:[%s1090 + $0x180] sm:$0xff]
        %v1124 = vld [vmem:[%s1090 + $0x188] sm:$0xff]
        %v1125 = vld [vmem:[%s1090 + $0x198] sm:$0xff]
        %v1126 = vld [vmem:[%s1090 + $0x1a0] sm:$0xff]
        %v1127 = vlaneseq
        %v1128 = vshrl.u32 %v1127, 7
        %v1129 = vsub.s32 6, %v1128
        %v1130 = vrot.slane %v402, %v1129
        %v1131 = vmul.f32 %v1091, %v1130
        %v1132 = vmul.f32 %v1092, %v1130
        %v1133 = vmul.f32 %v1093, %v1130
        %v1134 = vmul.f32 %v1094, %v1130
        %v1135 = vmul.f32 %v1095, %v1130
        %v1136 = vmul.f32 %v1096, %v1130
        %v1137 = vmul.f32 %v1097, %v1130
        %v1138 = vmul.f32 %v1098, %v1130
        %v1139 = vmul.f32 %v1099, %v1130
        %v1140 = vmul.f32 %v1100, %v1130
        %v1141 = vmul.f32 %v1101, %v1130
        %v1142 = vmul.f32 %v1102, %v1130
        %v1143 = vmul.f32 %v1103, %v1130
        %v1144 = vmul.f32 %v1104, %v1130
        %v1145 = vmul.f32 %v1105, %v1130
        %v1146 = vmul.f32 %v1106, %v1130
        %v1147 = vmul.f32 %v1107, %v1130
        %v1148 = vmul.f32 %v1108, %v1130
        %v1149 = vmul.f32 %v1109, %v1130
        %v1150 = vmul.f32 %v1110, %v1130
        %v1151 = vmul.f32 %v1111, %v1130
        %v1152 = vmul.f32 %v1112, %v1130
        %v1153 = vmul.f32 %v1113, %v1130
        %v1154 = vmul.f32 %v1114, %v1130
        %v1155 = vmul.f32 %v1115, %v1130
        %v1156 = vmul.f32 %v1116, %v1130
        %v1157 = vmul.f32 %v1117, %v1130
        %v1158 = vmul.f32 %v1118, %v1130
        %v1159 = vmul.f32 %v1119, %v1130
        %v1160 = vmul.f32 %v1120, %v1130
        %v1161 = vmul.f32 %v1121, %v1130
        %v1162 = vmul.f32 %v1122, %v1130
        %v1163 = vmul.f32 %v1123, %v1130
        %v1164 = vmul.f32 %v1124, %v1130
        %v1165 = vmul.f32 %v1125, %v1130
        %v1166 = vmul.f32 %v1126, %v1130
        %v1167 = vadd.f32 %v1052, %v1131
        %v1168 = vadd.f32 %v1053, %v1132
        %v1169 = vadd.f32 %v1054, %v1133
        %v1170 = vadd.f32 %v1055, %v1134
        %v1171 = vadd.f32 %v1056, %v1135
        %v1172 = vadd.f32 %v1057, %v1136
        %v1173 = vadd.f32 %v1058, %v1137
        %v1174 = vadd.f32 %v1059, %v1138
        %v1175 = vadd.f32 %v1060, %v1139
        %v1176 = vadd.f32 %v1061, %v1140
        %v1177 = vadd.f32 %v1062, %v1141
        %v1178 = vadd.f32 %v1063, %v1142
        %v1179 = vadd.f32 %v1064, %v1143
        %v1180 = vadd.f32 %v1065, %v1144
        %v1181 = vadd.f32 %v1066, %v1145
        %v1182 = vadd.f32 %v1067, %v1146
        %v1183 = vadd.f32 %v1068, %v1147
        %v1184 = vadd.f32 %v1069, %v1148
        %v1185 = vadd.f32 %v1070, %v1149
        %v1186 = vadd.f32 %v1071, %v1150
        %v1187 = vadd.f32 %v1072, %v1151
        %v1188 = vadd.f32 %v1073, %v1152
        %v1189 = vadd.f32 %v1074, %v1153
        %v1190 = vadd.f32 %v1075, %v1154
        %v1191 = vadd.f32 %v1076, %v1155
        %v1192 = vadd.f32 %v1077, %v1156
        %v1193 = vadd.f32 %v1078, %v1157
        %v1194 = vadd.f32 %v1079, %v1158
        %v1195 = vadd.f32 %v1080, %v1159
        %v1196 = vadd.f32 %v1081, %v1160
        %v1197 = vadd.f32 %v1082, %v1161
        %v1198 = vadd.f32 %v1083, %v1162
        %v1199 = vadd.f32 %v1084, %v1163
        %v1200 = vadd.f32 %v1085, %v1164
        %v1201 = vadd.f32 %v1086, %v1165
        %v1202 = vadd.f32 %v1087, %v1166
        %v1203 = vld [vmem:[%s1090 + $0x1] sm:$0xff]
        %v1204 = vld [vmem:[%s1090 + $0x9] sm:$0xff]
        %v1205 = vld [vmem:[%s1090 + $0x19] sm:$0xff]
        %v1206 = vld [vmem:[%s1090 + $0x21] sm:$0xff]
        %v1207 = vld [vmem:[%s1090 + $0x31] sm:$0xff]
        %v1208 = vld [vmem:[%s1090 + $0x39] sm:$0xff]
        %v1209 = vld [vmem:[%s1090 + $0x49] sm:$0xff]
        %v1210 = vld [vmem:[%s1090 + $0x51] sm:$0xff]
        %v1211 = vld [vmem:[%s1090 + $0x61] sm:$0xff]
        %v1212 = vld [vmem:[%s1090 + $0x69] sm:$0xff]
        %v1213 = vld [vmem:[%s1090 + $0x79] sm:$0xff]
        %v1214 = vld [vmem:[%s1090 + $0x81] sm:$0xff]
        %v1215 = vld [vmem:[%s1090 + $0x91] sm:$0xff]
        %v1216 = vld [vmem:[%s1090 + $0x99] sm:$0xff]
        %v1217 = vld [vmem:[%s1090 + $0xa9] sm:$0xff]
        %v1218 = vld [vmem:[%s1090 + $0xb1] sm:$0xff]
        %v1219 = vld [vmem:[%s1090 + $0xc1] sm:$0xff]
        %v1220 = vld [vmem:[%s1090 + $0xc9] sm:$0xff]
        %v1221 = vld [vmem:[%s1090 + $0xd9] sm:$0xff]
        %v1222 = vld [vmem:[%s1090 + $0xe1] sm:$0xff]
        %v1223 = vld [vmem:[%s1090 + $0xf1] sm:$0xff]
        %v1224 = vld [vmem:[%s1090 + $0xf9] sm:$0xff]
        %v1225 = vld [vmem:[%s1090 + $0x109] sm:$0xff]
        %v1226 = vld [vmem:[%s1090 + $0x111] sm:$0xff]
        %v1227 = vld [vmem:[%s1090 + $0x121] sm:$0xff]
        %v1228 = vld [vmem:[%s1090 + $0x129] sm:$0xff]
        %v1229 = vld [vmem:[%s1090 + $0x139] sm:$0xff]
        %v1230 = vld [vmem:[%s1090 + $0x141] sm:$0xff]
        %v1231 = vld [vmem:[%s1090 + $0x151] sm:$0xff]
        %v1232 = vld [vmem:[%s1090 + $0x159] sm:$0xff]
        %v1233 = vld [vmem:[%s1090 + $0x169] sm:$0xff]
        %v1234 = vld [vmem:[%s1090 + $0x171] sm:$0xff]
        %v1235 = vld [vmem:[%s1090 + $0x181] sm:$0xff]
        %v1236 = vld [vmem:[%s1090 + $0x189] sm:$0xff]
        %v1237 = vld [vmem:[%s1090 + $0x199] sm:$0xff]
        %v1238 = vld [vmem:[%s1090 + $0x1a1] sm:$0xff]
        %v1239 = vlaneseq
        %v1240 = vshrl.u32 %v1239, 7
        %v1241 = vsub.s32 7, %v1240
        %v1242 = vrot.slane %v402, %v1241
        %v1243 = vmul.f32 %v1203, %v1242
        %v1244 = vmul.f32 %v1204, %v1242
        %v1245 = vmul.f32 %v1205, %v1242
        %v1246 = vmul.f32 %v1206, %v1242
        %v1247 = vmul.f32 %v1207, %v1242
        %v1248 = vmul.f32 %v1208, %v1242
        %v1249 = vmul.f32 %v1209, %v1242
        %v1250 = vmul.f32 %v1210, %v1242
        %v1251 = vmul.f32 %v1211, %v1242
        %v1252 = vmul.f32 %v1212, %v1242
        %v1253 = vmul.f32 %v1213, %v1242
        %v1254 = vmul.f32 %v1214, %v1242
        %v1255 = vmul.f32 %v1215, %v1242
        %v1256 = vmul.f32 %v1216, %v1242
        %v1257 = vmul.f32 %v1217, %v1242
        %v1258 = vmul.f32 %v1218, %v1242
        %v1259 = vmul.f32 %v1219, %v1242
        %v1260 = vmul.f32 %v1220, %v1242
        %v1261 = vmul.f32 %v1221, %v1242
        %v1262 = vmul.f32 %v1222, %v1242
        %v1263 = vmul.f32 %v1223, %v1242
        %v1264 = vmul.f32 %v1224, %v1242
        %v1265 = vmul.f32 %v1225, %v1242
        %v1266 = vmul.f32 %v1226, %v1242
        %v1267 = vmul.f32 %v1227, %v1242
        %v1268 = vmul.f32 %v1228, %v1242
        %v1269 = vmul.f32 %v1229, %v1242
        %v1270 = vmul.f32 %v1230, %v1242
        %v1271 = vmul.f32 %v1231, %v1242
        %v1272 = vmul.f32 %v1232, %v1242
        %v1273 = vmul.f32 %v1233, %v1242
        %v1274 = vmul.f32 %v1234, %v1242
        %v1275 = vmul.f32 %v1235, %v1242
        %v1276 = vmul.f32 %v1236, %v1242
        %v1277 = vmul.f32 %v1237, %v1242
        %v1278 = vmul.f32 %v1238, %v1242
        %v1279 = vadd.f32 %v1167, %v1243
        %v1280 = vadd.f32 %v1168, %v1244
        %v1281 = vadd.f32 %v1169, %v1245
        %v1282 = vadd.f32 %v1170, %v1246
        %v1283 = vadd.f32 %v1171, %v1247
        %v1284 = vadd.f32 %v1172, %v1248
        %v1285 = vadd.f32 %v1173, %v1249
        %v1286 = vadd.f32 %v1174, %v1250
        %v1287 = vadd.f32 %v1175, %v1251
        %v1288 = vadd.f32 %v1176, %v1252
        %v1289 = vadd.f32 %v1177, %v1253
        %v1290 = vadd.f32 %v1178, %v1254
        %v1291 = vadd.f32 %v1179, %v1255
        %v1292 = vadd.f32 %v1180, %v1256
        %v1293 = vadd.f32 %v1181, %v1257
        %v1294 = vadd.f32 %v1182, %v1258
        %v1295 = vadd.f32 %v1183, %v1259
        %v1296 = vadd.f32 %v1184, %v1260
        %v1297 = vadd.f32 %v1185, %v1261
        %v1298 = vadd.f32 %v1186, %v1262
        %v1299 = vadd.f32 %v1187, %v1263
        %v1300 = vadd.f32 %v1188, %v1264
        %v1301 = vadd.f32 %v1189, %v1265
        %v1302 = vadd.f32 %v1190, %v1266
        %v1303 = vadd.f32 %v1191, %v1267
        %v1304 = vadd.f32 %v1192, %v1268
        %v1305 = vadd.f32 %v1193, %v1269
        %v1306 = vadd.f32 %v1194, %v1270
        %v1307 = vadd.f32 %v1195, %v1271
        %v1308 = vadd.f32 %v1196, %v1272
        %v1309 = vadd.f32 %v1197, %v1273
        %v1310 = vadd.f32 %v1198, %v1274
        %v1311 = vadd.f32 %v1199, %v1275
        %v1312 = vadd.f32 %v1200, %v1276
        %v1313 = vadd.f32 %v1201, %v1277
        %v1314 = vadd.f32 %v1202, %v1278
        %v1315 = vld [vmem:[%s1090 + $0x2] sm:$0xff]
        %v1316 = vld [vmem:[%s1090 + $0xa] sm:$0xff]
        %v1317 = vld [vmem:[%s1090 + $0x1a] sm:$0xff]
        %v1318 = vld [vmem:[%s1090 + $0x22] sm:$0xff]
        %v1319 = vld [vmem:[%s1090 + $0x32] sm:$0xff]
        %v1320 = vld [vmem:[%s1090 + $0x3a] sm:$0xff]
        %v1321 = vld [vmem:[%s1090 + $0x4a] sm:$0xff]
        %v1322 = vld [vmem:[%s1090 + $0x52] sm:$0xff]
        %v1323 = vld [vmem:[%s1090 + $0x62] sm:$0xff]
        %v1324 = vld [vmem:[%s1090 + $0x6a] sm:$0xff]
        %v1325 = vld [vmem:[%s1090 + $0x7a] sm:$0xff]
        %v1326 = vld [vmem:[%s1090 + $0x82] sm:$0xff]
        %v1327 = vld [vmem:[%s1090 + $0x92] sm:$0xff]
        %v1328 = vld [vmem:[%s1090 + $0x9a] sm:$0xff]
        %v1329 = vld [vmem:[%s1090 + $0xaa] sm:$0xff]
        %v1330 = vld [vmem:[%s1090 + $0xb2] sm:$0xff]
        %v1331 = vld [vmem:[%s1090 + $0xc2] sm:$0xff]
        %v1332 = vld [vmem:[%s1090 + $0xca] sm:$0xff]
        %v1333 = vld [vmem:[%s1090 + $0xda] sm:$0xff]
        %v1334 = vld [vmem:[%s1090 + $0xe2] sm:$0xff]
        %v1335 = vld [vmem:[%s1090 + $0xf2] sm:$0xff]
        %v1336 = vld [vmem:[%s1090 + $0xfa] sm:$0xff]
        %v1337 = vld [vmem:[%s1090 + $0x10a] sm:$0xff]
        %v1338 = vld [vmem:[%s1090 + $0x112] sm:$0xff]
        %v1339 = vld [vmem:[%s1090 + $0x122] sm:$0xff]
        %v1340 = vld [vmem:[%s1090 + $0x12a] sm:$0xff]
        %v1341 = vld [vmem:[%s1090 + $0x13a] sm:$0xff]
        %v1342 = vld [vmem:[%s1090 + $0x142] sm:$0xff]
        %v1343 = vld [vmem:[%s1090 + $0x152] sm:$0xff]
        %v1344 = vld [vmem:[%s1090 + $0x15a] sm:$0xff]
        %v1345 = vld [vmem:[%s1090 + $0x16a] sm:$0xff]
        %v1346 = vld [vmem:[%s1090 + $0x172] sm:$0xff]
        %v1347 = vld [vmem:[%s1090 + $0x182] sm:$0xff]
        %v1348 = vld [vmem:[%s1090 + $0x18a] sm:$0xff]
        %v1349 = vld [vmem:[%s1090 + $0x19a] sm:$0xff]
        %v1350 = vld [vmem:[%s1090 + $0x1a2] sm:$0xff]
        %v1351 = vlaneseq
        %v1352 = vshrl.u32 %v1351, 7
        %v1353 = vsub.s32 0, %v1352
        %v1354 = vrot.slane %v403, %v1353
        %v1355 = vmul.f32 %v1315, %v1354
        %v1356 = vmul.f32 %v1316, %v1354
        %v1357 = vmul.f32 %v1317, %v1354
        %v1358 = vmul.f32 %v1318, %v1354
        %v1359 = vmul.f32 %v1319, %v1354
        %v1360 = vmul.f32 %v1320, %v1354
        %v1361 = vmul.f32 %v1321, %v1354
        %v1362 = vmul.f32 %v1322, %v1354
        %v1363 = vmul.f32 %v1323, %v1354
        %v1364 = vmul.f32 %v1324, %v1354
        %v1365 = vmul.f32 %v1325, %v1354
        %v1366 = vmul.f32 %v1326, %v1354
        %v1367 = vmul.f32 %v1327, %v1354
        %v1368 = vmul.f32 %v1328, %v1354
        %v1369 = vmul.f32 %v1329, %v1354
        %v1370 = vmul.f32 %v1330, %v1354
        %v1371 = vmul.f32 %v1331, %v1354
        %v1372 = vmul.f32 %v1332, %v1354
        %v1373 = vmul.f32 %v1333, %v1354
        %v1374 = vmul.f32 %v1334, %v1354
        %v1375 = vmul.f32 %v1335, %v1354
        %v1376 = vmul.f32 %v1336, %v1354
        %v1377 = vmul.f32 %v1337, %v1354
        %v1378 = vmul.f32 %v1338, %v1354
        %v1379 = vmul.f32 %v1339, %v1354
        %v1380 = vmul.f32 %v1340, %v1354
        %v1381 = vmul.f32 %v1341, %v1354
        %v1382 = vmul.f32 %v1342, %v1354
        %v1383 = vmul.f32 %v1343, %v1354
        %v1384 = vmul.f32 %v1344, %v1354
        %v1385 = vmul.f32 %v1345, %v1354
        %v1386 = vmul.f32 %v1346, %v1354
        %v1387 = vmul.f32 %v1347, %v1354
        %v1388 = vmul.f32 %v1348, %v1354
        %v1389 = vmul.f32 %v1349, %v1354
        %v1390 = vmul.f32 %v1350, %v1354
        %v1391 = vadd.f32 %v1279, %v1355
        %v1392 = vadd.f32 %v1280, %v1356
        %v1393 = vadd.f32 %v1281, %v1357
        %v1394 = vadd.f32 %v1282, %v1358
        %v1395 = vadd.f32 %v1283, %v1359
        %v1396 = vadd.f32 %v1284, %v1360
        %v1397 = vadd.f32 %v1285, %v1361
        %v1398 = vadd.f32 %v1286, %v1362
        %v1399 = vadd.f32 %v1287, %v1363
        %v1400 = vadd.f32 %v1288, %v1364
        %v1401 = vadd.f32 %v1289, %v1365
        %v1402 = vadd.f32 %v1290, %v1366
        %v1403 = vadd.f32 %v1291, %v1367
        %v1404 = vadd.f32 %v1292, %v1368
        %v1405 = vadd.f32 %v1293, %v1369
        %v1406 = vadd.f32 %v1294, %v1370
        %v1407 = vadd.f32 %v1295, %v1371
        %v1408 = vadd.f32 %v1296, %v1372
        %v1409 = vadd.f32 %v1297, %v1373
        %v1410 = vadd.f32 %v1298, %v1374
        %v1411 = vadd.f32 %v1299, %v1375
        %v1412 = vadd.f32 %v1300, %v1376
        %v1413 = vadd.f32 %v1301, %v1377
        %v1414 = vadd.f32 %v1302, %v1378
        %v1415 = vadd.f32 %v1303, %v1379
        %v1416 = vadd.f32 %v1304, %v1380
        %v1417 = vadd.f32 %v1305, %v1381
        %v1418 = vadd.f32 %v1306, %v1382
        %v1419 = vadd.f32 %v1307, %v1383
        %v1420 = vadd.f32 %v1308, %v1384
        %v1421 = vadd.f32 %v1309, %v1385
        %v1422 = vadd.f32 %v1310, %v1386
        %v1423 = vadd.f32 %v1311, %v1387
        %v1424 = vadd.f32 %v1312, %v1388
        %v1425 = vadd.f32 %v1313, %v1389
        %v1426 = vadd.f32 %v1314, %v1390
        %vm1427 = vcmask 261120
        %v1428 = vsel %vm1427, %v1391, 0.0
        %1429 = vadd.xlane.f32.xlu0 %v1428
        %v1430 = vpop.xlane.xlu0 %1429
        %v1431 = vsel %vm1427, %v1392, 0.0
        %1432 = vadd.xlane.f32.xlu0 %v1431
        %v1433 = vpop.xlane.xlu0 %1432
        %v1434 = vsel %vm1427, %v1393, 0.0
        %1435 = vadd.xlane.f32.xlu0 %v1434
        %v1436 = vpop.xlane.xlu0 %1435
        %v1437 = vsel %vm1427, %v1394, 0.0
        %1438 = vadd.xlane.f32.xlu0 %v1437
        %v1439 = vpop.xlane.xlu0 %1438
        %v1440 = vsel %vm1427, %v1395, 0.0
        %1441 = vadd.xlane.f32.xlu0 %v1440
        %v1442 = vpop.xlane.xlu0 %1441
        %v1443 = vsel %vm1427, %v1396, 0.0
        %1444 = vadd.xlane.f32.xlu0 %v1443
        %v1445 = vpop.xlane.xlu0 %1444
        %v1446 = vsel %vm1427, %v1397, 0.0
        %1447 = vadd.xlane.f32.xlu0 %v1446
        %v1448 = vpop.xlane.xlu0 %1447
        %v1449 = vsel %vm1427, %v1398, 0.0
        %1450 = vadd.xlane.f32.xlu0 %v1449
        %v1451 = vpop.xlane.xlu0 %1450
        %v1452 = vsel %vm1427, %v1399, 0.0
        %1453 = vadd.xlane.f32.xlu0 %v1452
        %v1454 = vpop.xlane.xlu0 %1453
        %v1455 = vsel %vm1427, %v1400, 0.0
        %1456 = vadd.xlane.f32.xlu0 %v1455
        %v1457 = vpop.xlane.xlu0 %1456
        %v1458 = vsel %vm1427, %v1401, 0.0
        %1459 = vadd.xlane.f32.xlu0 %v1458
        %v1460 = vpop.xlane.xlu0 %1459
        %v1461 = vsel %vm1427, %v1402, 0.0
        %1462 = vadd.xlane.f32.xlu0 %v1461
        %v1463 = vpop.xlane.xlu0 %1462
        %v1464 = vsel %vm1427, %v1403, 0.0
        %1465 = vadd.xlane.f32.xlu0 %v1464
        %v1466 = vpop.xlane.xlu0 %1465
        %v1467 = vsel %vm1427, %v1404, 0.0
        %1468 = vadd.xlane.f32.xlu0 %v1467
        %v1469 = vpop.xlane.xlu0 %1468
        %v1470 = vsel %vm1427, %v1405, 0.0
        %1471 = vadd.xlane.f32.xlu0 %v1470
        %v1472 = vpop.xlane.xlu0 %1471
        %v1473 = vsel %vm1427, %v1406, 0.0
        %1474 = vadd.xlane.f32.xlu0 %v1473
        %v1475 = vpop.xlane.xlu0 %1474
        %v1476 = vsel %vm1427, %v1407, 0.0
        %1477 = vadd.xlane.f32.xlu0 %v1476
        %v1478 = vpop.xlane.xlu0 %1477
        %v1479 = vsel %vm1427, %v1408, 0.0
        %1480 = vadd.xlane.f32.xlu0 %v1479
        %v1481 = vpop.xlane.xlu0 %1480
        %v1482 = vsel %vm1427, %v1409, 0.0
        %1483 = vadd.xlane.f32.xlu0 %v1482
        %v1484 = vpop.xlane.xlu0 %1483
        %v1485 = vsel %vm1427, %v1410, 0.0
        %1486 = vadd.xlane.f32.xlu0 %v1485
        %v1487 = vpop.xlane.xlu0 %1486
        %v1488 = vsel %vm1427, %v1411, 0.0
        %1489 = vadd.xlane.f32.xlu0 %v1488
        %v1490 = vpop.xlane.xlu0 %1489
        %v1491 = vsel %vm1427, %v1412, 0.0
        %1492 = vadd.xlane.f32.xlu0 %v1491
        %v1493 = vpop.xlane.xlu0 %1492
        %v1494 = vsel %vm1427, %v1413, 0.0
        %1495 = vadd.xlane.f32.xlu0 %v1494
        %v1496 = vpop.xlane.xlu0 %1495
        %v1497 = vsel %vm1427, %v1414, 0.0
        %1498 = vadd.xlane.f32.xlu0 %v1497
        %v1499 = vpop.xlane.xlu0 %1498
        %v1500 = vsel %vm1427, %v1415, 0.0
        %1501 = vadd.xlane.f32.xlu0 %v1500
        %v1502 = vpop.xlane.xlu0 %1501
        %v1503 = vsel %vm1427, %v1416, 0.0
        %1504 = vadd.xlane.f32.xlu0 %v1503
        %v1505 = vpop.xlane.xlu0 %1504
        %v1506 = vsel %vm1427, %v1417, 0.0
        %1507 = vadd.xlane.f32.xlu0 %v1506
        %v1508 = vpop.xlane.xlu0 %1507
        %v1509 = vsel %vm1427, %v1418, 0.0
        %1510 = vadd.xlane.f32.xlu0 %v1509
        %v1511 = vpop.xlane.xlu0 %1510
        %v1512 = vsel %vm1427, %v1419, 0.0
        %1513 = vadd.xlane.f32.xlu0 %v1512
        %v1514 = vpop.xlane.xlu0 %1513
        %v1515 = vsel %vm1427, %v1420, 0.0
        %1516 = vadd.xlane.f32.xlu0 %v1515
        %v1517 = vpop.xlane.xlu0 %1516
        %v1518 = vsel %vm1427, %v1421, 0.0
        %1519 = vadd.xlane.f32.xlu0 %v1518
        %v1520 = vpop.xlane.xlu0 %1519
        %v1521 = vsel %vm1427, %v1422, 0.0
        %1522 = vadd.xlane.f32.xlu0 %v1521
        %v1523 = vpop.xlane.xlu0 %1522
        %v1524 = vsel %vm1427, %v1423, 0.0
        %1525 = vadd.xlane.f32.xlu0 %v1524
        %v1526 = vpop.xlane.xlu0 %1525
        %v1527 = vsel %vm1427, %v1424, 0.0
        %1528 = vadd.xlane.f32.xlu0 %v1527
        %v1529 = vpop.xlane.xlu0 %1528
        %v1530 = vsel %vm1427, %v1425, 0.0
        %1531 = vadd.xlane.f32.xlu0 %v1530
        %v1532 = vpop.xlane.xlu0 %1531
        %v1533 = vsel %vm1427, %v1426, 0.0
        %1534 = vadd.xlane.f32.xlu0 %v1533
        %v1535 = vpop.xlane.xlu0 %1534
        %v1536 = vrcp.pop 32.0
        %v1537 = vmul.f32 %v1430, %v1536
        %v1538 = vmul.f32 %v1433, %v1536
        %v1539 = vmul.f32 %v1436, %v1536
        %v1540 = vmul.f32 %v1439, %v1536
        %v1541 = vmul.f32 %v1442, %v1536
        %v1542 = vmul.f32 %v1445, %v1536
        %v1543 = vmul.f32 %v1448, %v1536
        %v1544 = vmul.f32 %v1451, %v1536
        %v1545 = vmul.f32 %v1454, %v1536
        %v1546 = vmul.f32 %v1457, %v1536
        %v1547 = vmul.f32 %v1460, %v1536
        %v1548 = vmul.f32 %v1463, %v1536
        %v1549 = vmul.f32 %v1466, %v1536
        %v1550 = vmul.f32 %v1469, %v1536
        %v1551 = vmul.f32 %v1472, %v1536
        %v1552 = vmul.f32 %v1475, %v1536
        %v1553 = vmul.f32 %v1478, %v1536
        %v1554 = vmul.f32 %v1481, %v1536
        %v1555 = vmul.f32 %v1484, %v1536
        %v1556 = vmul.f32 %v1487, %v1536
        %v1557 = vmul.f32 %v1490, %v1536
        %v1558 = vmul.f32 %v1493, %v1536
        %v1559 = vmul.f32 %v1496, %v1536
        %v1560 = vmul.f32 %v1499, %v1536
        %v1561 = vmul.f32 %v1502, %v1536
        %v1562 = vmul.f32 %v1505, %v1536
        %v1563 = vmul.f32 %v1508, %v1536
        %v1564 = vmul.f32 %v1511, %v1536
        %v1565 = vmul.f32 %v1514, %v1536
        %v1566 = vmul.f32 %v1517, %v1536
        %v1567 = vmul.f32 %v1520, %v1536
        %v1568 = vmul.f32 %v1523, %v1536
        %v1569 = vmul.f32 %v1526, %v1536
        %v1570 = vmul.f32 %v1529, %v1536
        %v1571 = vmul.f32 %v1532, %v1536
        %v1572 = vmul.f32 %v1535, %v1536
        %v1573 = vsub.f32 %v1391, %v1537
        %v1574 = vsub.f32 %v1392, %v1538
        %v1575 = vsub.f32 %v1393, %v1539
        %v1576 = vsub.f32 %v1394, %v1540
        %v1577 = vsub.f32 %v1395, %v1541
        %v1578 = vsub.f32 %v1396, %v1542
        %v1579 = vsub.f32 %v1397, %v1543
        %v1580 = vsub.f32 %v1398, %v1544
        %v1581 = vsub.f32 %v1399, %v1545
        %v1582 = vsub.f32 %v1400, %v1546
        %v1583 = vsub.f32 %v1401, %v1547
        %v1584 = vsub.f32 %v1402, %v1548
        %v1585 = vsub.f32 %v1403, %v1549
        %v1586 = vsub.f32 %v1404, %v1550
        %v1587 = vsub.f32 %v1405, %v1551
        %v1588 = vsub.f32 %v1406, %v1552
        %v1589 = vsub.f32 %v1407, %v1553
        %v1590 = vsub.f32 %v1408, %v1554
        %v1591 = vsub.f32 %v1409, %v1555
        %v1592 = vsub.f32 %v1410, %v1556
        %v1593 = vsub.f32 %v1411, %v1557
        %v1594 = vsub.f32 %v1412, %v1558
        %v1595 = vsub.f32 %v1413, %v1559
        %v1596 = vsub.f32 %v1414, %v1560
        %v1597 = vsub.f32 %v1415, %v1561
        %v1598 = vsub.f32 %v1416, %v1562
        %v1599 = vsub.f32 %v1417, %v1563
        %v1600 = vsub.f32 %v1418, %v1564
        %v1601 = vsub.f32 %v1419, %v1565
        %v1602 = vsub.f32 %v1420, %v1566
        %v1603 = vsub.f32 %v1421, %v1567
        %v1604 = vsub.f32 %v1422, %v1568
        %v1605 = vsub.f32 %v1423, %v1569
        %v1606 = vsub.f32 %v1424, %v1570
        %v1607 = vsub.f32 %v1425, %v1571
        %v1608 = vsub.f32 %v1426, %v1572
        %v1609 = vmul.f32 %v1573, %v1573
        %v1610 = vmul.f32 %v1574, %v1574
        %v1611 = vmul.f32 %v1575, %v1575
        %v1612 = vmul.f32 %v1576, %v1576
        %v1613 = vmul.f32 %v1577, %v1577
        %v1614 = vmul.f32 %v1578, %v1578
        %v1615 = vmul.f32 %v1579, %v1579
        %v1616 = vmul.f32 %v1580, %v1580
        %v1617 = vmul.f32 %v1581, %v1581
        %v1618 = vmul.f32 %v1582, %v1582
        %v1619 = vmul.f32 %v1583, %v1583
        %v1620 = vmul.f32 %v1584, %v1584
        %v1621 = vmul.f32 %v1585, %v1585
        %v1622 = vmul.f32 %v1586, %v1586
        %v1623 = vmul.f32 %v1587, %v1587
        %v1624 = vmul.f32 %v1588, %v1588
        %v1625 = vmul.f32 %v1589, %v1589
        %v1626 = vmul.f32 %v1590, %v1590
        %v1627 = vmul.f32 %v1591, %v1591
        %v1628 = vmul.f32 %v1592, %v1592
        %v1629 = vmul.f32 %v1593, %v1593
        %v1630 = vmul.f32 %v1594, %v1594
        %v1631 = vmul.f32 %v1595, %v1595
        %v1632 = vmul.f32 %v1596, %v1596
        %v1633 = vmul.f32 %v1597, %v1597
        %v1634 = vmul.f32 %v1598, %v1598
        %v1635 = vmul.f32 %v1599, %v1599
        %v1636 = vmul.f32 %v1600, %v1600
        %v1637 = vmul.f32 %v1601, %v1601
        %v1638 = vmul.f32 %v1602, %v1602
        %v1639 = vmul.f32 %v1603, %v1603
        %v1640 = vmul.f32 %v1604, %v1604
        %v1641 = vmul.f32 %v1605, %v1605
        %v1642 = vmul.f32 %v1606, %v1606
        %v1643 = vmul.f32 %v1607, %v1607
        %v1644 = vmul.f32 %v1608, %v1608
        %v1645 = vsel %vm1427, %v1609, 0.0
        %1646 = vadd.xlane.f32.xlu0 %v1645
        %v1647 = vpop.xlane.xlu0 %1646
        %v1648 = vsel %vm1427, %v1610, 0.0
        %1649 = vadd.xlane.f32.xlu0 %v1648
        %v1650 = vpop.xlane.xlu0 %1649
        %v1651 = vsel %vm1427, %v1611, 0.0
        %1652 = vadd.xlane.f32.xlu0 %v1651
        %v1653 = vpop.xlane.xlu0 %1652
        %v1654 = vsel %vm1427, %v1612, 0.0
        %1655 = vadd.xlane.f32.xlu0 %v1654
        %v1656 = vpop.xlane.xlu0 %1655
        %v1657 = vsel %vm1427, %v1613, 0.0
        %1658 = vadd.xlane.f32.xlu0 %v1657
        %v1659 = vpop.xlane.xlu0 %1658
        %v1660 = vsel %vm1427, %v1614, 0.0
        %1661 = vadd.xlane.f32.xlu0 %v1660
        %v1662 = vpop.xlane.xlu0 %1661
        %v1663 = vsel %vm1427, %v1615, 0.0
        %1664 = vadd.xlane.f32.xlu0 %v1663
        %v1665 = vpop.xlane.xlu0 %1664
        %v1666 = vsel %vm1427, %v1616, 0.0
        %1667 = vadd.xlane.f32.xlu0 %v1666
        %v1668 = vpop.xlane.xlu0 %1667
        %v1669 = vsel %vm1427, %v1617, 0.0
        %1670 = vadd.xlane.f32.xlu0 %v1669
        %v1671 = vpop.xlane.xlu0 %1670
        %v1672 = vsel %vm1427, %v1618, 0.0
        %1673 = vadd.xlane.f32.xlu0 %v1672
        %v1674 = vpop.xlane.xlu0 %1673
        %v1675 = vsel %vm1427, %v1619, 0.0
        %1676 = vadd.xlane.f32.xlu0 %v1675
        %v1677 = vpop.xlane.xlu0 %1676
        %v1678 = vsel %vm1427, %v1620, 0.0
        %1679 = vadd.xlane.f32.xlu0 %v1678
        %v1680 = vpop.xlane.xlu0 %1679
        %v1681 = vsel %vm1427, %v1621, 0.0
        %1682 = vadd.xlane.f32.xlu0 %v1681
        %v1683 = vpop.xlane.xlu0 %1682
        %v1684 = vsel %vm1427, %v1622, 0.0
        %1685 = vadd.xlane.f32.xlu0 %v1684
        %v1686 = vpop.xlane.xlu0 %1685
        %v1687 = vsel %vm1427, %v1623, 0.0
        %1688 = vadd.xlane.f32.xlu0 %v1687
        %v1689 = vpop.xlane.xlu0 %1688
        %v1690 = vsel %vm1427, %v1624, 0.0
        %1691 = vadd.xlane.f32.xlu0 %v1690
        %v1692 = vpop.xlane.xlu0 %1691
        %v1693 = vsel %vm1427, %v1625, 0.0
        %1694 = vadd.xlane.f32.xlu0 %v1693
        %v1695 = vpop.xlane.xlu0 %1694
        %v1696 = vsel %vm1427, %v1626, 0.0
        %1697 = vadd.xlane.f32.xlu0 %v1696
        %v1698 = vpop.xlane.xlu0 %1697
        %v1699 = vsel %vm1427, %v1627, 0.0
        %1700 = vadd.xlane.f32.xlu0 %v1699
        %v1701 = vpop.xlane.xlu0 %1700
        %v1702 = vsel %vm1427, %v1628, 0.0
        %1703 = vadd.xlane.f32.xlu0 %v1702
        %v1704 = vpop.xlane.xlu0 %1703
        %v1705 = vsel %vm1427, %v1629, 0.0
        %1706 = vadd.xlane.f32.xlu0 %v1705
        %v1707 = vpop.xlane.xlu0 %1706
        %v1708 = vsel %vm1427, %v1630, 0.0
        %1709 = vadd.xlane.f32.xlu0 %v1708
        %v1710 = vpop.xlane.xlu0 %1709
        %v1711 = vsel %vm1427, %v1631, 0.0
        %1712 = vadd.xlane.f32.xlu0 %v1711
        %v1713 = vpop.xlane.xlu0 %1712
        %v1714 = vsel %vm1427, %v1632, 0.0
        %1715 = vadd.xlane.f32.xlu0 %v1714
        %v1716 = vpop.xlane.xlu0 %1715
        %v1717 = vsel %vm1427, %v1633, 0.0
        %1718 = vadd.xlane.f32.xlu0 %v1717
        %v1719 = vpop.xlane.xlu0 %1718
        %v1720 = vsel %vm1427, %v1634, 0.0
        %1721 = vadd.xlane.f32.xlu0 %v1720
        %v1722 = vpop.xlane.xlu0 %1721
        %v1723 = vsel %vm1427, %v1635, 0.0
        %1724 = vadd.xlane.f32.xlu0 %v1723
        %v1725 = vpop.xlane.xlu0 %1724
        %v1726 = vsel %vm1427, %v1636, 0.0
        %1727 = vadd.xlane.f32.xlu0 %v1726
        %v1728 = vpop.xlane.xlu0 %1727
        %v1729 = vsel %vm1427, %v1637, 0.0
        %1730 = vadd.xlane.f32.xlu0 %v1729
        %v1731 = vpop.xlane.xlu0 %1730
        %v1732 = vsel %vm1427, %v1638, 0.0
        %1733 = vadd.xlane.f32.xlu0 %v1732
        %v1734 = vpop.xlane.xlu0 %1733
        %v1735 = vsel %vm1427, %v1639, 0.0
        %1736 = vadd.xlane.f32.xlu0 %v1735
        %v1737 = vpop.xlane.xlu0 %1736
        %v1738 = vsel %vm1427, %v1640, 0.0
        %1739 = vadd.xlane.f32.xlu0 %v1738
        %v1740 = vpop.xlane.xlu0 %1739
        %v1741 = vsel %vm1427, %v1641, 0.0
        %1742 = vadd.xlane.f32.xlu0 %v1741
        %v1743 = vpop.xlane.xlu0 %1742
        %v1744 = vsel %vm1427, %v1642, 0.0
        %1745 = vadd.xlane.f32.xlu0 %v1744
        %v1746 = vpop.xlane.xlu0 %1745
        %v1747 = vsel %vm1427, %v1643, 0.0
        %1748 = vadd.xlane.f32.xlu0 %v1747
        %v1749 = vpop.xlane.xlu0 %1748
        %v1750 = vsel %vm1427, %v1644, 0.0
        %1751 = vadd.xlane.f32.xlu0 %v1750
        %v1752 = vpop.xlane.xlu0 %1751
        %v1753 = vmul.f32 %v1647, %v1536
        %v1754 = vmul.f32 %v1650, %v1536
        %v1755 = vmul.f32 %v1653, %v1536
        %v1756 = vmul.f32 %v1656, %v1536
        %v1757 = vmul.f32 %v1659, %v1536
        %v1758 = vmul.f32 %v1662, %v1536
        %v1759 = vmul.f32 %v1665, %v1536
        %v1760 = vmul.f32 %v1668, %v1536
        %v1761 = vmul.f32 %v1671, %v1536
        %v1762 = vmul.f32 %v1674, %v1536
        %v1763 = vmul.f32 %v1677, %v1536
        %v1764 = vmul.f32 %v1680, %v1536
        %v1765 = vmul.f32 %v1683, %v1536
        %v1766 = vmul.f32 %v1686, %v1536
        %v1767 = vmul.f32 %v1689, %v1536
        %v1768 = vmul.f32 %v1692, %v1536
        %v1769 = vmul.f32 %v1695, %v1536
        %v1770 = vmul.f32 %v1698, %v1536
        %v1771 = vmul.f32 %v1701, %v1536
        %v1772 = vmul.f32 %v1704, %v1536
        %v1773 = vmul.f32 %v1707, %v1536
        %v1774 = vmul.f32 %v1710, %v1536
        %v1775 = vmul.f32 %v1713, %v1536
        %v1776 = vmul.f32 %v1716, %v1536
        %v1777 = vmul.f32 %v1719, %v1536
        %v1778 = vmul.f32 %v1722, %v1536
        %v1779 = vmul.f32 %v1725, %v1536
        %v1780 = vmul.f32 %v1728, %v1536
        %v1781 = vmul.f32 %v1731, %v1536
        %v1782 = vmul.f32 %v1734, %v1536
        %v1783 = vmul.f32 %v1737, %v1536
        %v1784 = vmul.f32 %v1740, %v1536
        %v1785 = vmul.f32 %v1743, %v1536
        %v1786 = vmul.f32 %v1746, %v1536
        %v1787 = vmul.f32 %v1749, %v1536
        %v1788 = vmul.f32 %v1752, %v1536
        %v1789 = vadd.f32 %v1753, 1e-06
        %v1790 = vadd.f32 %v1754, 1e-06
        %v1791 = vadd.f32 %v1755, 1e-06
        %v1792 = vadd.f32 %v1756, 1e-06
        %v1793 = vadd.f32 %v1757, 1e-06
        %v1794 = vadd.f32 %v1758, 1e-06
        %v1795 = vadd.f32 %v1759, 1e-06
        %v1796 = vadd.f32 %v1760, 1e-06
        %v1797 = vadd.f32 %v1761, 1e-06
        %v1798 = vadd.f32 %v1762, 1e-06
        %v1799 = vadd.f32 %v1763, 1e-06
        %v1800 = vadd.f32 %v1764, 1e-06
        %v1801 = vadd.f32 %v1765, 1e-06
        %v1802 = vadd.f32 %v1766, 1e-06
        %v1803 = vadd.f32 %v1767, 1e-06
        %v1804 = vadd.f32 %v1768, 1e-06
        %v1805 = vadd.f32 %v1769, 1e-06
        %v1806 = vadd.f32 %v1770, 1e-06
        %v1807 = vadd.f32 %v1771, 1e-06
        %v1808 = vadd.f32 %v1772, 1e-06
        %v1809 = vadd.f32 %v1773, 1e-06
        %v1810 = vadd.f32 %v1774, 1e-06
        %v1811 = vadd.f32 %v1775, 1e-06
        %v1812 = vadd.f32 %v1776, 1e-06
        %v1813 = vadd.f32 %v1777, 1e-06
        %v1814 = vadd.f32 %v1778, 1e-06
        %v1815 = vadd.f32 %v1779, 1e-06
        %v1816 = vadd.f32 %v1780, 1e-06
        %v1817 = vadd.f32 %v1781, 1e-06
        %v1818 = vadd.f32 %v1782, 1e-06
        %v1819 = vadd.f32 %v1783, 1e-06
        %v1820 = vadd.f32 %v1784, 1e-06
        %v1821 = vadd.f32 %v1785, 1e-06
        %v1822 = vadd.f32 %v1786, 1e-06
        %v1823 = vadd.f32 %v1787, 1e-06
        %v1824 = vadd.f32 %v1788, 1e-06
        %v1825 = vrsqrt.pop %v1789
        %v1826 = vrsqrt.pop %v1790
        %v1827 = vrsqrt.pop %v1791
        %v1828 = vrsqrt.pop %v1792
        %v1829 = vrsqrt.pop %v1793
        %v1830 = vrsqrt.pop %v1794
        %v1831 = vrsqrt.pop %v1795
        %v1832 = vrsqrt.pop %v1796
        %v1833 = vrsqrt.pop %v1797
        %v1834 = vrsqrt.pop %v1798
        %v1835 = vrsqrt.pop %v1799
        %v1836 = vrsqrt.pop %v1800
        %v1837 = vrsqrt.pop %v1801
        %v1838 = vrsqrt.pop %v1802
        %v1839 = vrsqrt.pop %v1803
        %v1840 = vrsqrt.pop %v1804
        %v1841 = vrsqrt.pop %v1805
        %v1842 = vrsqrt.pop %v1806
        %v1843 = vrsqrt.pop %v1807
        %v1844 = vrsqrt.pop %v1808
        %v1845 = vrsqrt.pop %v1809
        %v1846 = vrsqrt.pop %v1810
        %v1847 = vrsqrt.pop %v1811
        %v1848 = vrsqrt.pop %v1812
        %v1849 = vrsqrt.pop %v1813
        %v1850 = vrsqrt.pop %v1814
        %v1851 = vrsqrt.pop %v1815
        %v1852 = vrsqrt.pop %v1816
        %v1853 = vrsqrt.pop %v1817
        %v1854 = vrsqrt.pop %v1818
        %v1855 = vrsqrt.pop %v1819
        %v1856 = vrsqrt.pop %v1820
        %v1857 = vrsqrt.pop %v1821
        %v1858 = vrsqrt.pop %v1822
        %v1859 = vrsqrt.pop %v1823
        %v1860 = vrsqrt.pop %v1824
        %v1861 = vmul.f32 %v1573, %v1825
        %v1862 = vmul.f32 %v1574, %v1826
        %v1863 = vmul.f32 %v1575, %v1827
        %v1864 = vmul.f32 %v1576, %v1828
        %v1865 = vmul.f32 %v1577, %v1829
        %v1866 = vmul.f32 %v1578, %v1830
        %v1867 = vmul.f32 %v1579, %v1831
        %v1868 = vmul.f32 %v1580, %v1832
        %v1869 = vmul.f32 %v1581, %v1833
        %v1870 = vmul.f32 %v1582, %v1834
        %v1871 = vmul.f32 %v1583, %v1835
        %v1872 = vmul.f32 %v1584, %v1836
        %v1873 = vmul.f32 %v1585, %v1837
        %v1874 = vmul.f32 %v1586, %v1838
        %v1875 = vmul.f32 %v1587, %v1839
        %v1876 = vmul.f32 %v1588, %v1840
        %v1877 = vmul.f32 %v1589, %v1841
        %v1878 = vmul.f32 %v1590, %v1842
        %v1879 = vmul.f32 %v1591, %v1843
        %v1880 = vmul.f32 %v1592, %v1844
        %v1881 = vmul.f32 %v1593, %v1845
        %v1882 = vmul.f32 %v1594, %v1846
        %v1883 = vmul.f32 %v1595, %v1847
        %v1884 = vmul.f32 %v1596, %v1848
        %v1885 = vmul.f32 %v1597, %v1849
        %v1886 = vmul.f32 %v1598, %v1850
        %v1887 = vmul.f32 %v1599, %v1851
        %v1888 = vmul.f32 %v1600, %v1852
        %v1889 = vmul.f32 %v1601, %v1853
        %v1890 = vmul.f32 %v1602, %v1854
        %v1891 = vmul.f32 %v1603, %v1855
        %v1892 = vmul.f32 %v1604, %v1856
        %v1893 = vmul.f32 %v1605, %v1857
        %v1894 = vmul.f32 %v1606, %v1858
        %v1895 = vmul.f32 %v1607, %v1859
        %v1896 = vmul.f32 %v1608, %v1860
        %v1897 = vld [vmem:[%s3] sm:$0x1]
        %v1899 = vlaneseq
        %v1900 = vshrl.u32 %v1899, 7
        %v1901 = vsub.s32 0, %v1900
        %v1902 = vrot.slane %v1897, %v1901
        %v1904 = vmul.f32 %v1861, %v1902
        %v1905 = vmul.f32 %v1862, %v1902
        %v1906 = vmul.f32 %v1863, %v1902
        %v1907 = vmul.f32 %v1864, %v1902
        %v1908 = vmul.f32 %v1865, %v1902
        %v1909 = vmul.f32 %v1866, %v1902
        %v1910 = vmul.f32 %v1867, %v1902
        %v1911 = vmul.f32 %v1868, %v1902
        %v1912 = vmul.f32 %v1869, %v1902
        %v1913 = vmul.f32 %v1870, %v1902
        %v1914 = vmul.f32 %v1871, %v1902
        %v1915 = vmul.f32 %v1872, %v1902
        %v1916 = vmul.f32 %v1873, %v1902
        %v1917 = vmul.f32 %v1874, %v1902
        %v1918 = vmul.f32 %v1875, %v1902
        %v1919 = vmul.f32 %v1876, %v1902
        %v1920 = vmul.f32 %v1877, %v1902
        %v1921 = vmul.f32 %v1878, %v1902
        %v1922 = vmul.f32 %v1879, %v1902
        %v1923 = vmul.f32 %v1880, %v1902
        %v1924 = vmul.f32 %v1881, %v1902
        %v1925 = vmul.f32 %v1882, %v1902
        %v1926 = vmul.f32 %v1883, %v1902
        %v1927 = vmul.f32 %v1884, %v1902
        %v1928 = vmul.f32 %v1885, %v1902
        %v1929 = vmul.f32 %v1886, %v1902
        %v1930 = vmul.f32 %v1887, %v1902
        %v1931 = vmul.f32 %v1888, %v1902
        %v1932 = vmul.f32 %v1889, %v1902
        %v1933 = vmul.f32 %v1890, %v1902
        %v1934 = vmul.f32 %v1891, %v1902
        %v1935 = vmul.f32 %v1892, %v1902
        %v1936 = vmul.f32 %v1893, %v1902
        %v1937 = vmul.f32 %v1894, %v1902
        %v1938 = vmul.f32 %v1895, %v1902
        %v1939 = vmul.f32 %v1896, %v1902
        %v1940 = vadd.f32 %v1391, %v1904
        %v1941 = vadd.f32 %v1392, %v1905
        %v1942 = vadd.f32 %v1393, %v1906
        %v1943 = vadd.f32 %v1394, %v1907
        %v1944 = vadd.f32 %v1395, %v1908
        %v1945 = vadd.f32 %v1396, %v1909
        %v1946 = vadd.f32 %v1397, %v1910
        %v1947 = vadd.f32 %v1398, %v1911
        %v1948 = vadd.f32 %v1399, %v1912
        %v1949 = vadd.f32 %v1400, %v1913
        %v1950 = vadd.f32 %v1401, %v1914
        %v1951 = vadd.f32 %v1402, %v1915
        %v1952 = vadd.f32 %v1403, %v1916
        %v1953 = vadd.f32 %v1404, %v1917
        %v1954 = vadd.f32 %v1405, %v1918
        %v1955 = vadd.f32 %v1406, %v1919
        %v1956 = vadd.f32 %v1407, %v1920
        %v1957 = vadd.f32 %v1408, %v1921
        %v1958 = vadd.f32 %v1409, %v1922
        %v1959 = vadd.f32 %v1410, %v1923
        %v1960 = vadd.f32 %v1411, %v1924
        %v1961 = vadd.f32 %v1412, %v1925
        %v1962 = vadd.f32 %v1413, %v1926
        %v1963 = vadd.f32 %v1414, %v1927
        %v1964 = vadd.f32 %v1415, %v1928
        %v1965 = vadd.f32 %v1416, %v1929
        %v1966 = vadd.f32 %v1417, %v1930
        %v1967 = vadd.f32 %v1418, %v1931
        %v1968 = vadd.f32 %v1419, %v1932
        %v1969 = vadd.f32 %v1420, %v1933
        %v1970 = vadd.f32 %v1421, %v1934
        %v1971 = vadd.f32 %v1422, %v1935
        %v1972 = vadd.f32 %v1423, %v1936
        %v1973 = vadd.f32 %v1424, %v1937
        %v1974 = vadd.f32 %v1425, %v1938
        %v1975 = vadd.f32 %v1426, %v1939
        %v1976 = vld [vmem:[%s4] sm:$0x1]
        %v1978 = vlaneseq
        %v1979 = vshrl.u32 %v1978, 7
        %v1980 = vsub.s32 0, %v1979
        %v1981 = vrot.slane %v1976, %v1980
        %v1983 = vadd.f32 %v1940, %v1981
        %v1984 = vadd.f32 %v1941, %v1981
        %v1985 = vadd.f32 %v1942, %v1981
        %v1986 = vadd.f32 %v1943, %v1981
        %v1987 = vadd.f32 %v1944, %v1981
        %v1988 = vadd.f32 %v1945, %v1981
        %v1989 = vadd.f32 %v1946, %v1981
        %v1990 = vadd.f32 %v1947, %v1981
        %v1991 = vadd.f32 %v1948, %v1981
        %v1992 = vadd.f32 %v1949, %v1981
        %v1993 = vadd.f32 %v1950, %v1981
        %v1994 = vadd.f32 %v1951, %v1981
        %v1995 = vadd.f32 %v1952, %v1981
        %v1996 = vadd.f32 %v1953, %v1981
        %v1997 = vadd.f32 %v1954, %v1981
        %v1998 = vadd.f32 %v1955, %v1981
        %v1999 = vadd.f32 %v1956, %v1981
        %v2000 = vadd.f32 %v1957, %v1981
        %v2001 = vadd.f32 %v1958, %v1981
        %v2002 = vadd.f32 %v1959, %v1981
        %v2003 = vadd.f32 %v1960, %v1981
        %v2004 = vadd.f32 %v1961, %v1981
        %v2005 = vadd.f32 %v1962, %v1981
        %v2006 = vadd.f32 %v1963, %v1981
        %v2007 = vadd.f32 %v1964, %v1981
        %v2008 = vadd.f32 %v1965, %v1981
        %v2009 = vadd.f32 %v1966, %v1981
        %v2010 = vadd.f32 %v1967, %v1981
        %v2011 = vadd.f32 %v1968, %v1981
        %v2012 = vadd.f32 %v1969, %v1981
        %v2013 = vadd.f32 %v1970, %v1981
        %v2014 = vadd.f32 %v1971, %v1981
        %v2015 = vadd.f32 %v1972, %v1981
        %v2016 = vadd.f32 %v1973, %v1981
        %v2017 = vadd.f32 %v1974, %v1981
        %v2018 = vadd.f32 %v1975, %v1981
        %v2019 = vpack.c.bf16 %v1984, %v1983
        %v2020 = vpack.c.bf16 %v1986, %v1985
        %v2021 = vpack.c.bf16 %v1988, %v1987
        %v2022 = vpack.c.bf16 %v1990, %v1989
        %v2023 = vpack.c.bf16 %v1992, %v1991
        %v2024 = vpack.c.bf16 %v1994, %v1993
        %v2025 = vpack.c.bf16 %v1996, %v1995
        %v2026 = vpack.c.bf16 %v1998, %v1997
        %v2027 = vpack.c.bf16 %v2000, %v1999
        %v2028 = vpack.c.bf16 %v2002, %v2001
        %v2029 = vpack.c.bf16 %v2004, %v2003
        %v2030 = vpack.c.bf16 %v2006, %v2005
        %v2031 = vpack.c.bf16 %v2008, %v2007
        %v2032 = vpack.c.bf16 %v2010, %v2009
        %v2033 = vpack.c.bf16 %v2012, %v2011
        %v2034 = vpack.c.bf16 %v2014, %v2013
        %v2035 = vpack.c.bf16 %v2016, %v2015
        %v2036 = vpack.c.bf16 %v2018, %v2017
        %v2037 = vld [vmem:[%s5] sm:$0xf]
        %v2038 = vld [vmem:[%s5 + $0x4] sm:$0xf]
        %v2039 = vld [vmem:[%s5 + $0x8] sm:$0xf]
        %v2040 = vld [vmem:[%s5 + $0xc] sm:$0xf]
        %v2041 = vld [vmem:[%s6] sm:$0x1]
        %v2043 = vlaneseq
        %v2044 = vshrl.u32 %v2043, 7
        %v2045 = vsub.s32 0, %v2044
        %v2046 = vrot.slane %v2041, %v2045
        %v2052 = vunpack.c.l.b16 %v2037
        %v2053 = vunpack.c.l.b16 %v2038
        %v2054 = vunpack.c.l.b16 %v2039
        %v2055 = vunpack.c.l.b16 %v2040
        %v2056 = vpack.c.b16 %v2053, %v2052
        %v2057 = vpack.c.b16 %v2055, %v2054
        %v2061 = vsel %vm1427, %v2019, 0
        %v2064 = vsel %vm1427, %v2020, 0
        %v2067 = vsel %vm1427, %v2021, 0
        %v2070 = vsel %vm1427, %v2022, 0
        %v2073 = vsel %vm1427, %v2023, 0
        %v2076 = vsel %vm1427, %v2024, 0
        %v2079 = vsel %vm1427, %v2025, 0
        %v2082 = vsel %vm1427, %v2026, 0
        %v2085 = vsel %vm1427, %v2027, 0
        %v2088 = vsel %vm1427, %v2028, 0
        %v2091 = vsel %vm1427, %v2029, 0
        %v2094 = vsel %vm1427, %v2030, 0
        %v2097 = vsel %vm1427, %v2031, 0
        %v2100 = vsel %vm1427, %v2032, 0
        %v2103 = vsel %vm1427, %v2033, 0
        %v2106 = vsel %vm1427, %v2034, 0
        %v2109 = vsel %vm1427, %v2035, 0
        %v2112 = vsel %vm1427, %v2036, 0
        %2114 = vmatprep.subr.bf16.mxu0 0
        %2115 = vmatpush1.bf16.msra.mxu0 0
        %2116 = vmatprep.subr.bf16.mxu0 0
        %2117 = vmatpush1.bf16.msra.mxu0 0
        %2118 = vmatprep.subr.bf16.mxu0 0
        %2119 = vmatpush1.bf16.msra.mxu0 0
        %2120 = vmatprep.subr.bf16.mxu0 0
        %2121 = vmatpush1.bf16.msra.mxu0 0
        %2122 = vmatprep.subr.bf16.mxu0 0
        %2123 = vmatpush1.bf16.msra.mxu0 0
        %2124 = vmatprep.subr.bf16.mxu0 0
        %2125 = vmatpush1.bf16.msra.mxu0 0
        %2126 = vmatprep.subr.bf16.mxu0 0
        %2127 = vmatpush1.bf16.msra.mxu0 %v2057
        %2128 = vmatprep.subr.bf16.mxu0 0
        %2129 = vmatpush1.bf16.msra.mxu0 %v2056
        %2130 = vmatprep.subr.bf16.mxu0 0
        %2131 = vmatpush2.bf16.msra.mxu0 0
        %2132 = vmatprep.subr.bf16.mxu0 0
        %2133 = vmatpush2.bf16.msra.mxu0 0
        %2134 = vmatprep.subr.bf16.mxu0 0
        %2135 = vmatpush2.bf16.msra.mxu0 0
        %2136 = vmatprep.subr.bf16.mxu0 0
        %2137 = vmatpush2.bf16.msra.mxu0 0
        %2138 = vmatprep.subr.bf16.mxu0 0
        %2139 = vmatpush2.bf16.msra.mxu0 0
        %2140 = vmatprep.subr.bf16.mxu0 0
        %2141 = vmatpush2.bf16.msra.mxu0 0
        %2142 = vmatprep.subr.bf16.mxu0 0
        %2143 = vmatpush2.bf16.msra.mxu0 0
        %2144 = vmatprep.subr.bf16.mxu0 0
        %2145 = vmatpush2.bf16.msra.mxu0 0
        %2146 = vmatprep.mubr.bf16.mxu0 0
        %2147 = vmatmul.mubr.bf16.gmra.mxu0 %v2061
        %v2148 = vpop.f32.mrf.mxu0
        %v2149 = vadd.f32 %v2046, %v2148
        %v2150 = vpop.f32.mrf.mxu0
        %v2151 = vpop.f32.mrf.mxu0
        %v2152 = vadd.f32 %v2046, %v2151
        %v2153 = vpop.f32.mrf.mxu0
        %2154 = vmatprep.mubr.bf16.mxu0 0
        %2155 = vmatmul.mubr.bf16.gmra.mxu0 %v2064
        %v2156 = vpop.f32.mrf.mxu0
        %v2157 = vadd.f32 %v2046, %v2156
        %v2158 = vpop.f32.mrf.mxu0
        %v2159 = vpop.f32.mrf.mxu0
        %v2160 = vadd.f32 %v2046, %v2159
        %v2161 = vpop.f32.mrf.mxu0
        %2162 = vmatprep.mubr.bf16.mxu0 0
        %2163 = vmatmul.mubr.bf16.gmra.mxu0 %v2067
        %v2164 = vpop.f32.mrf.mxu0
        %v2165 = vadd.f32 %v2046, %v2164
        %v2166 = vpop.f32.mrf.mxu0
        %v2167 = vpop.f32.mrf.mxu0
        %v2168 = vadd.f32 %v2046, %v2167
        %v2169 = vpop.f32.mrf.mxu0
        %2170 = vmatprep.mubr.bf16.mxu0 0
        %2171 = vmatmul.mubr.bf16.gmra.mxu0 %v2070
        %v2172 = vpop.f32.mrf.mxu0
        %v2173 = vadd.f32 %v2046, %v2172
        %v2174 = vpop.f32.mrf.mxu0
        %v2175 = vpop.f32.mrf.mxu0
        %v2176 = vadd.f32 %v2046, %v2175
        %v2177 = vpop.f32.mrf.mxu0
        %2178 = vmatprep.mubr.bf16.mxu0 0
        %2179 = vmatmul.mubr.bf16.gmra.mxu0 %v2073
        %v2180 = vpop.f32.mrf.mxu0
        %v2181 = vadd.f32 %v2046, %v2180
        %v2182 = vpop.f32.mrf.mxu0
        %v2183 = vpop.f32.mrf.mxu0
        %v2184 = vadd.f32 %v2046, %v2183
        %v2185 = vpop.f32.mrf.mxu0
        %2186 = vmatprep.mubr.bf16.mxu0 0
        %2187 = vmatmul.mubr.bf16.gmra.mxu0 %v2076
        %v2188 = vpop.f32.mrf.mxu0
        %v2189 = vadd.f32 %v2046, %v2188
        %v2190 = vpop.f32.mrf.mxu0
        %v2191 = vpop.f32.mrf.mxu0
        %v2192 = vadd.f32 %v2046, %v2191
        %v2193 = vpop.f32.mrf.mxu0
        %2194 = vmatprep.mubr.bf16.mxu0 0
        %2195 = vmatmul.mubr.bf16.gmra.mxu0 %v2079
        %v2196 = vpop.f32.mrf.mxu0
        %v2197 = vadd.f32 %v2046, %v2196
        %v2198 = vpop.f32.mrf.mxu0
        %v2199 = vpop.f32.mrf.mxu0
        %v2200 = vadd.f32 %v2046, %v2199
        %v2201 = vpop.f32.mrf.mxu0
        %2202 = vmatprep.mubr.bf16.mxu0 0
        %2203 = vmatmul.mubr.bf16.gmra.mxu0 %v2082
        %v2204 = vpop.f32.mrf.mxu0
        %v2205 = vadd.f32 %v2046, %v2204
        %v2206 = vpop.f32.mrf.mxu0
        %v2207 = vpop.f32.mrf.mxu0
        %v2208 = vadd.f32 %v2046, %v2207
        %v2209 = vpop.f32.mrf.mxu0
        %2210 = vmatprep.mubr.bf16.mxu0 0
        %2211 = vmatmul.mubr.bf16.gmra.mxu0 %v2085
        %v2212 = vpop.f32.mrf.mxu0
        %v2213 = vadd.f32 %v2046, %v2212
        %v2214 = vpop.f32.mrf.mxu0
        %v2215 = vpop.f32.mrf.mxu0
        %v2216 = vadd.f32 %v2046, %v2215
        %v2217 = vpop.f32.mrf.mxu0
        %2218 = vmatprep.mubr.bf16.mxu0 0
        %2219 = vmatmul.mubr.bf16.gmra.mxu0 %v2088
        %v2220 = vpop.f32.mrf.mxu0
        %v2221 = vadd.f32 %v2046, %v2220
        %v2222 = vpop.f32.mrf.mxu0
        %v2223 = vpop.f32.mrf.mxu0
        %v2224 = vadd.f32 %v2046, %v2223
        %v2225 = vpop.f32.mrf.mxu0
        %2226 = vmatprep.mubr.bf16.mxu0 0
        %2227 = vmatmul.mubr.bf16.gmra.mxu0 %v2091
        %v2228 = vpop.f32.mrf.mxu0
        %v2229 = vadd.f32 %v2046, %v2228
        %v2230 = vpop.f32.mrf.mxu0
        %v2231 = vpop.f32.mrf.mxu0
        %v2232 = vadd.f32 %v2046, %v2231
        %v2233 = vpop.f32.mrf.mxu0
        %2234 = vmatprep.mubr.bf16.mxu0 0
        %2235 = vmatmul.mubr.bf16.gmra.mxu0 %v2094
        %v2236 = vpop.f32.mrf.mxu0
        %v2237 = vadd.f32 %v2046, %v2236
        %v2238 = vpop.f32.mrf.mxu0
        %v2239 = vpop.f32.mrf.mxu0
        %v2240 = vadd.f32 %v2046, %v2239
        %v2241 = vpop.f32.mrf.mxu0
        %2242 = vmatprep.mubr.bf16.mxu0 0
        %2243 = vmatmul.mubr.bf16.gmra.mxu0 %v2097
        %v2244 = vpop.f32.mrf.mxu0
        %v2245 = vadd.f32 %v2046, %v2244
        %v2246 = vpop.f32.mrf.mxu0
        %v2247 = vpop.f32.mrf.mxu0
        %v2248 = vadd.f32 %v2046, %v2247
        %v2249 = vpop.f32.mrf.mxu0
        %2250 = vmatprep.mubr.bf16.mxu0 0
        %2251 = vmatmul.mubr.bf16.gmra.mxu0 %v2100
        %v2252 = vpop.f32.mrf.mxu0
        %v2253 = vadd.f32 %v2046, %v2252
        %v2254 = vpop.f32.mrf.mxu0
        %v2255 = vpop.f32.mrf.mxu0
        %v2256 = vadd.f32 %v2046, %v2255
        %v2257 = vpop.f32.mrf.mxu0
        %2258 = vmatprep.mubr.bf16.mxu0 0
        %2259 = vmatmul.mubr.bf16.gmra.mxu0 %v2103
        %v2260 = vpop.f32.mrf.mxu0
        %v2261 = vadd.f32 %v2046, %v2260
        %v2262 = vpop.f32.mrf.mxu0
        %v2263 = vpop.f32.mrf.mxu0
        %v2264 = vadd.f32 %v2046, %v2263
        %v2265 = vpop.f32.mrf.mxu0
        %2266 = vmatprep.mubr.bf16.mxu0 0
        %2267 = vmatmul.mubr.bf16.gmra.mxu0 %v2106
        %v2268 = vpop.f32.mrf.mxu0
        %v2269 = vadd.f32 %v2046, %v2268
        %v2270 = vpop.f32.mrf.mxu0
        %v2271 = vpop.f32.mrf.mxu0
        %v2272 = vadd.f32 %v2046, %v2271
        %v2273 = vpop.f32.mrf.mxu0
        %2274 = vmatprep.mubr.bf16.mxu0 0
        %2275 = vmatmul.mubr.bf16.gmra.mxu0 %v2109
        %v2276 = vpop.f32.mrf.mxu0
        %v2277 = vadd.f32 %v2046, %v2276
        %v2278 = vpop.f32.mrf.mxu0
        %v2279 = vpop.f32.mrf.mxu0
        %v2280 = vadd.f32 %v2046, %v2279
        %v2281 = vpop.f32.mrf.mxu0
        %2282 = vmatprep.mubr.bf16.mxu0 0
        %2283 = vmatmul.mubr.bf16.gmra.mxu0 %v2112
        %v2284 = vpop.f32.mrf.mxu0
        %v2285 = vadd.f32 %v2046, %v2284
        %v2286 = vpop.f32.mrf.mxu0
        %v2287 = vpop.f32.mrf.mxu0
        %v2288 = vadd.f32 %v2046, %v2287
        %v2289 = vpop.f32.mrf.mxu0
        %2290 = vdwg.mxu0
        %v2291 = vmul.f32 %v2149, %v2149
        %v2292 = vmul.f32 %v2152, %v2152
        %v2293 = vmul.f32 %v2157, %v2157
        %v2294 = vmul.f32 %v2160, %v2160
        %v2295 = vmul.f32 %v2165, %v2165
        %v2296 = vmul.f32 %v2168, %v2168
        %v2297 = vmul.f32 %v2173, %v2173
        %v2298 = vmul.f32 %v2176, %v2176
        %v2299 = vmul.f32 %v2181, %v2181
        %v2300 = vmul.f32 %v2184, %v2184
        %v2301 = vmul.f32 %v2189, %v2189
        %v2302 = vmul.f32 %v2192, %v2192
        %v2303 = vmul.f32 %v2197, %v2197
        %v2304 = vmul.f32 %v2200, %v2200
        %v2305 = vmul.f32 %v2205, %v2205
        %v2306 = vmul.f32 %v2208, %v2208
        %v2307 = vmul.f32 %v2213, %v2213
        %v2308 = vmul.f32 %v2216, %v2216
        %v2309 = vmul.f32 %v2221, %v2221
        %v2310 = vmul.f32 %v2224, %v2224
        %v2311 = vmul.f32 %v2229, %v2229
        %v2312 = vmul.f32 %v2232, %v2232
        %v2313 = vmul.f32 %v2237, %v2237
        %v2314 = vmul.f32 %v2240, %v2240
        %v2315 = vmul.f32 %v2245, %v2245
        %v2316 = vmul.f32 %v2248, %v2248
        %v2317 = vmul.f32 %v2253, %v2253
        %v2318 = vmul.f32 %v2256, %v2256
        %v2319 = vmul.f32 %v2261, %v2261
        %v2320 = vmul.f32 %v2264, %v2264
        %v2321 = vmul.f32 %v2269, %v2269
        %v2322 = vmul.f32 %v2272, %v2272
        %v2323 = vmul.f32 %v2277, %v2277
        %v2324 = vmul.f32 %v2280, %v2280
        %v2325 = vmul.f32 %v2285, %v2285
        %v2326 = vmul.f32 %v2288, %v2288
        %v2327 = vmul.f32 %v2291, %v2149
        %v2328 = vmul.f32 %v2292, %v2152
        %v2329 = vmul.f32 %v2293, %v2157
        %v2330 = vmul.f32 %v2294, %v2160
        %v2331 = vmul.f32 %v2295, %v2165
        %v2332 = vmul.f32 %v2296, %v2168
        %v2333 = vmul.f32 %v2297, %v2173
        %v2334 = vmul.f32 %v2298, %v2176
        %v2335 = vmul.f32 %v2299, %v2181
        %v2336 = vmul.f32 %v2300, %v2184
        %v2337 = vmul.f32 %v2301, %v2189
        %v2338 = vmul.f32 %v2302, %v2192
        %v2339 = vmul.f32 %v2303, %v2197
        %v2340 = vmul.f32 %v2304, %v2200
        %v2341 = vmul.f32 %v2305, %v2205
        %v2342 = vmul.f32 %v2306, %v2208
        %v2343 = vmul.f32 %v2307, %v2213
        %v2344 = vmul.f32 %v2308, %v2216
        %v2345 = vmul.f32 %v2309, %v2221
        %v2346 = vmul.f32 %v2310, %v2224
        %v2347 = vmul.f32 %v2311, %v2229
        %v2348 = vmul.f32 %v2312, %v2232
        %v2349 = vmul.f32 %v2313, %v2237
        %v2350 = vmul.f32 %v2314, %v2240
        %v2351 = vmul.f32 %v2315, %v2245
        %v2352 = vmul.f32 %v2316, %v2248
        %v2353 = vmul.f32 %v2317, %v2253
        %v2354 = vmul.f32 %v2318, %v2256
        %v2355 = vmul.f32 %v2319, %v2261
        %v2356 = vmul.f32 %v2320, %v2264
        %v2357 = vmul.f32 %v2321, %v2269
        %v2358 = vmul.f32 %v2322, %v2272
        %v2359 = vmul.f32 %v2323, %v2277
        %v2360 = vmul.f32 %v2324, %v2280
        %v2361 = vmul.f32 %v2325, %v2285
        %v2362 = vmul.f32 %v2326, %v2288
        %v2363 = vmul.f32 %v2327, 0.044715
        %v2364 = vmul.f32 %v2328, 0.044715
        %v2365 = vmul.f32 %v2329, 0.044715
        %v2366 = vmul.f32 %v2330, 0.044715
        %v2367 = vmul.f32 %v2331, 0.044715
        %v2368 = vmul.f32 %v2332, 0.044715
        %v2369 = vmul.f32 %v2333, 0.044715
        %v2370 = vmul.f32 %v2334, 0.044715
        %v2371 = vmul.f32 %v2335, 0.044715
        %v2372 = vmul.f32 %v2336, 0.044715
        %v2373 = vmul.f32 %v2337, 0.044715
        %v2374 = vmul.f32 %v2338, 0.044715
        %v2375 = vmul.f32 %v2339, 0.044715
        %v2376 = vmul.f32 %v2340, 0.044715
        %v2377 = vmul.f32 %v2341, 0.044715
        %v2378 = vmul.f32 %v2342, 0.044715
        %v2379 = vmul.f32 %v2343, 0.044715
        %v2380 = vmul.f32 %v2344, 0.044715
        %v2381 = vmul.f32 %v2345, 0.044715
        %v2382 = vmul.f32 %v2346, 0.044715
        %v2383 = vmul.f32 %v2347, 0.044715
        %v2384 = vmul.f32 %v2348, 0.044715
        %v2385 = vmul.f32 %v2349, 0.044715
        %v2386 = vmul.f32 %v2350, 0.044715
        %v2387 = vmul.f32 %v2351, 0.044715
        %v2388 = vmul.f32 %v2352, 0.044715
        %v2389 = vmul.f32 %v2353, 0.044715
        %v2390 = vmul.f32 %v2354, 0.044715
        %v2391 = vmul.f32 %v2355, 0.044715
        %v2392 = vmul.f32 %v2356, 0.044715
        %v2393 = vmul.f32 %v2357, 0.044715
        %v2394 = vmul.f32 %v2358, 0.044715
        %v2395 = vmul.f32 %v2359, 0.044715
        %v2396 = vmul.f32 %v2360, 0.044715
        %v2397 = vmul.f32 %v2361, 0.044715
        %v2398 = vmul.f32 %v2362, 0.044715
        %v2399 = vadd.f32 %v2149, %v2363
        %v2400 = vadd.f32 %v2152, %v2364
        %v2401 = vadd.f32 %v2157, %v2365
        %v2402 = vadd.f32 %v2160, %v2366
        %v2403 = vadd.f32 %v2165, %v2367
        %v2404 = vadd.f32 %v2168, %v2368
        %v2405 = vadd.f32 %v2173, %v2369
        %v2406 = vadd.f32 %v2176, %v2370
        %v2407 = vadd.f32 %v2181, %v2371
        %v2408 = vadd.f32 %v2184, %v2372
        %v2409 = vadd.f32 %v2189, %v2373
        %v2410 = vadd.f32 %v2192, %v2374
        %v2411 = vadd.f32 %v2197, %v2375
        %v2412 = vadd.f32 %v2200, %v2376
        %v2413 = vadd.f32 %v2205, %v2377
        %v2414 = vadd.f32 %v2208, %v2378
        %v2415 = vadd.f32 %v2213, %v2379
        %v2416 = vadd.f32 %v2216, %v2380
        %v2417 = vadd.f32 %v2221, %v2381
        %v2418 = vadd.f32 %v2224, %v2382
        %v2419 = vadd.f32 %v2229, %v2383
        %v2420 = vadd.f32 %v2232, %v2384
        %v2421 = vadd.f32 %v2237, %v2385
        %v2422 = vadd.f32 %v2240, %v2386
        %v2423 = vadd.f32 %v2245, %v2387
        %v2424 = vadd.f32 %v2248, %v2388
        %v2425 = vadd.f32 %v2253, %v2389
        %v2426 = vadd.f32 %v2256, %v2390
        %v2427 = vadd.f32 %v2261, %v2391
        %v2428 = vadd.f32 %v2264, %v2392
        %v2429 = vadd.f32 %v2269, %v2393
        %v2430 = vadd.f32 %v2272, %v2394
        %v2431 = vadd.f32 %v2277, %v2395
        %v2432 = vadd.f32 %v2280, %v2396
        %v2433 = vadd.f32 %v2285, %v2397
        %v2434 = vadd.f32 %v2288, %v2398
        %v2435 = vmul.f32 %v2399, 0.7978846
        %v2436 = vmul.f32 %v2400, 0.7978846
        %v2437 = vmul.f32 %v2401, 0.7978846
        %v2438 = vmul.f32 %v2402, 0.7978846
        %v2439 = vmul.f32 %v2403, 0.7978846
        %v2440 = vmul.f32 %v2404, 0.7978846
        %v2441 = vmul.f32 %v2405, 0.7978846
        %v2442 = vmul.f32 %v2406, 0.7978846
        %v2443 = vmul.f32 %v2407, 0.7978846
        %v2444 = vmul.f32 %v2408, 0.7978846
        %v2445 = vmul.f32 %v2409, 0.7978846
        %v2446 = vmul.f32 %v2410, 0.7978846
        %v2447 = vmul.f32 %v2411, 0.7978846
        %v2448 = vmul.f32 %v2412, 0.7978846
        %v2449 = vmul.f32 %v2413, 0.7978846
        %v2450 = vmul.f32 %v2414, 0.7978846
        %v2451 = vmul.f32 %v2415, 0.7978846
        %v2452 = vmul.f32 %v2416, 0.7978846
        %v2453 = vmul.f32 %v2417, 0.7978846
        %v2454 = vmul.f32 %v2418, 0.7978846
        %v2455 = vmul.f32 %v2419, 0.7978846
        %v2456 = vmul.f32 %v2420, 0.7978846
        %v2457 = vmul.f32 %v2421, 0.7978846
        %v2458 = vmul.f32 %v2422, 0.7978846
        %v2459 = vmul.f32 %v2423, 0.7978846
        %v2460 = vmul.f32 %v2424, 0.7978846
        %v2461 = vmul.f32 %v2425, 0.7978846
        %v2462 = vmul.f32 %v2426, 0.7978846
        %v2463 = vmul.f32 %v2427, 0.7978846
        %v2464 = vmul.f32 %v2428, 0.7978846
        %v2465 = vmul.f32 %v2429, 0.7978846
        %v2466 = vmul.f32 %v2430, 0.7978846
        %v2467 = vmul.f32 %v2431, 0.7978846
        %v2468 = vmul.f32 %v2432, 0.7978846
        %v2469 = vmul.f32 %v2433, 0.7978846
        %v2470 = vmul.f32 %v2434, 0.7978846
        %v2471 = vmul.f32 %v2149, 0.5
        %v2472 = vmul.f32 %v2152, 0.5
        %v2473 = vmul.f32 %v2157, 0.5
        %v2474 = vmul.f32 %v2160, 0.5
        %v2475 = vmul.f32 %v2165, 0.5
        %v2476 = vmul.f32 %v2168, 0.5
        %v2477 = vmul.f32 %v2173, 0.5
        %v2478 = vmul.f32 %v2176, 0.5
        %v2479 = vmul.f32 %v2181, 0.5
        %v2480 = vmul.f32 %v2184, 0.5
        %v2481 = vmul.f32 %v2189, 0.5
        %v2482 = vmul.f32 %v2192, 0.5
        %v2483 = vmul.f32 %v2197, 0.5
        %v2484 = vmul.f32 %v2200, 0.5
        %v2485 = vmul.f32 %v2205, 0.5
        %v2486 = vmul.f32 %v2208, 0.5
        %v2487 = vmul.f32 %v2213, 0.5
        %v2488 = vmul.f32 %v2216, 0.5
        %v2489 = vmul.f32 %v2221, 0.5
        %v2490 = vmul.f32 %v2224, 0.5
        %v2491 = vmul.f32 %v2229, 0.5
        %v2492 = vmul.f32 %v2232, 0.5
        %v2493 = vmul.f32 %v2237, 0.5
        %v2494 = vmul.f32 %v2240, 0.5
        %v2495 = vmul.f32 %v2245, 0.5
        %v2496 = vmul.f32 %v2248, 0.5
        %v2497 = vmul.f32 %v2253, 0.5
        %v2498 = vmul.f32 %v2256, 0.5
        %v2499 = vmul.f32 %v2261, 0.5
        %v2500 = vmul.f32 %v2264, 0.5
        %v2501 = vmul.f32 %v2269, 0.5
        %v2502 = vmul.f32 %v2272, 0.5
        %v2503 = vmul.f32 %v2277, 0.5
        %v2504 = vmul.f32 %v2280, 0.5
        %v2505 = vmul.f32 %v2285, 0.5
        %v2506 = vmul.f32 %v2288, 0.5
        %v2507 = vtanh.pop %v2435
        %v2508 = vtanh.pop %v2436
        %v2509 = vtanh.pop %v2437
        %v2510 = vtanh.pop %v2438
        %v2511 = vtanh.pop %v2439
        %v2512 = vtanh.pop %v2440
        %v2513 = vtanh.pop %v2441
        %v2514 = vtanh.pop %v2442
        %v2515 = vtanh.pop %v2443
        %v2516 = vtanh.pop %v2444
        %v2517 = vtanh.pop %v2445
        %v2518 = vtanh.pop %v2446
        %v2519 = vtanh.pop %v2447
        %v2520 = vtanh.pop %v2448
        %v2521 = vtanh.pop %v2449
        %v2522 = vtanh.pop %v2450
        %v2523 = vtanh.pop %v2451
        %v2524 = vtanh.pop %v2452
        %v2525 = vtanh.pop %v2453
        %v2526 = vtanh.pop %v2454
        %v2527 = vtanh.pop %v2455
        %v2528 = vtanh.pop %v2456
        %v2529 = vtanh.pop %v2457
        %v2530 = vtanh.pop %v2458
        %v2531 = vtanh.pop %v2459
        %v2532 = vtanh.pop %v2460
        %v2533 = vtanh.pop %v2461
        %v2534 = vtanh.pop %v2462
        %v2535 = vtanh.pop %v2463
        %v2536 = vtanh.pop %v2464
        %v2537 = vtanh.pop %v2465
        %v2538 = vtanh.pop %v2466
        %v2539 = vtanh.pop %v2467
        %v2540 = vtanh.pop %v2468
        %v2541 = vtanh.pop %v2469
        %v2542 = vtanh.pop %v2470
        %v2543 = vadd.f32 %v2507, 1.0
        %v2544 = vadd.f32 %v2508, 1.0
        %v2545 = vadd.f32 %v2509, 1.0
        %v2546 = vadd.f32 %v2510, 1.0
        %v2547 = vadd.f32 %v2511, 1.0
        %v2548 = vadd.f32 %v2512, 1.0
        %v2549 = vadd.f32 %v2513, 1.0
        %v2550 = vadd.f32 %v2514, 1.0
        %v2551 = vadd.f32 %v2515, 1.0
        %v2552 = vadd.f32 %v2516, 1.0
        %v2553 = vadd.f32 %v2517, 1.0
        %v2554 = vadd.f32 %v2518, 1.0
        %v2555 = vadd.f32 %v2519, 1.0
        %v2556 = vadd.f32 %v2520, 1.0
        %v2557 = vadd.f32 %v2521, 1.0
        %v2558 = vadd.f32 %v2522, 1.0
        %v2559 = vadd.f32 %v2523, 1.0
        %v2560 = vadd.f32 %v2524, 1.0
        %v2561 = vadd.f32 %v2525, 1.0
        %v2562 = vadd.f32 %v2526, 1.0
        %v2563 = vadd.f32 %v2527, 1.0
        %v2564 = vadd.f32 %v2528, 1.0
        %v2565 = vadd.f32 %v2529, 1.0
        %v2566 = vadd.f32 %v2530, 1.0
        %v2567 = vadd.f32 %v2531, 1.0
        %v2568 = vadd.f32 %v2532, 1.0
        %v2569 = vadd.f32 %v2533, 1.0
        %v2570 = vadd.f32 %v2534, 1.0
        %v2571 = vadd.f32 %v2535, 1.0
        %v2572 = vadd.f32 %v2536, 1.0
        %v2573 = vadd.f32 %v2537, 1.0
        %v2574 = vadd.f32 %v2538, 1.0
        %v2575 = vadd.f32 %v2539, 1.0
        %v2576 = vadd.f32 %v2540, 1.0
        %v2577 = vadd.f32 %v2541, 1.0
        %v2578 = vadd.f32 %v2542, 1.0
        %v2579 = vmul.f32 %v2471, %v2543
        %v2580 = vmul.f32 %v2472, %v2544
        %v2581 = vmul.f32 %v2473, %v2545
        %v2582 = vmul.f32 %v2474, %v2546
        %v2583 = vmul.f32 %v2475, %v2547
        %v2584 = vmul.f32 %v2476, %v2548
        %v2585 = vmul.f32 %v2477, %v2549
        %v2586 = vmul.f32 %v2478, %v2550
        %v2587 = vmul.f32 %v2479, %v2551
        %v2588 = vmul.f32 %v2480, %v2552
        %v2589 = vmul.f32 %v2481, %v2553
        %v2590 = vmul.f32 %v2482, %v2554
        %v2591 = vmul.f32 %v2483, %v2555
        %v2592 = vmul.f32 %v2484, %v2556
        %v2593 = vmul.f32 %v2485, %v2557
        %v2594 = vmul.f32 %v2486, %v2558
        %v2595 = vmul.f32 %v2487, %v2559
        %v2596 = vmul.f32 %v2488, %v2560
        %v2597 = vmul.f32 %v2489, %v2561
        %v2598 = vmul.f32 %v2490, %v2562
        %v2599 = vmul.f32 %v2491, %v2563
        %v2600 = vmul.f32 %v2492, %v2564
        %v2601 = vmul.f32 %v2493, %v2565
        %v2602 = vmul.f32 %v2494, %v2566
        %v2603 = vmul.f32 %v2495, %v2567
        %v2604 = vmul.f32 %v2496, %v2568
        %v2605 = vmul.f32 %v2497, %v2569
        %v2606 = vmul.f32 %v2498, %v2570
        %v2607 = vmul.f32 %v2499, %v2571
        %v2608 = vmul.f32 %v2500, %v2572
        %v2609 = vmul.f32 %v2501, %v2573
        %v2610 = vmul.f32 %v2502, %v2574
        %v2611 = vmul.f32 %v2503, %v2575
        %v2612 = vmul.f32 %v2504, %v2576
        %v2613 = vmul.f32 %v2505, %v2577
        %v2614 = vmul.f32 %v2506, %v2578
        %v2615 = vpack.c.bf16 %v2580, %v2579
        %v2616 = vpack.c.bf16 %v2582, %v2581
        %v2617 = vpack.c.bf16 %v2584, %v2583
        %v2618 = vpack.c.bf16 %v2586, %v2585
        %v2619 = vpack.c.bf16 %v2588, %v2587
        %v2620 = vpack.c.bf16 %v2590, %v2589
        %v2621 = vpack.c.bf16 %v2592, %v2591
        %v2622 = vpack.c.bf16 %v2594, %v2593
        %v2623 = vpack.c.bf16 %v2596, %v2595
        %v2624 = vpack.c.bf16 %v2598, %v2597
        %v2625 = vpack.c.bf16 %v2600, %v2599
        %v2626 = vpack.c.bf16 %v2602, %v2601
        %v2627 = vpack.c.bf16 %v2604, %v2603
        %v2628 = vpack.c.bf16 %v2606, %v2605
        %v2629 = vpack.c.bf16 %v2608, %v2607
        %v2630 = vpack.c.bf16 %v2610, %v2609
        %v2631 = vpack.c.bf16 %v2612, %v2611
        %v2632 = vpack.c.bf16 %v2614, %v2613
        %v2651 = vunpack.c.l.b16 %v2615
        %v2652 = vunpack.c.h.b16 %v2615
        %v2653 = vunpack.c.l.b16 %v2616
        %v2654 = vunpack.c.h.b16 %v2616
        %v2655 = vunpack.c.l.b16 %v2617
        %v2656 = vunpack.c.h.b16 %v2617
        %v2657 = vunpack.c.l.b16 %v2618
        %v2658 = vunpack.c.h.b16 %v2618
        %v2659 = vunpack.c.l.b16 %v2619
        %v2660 = vunpack.c.h.b16 %v2619
        %v2661 = vunpack.c.l.b16 %v2620
        %v2662 = vunpack.c.h.b16 %v2620
        %v2663 = vunpack.c.l.b16 %v2621
        %v2664 = vunpack.c.h.b16 %v2621
        %v2665 = vunpack.c.l.b16 %v2622
        %v2666 = vunpack.c.h.b16 %v2622
        %v2667 = vunpack.c.l.b16 %v2623
        %v2668 = vunpack.c.h.b16 %v2623
        %v2669 = vunpack.c.l.b16 %v2624
        %v2670 = vunpack.c.h.b16 %v2624
        %v2671 = vunpack.c.l.b16 %v2625
        %v2672 = vunpack.c.h.b16 %v2625
        %v2673 = vunpack.c.l.b16 %v2626
        %v2674 = vunpack.c.h.b16 %v2626
        %v2675 = vunpack.c.l.b16 %v2627
        %v2676 = vunpack.c.h.b16 %v2627
        %v2677 = vunpack.c.l.b16 %v2628
        %v2678 = vunpack.c.h.b16 %v2628
        %v2679 = vunpack.c.l.b16 %v2629
        %v2680 = vunpack.c.h.b16 %v2629
        %v2681 = vunpack.c.l.b16 %v2630
        %v2682 = vunpack.c.h.b16 %v2630
        %v2683 = vunpack.c.l.b16 %v2631
        %v2684 = vunpack.c.h.b16 %v2631
        %v2685 = vunpack.c.l.b16 %v2632
        %v2686 = vunpack.c.h.b16 %v2632
        %v2687 = vpack.c.b16 %v2651, %v2651
        %v2688 = vpack.c.b16 %v2652, %v2652
        %v2689 = vpack.c.b16 %v2653, %v2653
        %v2690 = vpack.c.b16 %v2654, %v2654
        %v2691 = vpack.c.b16 %v2655, %v2655
        %v2692 = vpack.c.b16 %v2656, %v2656
        %v2693 = vpack.c.b16 %v2657, %v2657
        %v2694 = vpack.c.b16 %v2658, %v2658
        %v2695 = vpack.c.b16 %v2659, %v2659
        %v2696 = vpack.c.b16 %v2660, %v2660
        %v2697 = vpack.c.b16 %v2661, %v2661
        %v2698 = vpack.c.b16 %v2662, %v2662
        %v2699 = vpack.c.b16 %v2663, %v2663
        %v2700 = vpack.c.b16 %v2664, %v2664
        %v2701 = vpack.c.b16 %v2665, %v2665
        %v2702 = vpack.c.b16 %v2666, %v2666
        %v2703 = vpack.c.b16 %v2667, %v2667
        %v2704 = vpack.c.b16 %v2668, %v2668
        %v2705 = vpack.c.b16 %v2669, %v2669
        %v2706 = vpack.c.b16 %v2670, %v2670
        %v2707 = vpack.c.b16 %v2671, %v2671
        %v2708 = vpack.c.b16 %v2672, %v2672
        %v2709 = vpack.c.b16 %v2673, %v2673
        %v2710 = vpack.c.b16 %v2674, %v2674
        %v2711 = vpack.c.b16 %v2675, %v2675
        %v2712 = vpack.c.b16 %v2676, %v2676
        %v2713 = vpack.c.b16 %v2677, %v2677
        %v2714 = vpack.c.b16 %v2678, %v2678
        %v2715 = vpack.c.b16 %v2679, %v2679
        %v2716 = vpack.c.b16 %v2680, %v2680
        %v2717 = vpack.c.b16 %v2681, %v2681
        %v2718 = vpack.c.b16 %v2682, %v2682
        %v2719 = vpack.c.b16 %v2683, %v2683
        %v2720 = vpack.c.b16 %v2684, %v2684
        %v2721 = vpack.c.b16 %v2685, %v2685
        %v2722 = vpack.c.b16 %v2686, %v2686
        %vm2723 = vsmask.f32 256
        %vm2724 = vsmask.f32 4368
        %vm2725 = vmor %vm2723, %vm2724
        %v2727 = vshrl.u32 %v2687, 16
        %v2729 = vrot.slane %v2727, 7
        %v2730 = vshll.u32 %v2687, 16
        %v2732 = vor.u32 %v2729, %v2730
        %v2733 = vrot.slane %v2729, 4
        %v2735 = vshrl.u32 %v2688, 16
        %v2737 = vrot.slane %v2735, 7
        %v2738 = vshll.u32 %v2688, 16
        %v2740 = vor.u32 %v2737, %v2738
        %v2741 = vsel %vm2725, %v2733, %v2740
        %v2742 = vrot.slane %v2737, 4
        %v2744 = vshrl.u32 %v2689, 16
        %v2746 = vrot.slane %v2744, 7
        %v2747 = vshll.u32 %v2689, 16
        %v2749 = vor.u32 %v2746, %v2747
        %v2750 = vrot.slane %v2746, 4
        %v2752 = vshrl.u32 %v2690, 16
        %v2754 = vrot.slane %v2752, 7
        %v2755 = vshll.u32 %v2690, 16
        %v2757 = vor.u32 %v2754, %v2755
        %v2758 = vsel %vm2725, %v2750, %v2757
        %v2759 = vrot.slane %v2754, 4
        %v2761 = vshrl.u32 %v2691, 16
        %v2763 = vrot.slane %v2761, 7
        %v2764 = vshll.u32 %v2691, 16
        %v2766 = vor.u32 %v2763, %v2764
        %v2767 = vrot.slane %v2763, 4
        %v2769 = vshrl.u32 %v2692, 16
        %v2771 = vrot.slane %v2769, 7
        %v2772 = vshll.u32 %v2692, 16
        %v2774 = vor.u32 %v2771, %v2772
        %v2775 = vsel %vm2725, %v2767, %v2774
        %v2776 = vrot.slane %v2771, 4
        %v2778 = vshrl.u32 %v2693, 16
        %v2780 = vrot.slane %v2778, 7
        %v2781 = vshll.u32 %v2693, 16
        %v2783 = vor.u32 %v2780, %v2781
        %v2784 = vrot.slane %v2780, 4
        %v2786 = vshrl.u32 %v2694, 16
        %v2788 = vrot.slane %v2786, 7
        %v2789 = vshll.u32 %v2694, 16
        %v2791 = vor.u32 %v2788, %v2789
        %v2792 = vsel %vm2725, %v2784, %v2791
        %v2793 = vrot.slane %v2788, 4
        %v2795 = vshrl.u32 %v2695, 16
        %v2797 = vrot.slane %v2795, 7
        %v2798 = vshll.u32 %v2695, 16
        %v2800 = vor.u32 %v2797, %v2798
        %v2801 = vrot.slane %v2797, 4
        %v2803 = vshrl.u32 %v2696, 16
        %v2805 = vrot.slane %v2803, 7
        %v2806 = vshll.u32 %v2696, 16
        %v2808 = vor.u32 %v2805, %v2806
        %v2809 = vsel %vm2725, %v2801, %v2808
        %v2810 = vrot.slane %v2805, 4
        %v2812 = vshrl.u32 %v2697, 16
        %v2814 = vrot.slane %v2812, 7
        %v2815 = vshll.u32 %v2697, 16
        %v2817 = vor.u32 %v2814, %v2815
        %v2818 = vrot.slane %v2814, 4
        %v2820 = vshrl.u32 %v2698, 16
        %v2822 = vrot.slane %v2820, 7
        %v2823 = vshll.u32 %v2698, 16
        %v2825 = vor.u32 %v2822, %v2823
        %v2826 = vsel %vm2725, %v2818, %v2825
        %v2827 = vrot.slane %v2822, 4
        %v2829 = vshrl.u32 %v2699, 16
        %v2831 = vrot.slane %v2829, 7
        %v2832 = vshll.u32 %v2699, 16
        %v2834 = vor.u32 %v2831, %v2832
        %v2835 = vrot.slane %v2831, 4
        %v2837 = vshrl.u32 %v2700, 16
        %v2839 = vrot.slane %v2837, 7
        %v2840 = vshll.u32 %v2700, 16
        %v2842 = vor.u32 %v2839, %v2840
        %v2843 = vsel %vm2725, %v2835, %v2842
        %v2844 = vrot.slane %v2839, 4
        %v2846 = vshrl.u32 %v2701, 16
        %v2848 = vrot.slane %v2846, 7
        %v2849 = vshll.u32 %v2701, 16
        %v2851 = vor.u32 %v2848, %v2849
        %v2852 = vrot.slane %v2848, 4
        %v2854 = vshrl.u32 %v2702, 16
        %v2856 = vrot.slane %v2854, 7
        %v2857 = vshll.u32 %v2702, 16
        %v2859 = vor.u32 %v2856, %v2857
        %v2860 = vsel %vm2725, %v2852, %v2859
        %v2861 = vrot.slane %v2856, 4
        %v2863 = vshrl.u32 %v2703, 16
        %v2865 = vrot.slane %v2863, 7
        %v2866 = vshll.u32 %v2703, 16
        %v2868 = vor.u32 %v2865, %v2866
        %v2869 = vrot.slane %v2865, 4
        %v2871 = vshrl.u32 %v2704, 16
        %v2873 = vrot.slane %v2871, 7
        %v2874 = vshll.u32 %v2704, 16
        %v2876 = vor.u32 %v2873, %v2874
        %v2877 = vsel %vm2725, %v2869, %v2876
        %v2878 = vrot.slane %v2873, 4
        %v2880 = vshrl.u32 %v2705, 16
        %v2882 = vrot.slane %v2880, 7
        %v2883 = vshll.u32 %v2705, 16
        %v2885 = vor.u32 %v2882, %v2883
        %v2886 = vrot.slane %v2882, 4
        %v2888 = vshrl.u32 %v2706, 16
        %v2890 = vrot.slane %v2888, 7
        %v2891 = vshll.u32 %v2706, 16
        %v2893 = vor.u32 %v2890, %v2891
        %v2894 = vsel %vm2725, %v2886, %v2893
        %v2895 = vrot.slane %v2890, 4
        %v2897 = vshrl.u32 %v2707, 16
        %v2899 = vrot.slane %v2897, 7
        %v2900 = vshll.u32 %v2707, 16
        %v2902 = vor.u32 %v2899, %v2900
        %v2903 = vrot.slane %v2899, 4
        %v2905 = vshrl.u32 %v2708, 16
        %v2907 = vrot.slane %v2905, 7
        %v2908 = vshll.u32 %v2708, 16
        %v2910 = vor.u32 %v2907, %v2908
        %v2911 = vsel %vm2725, %v2903, %v2910
        %v2912 = vrot.slane %v2907, 4
        %v2914 = vshrl.u32 %v2709, 16
        %v2916 = vrot.slane %v2914, 7
        %v2917 = vshll.u32 %v2709, 16
        %v2919 = vor.u32 %v2916, %v2917
        %v2920 = vrot.slane %v2916, 4
        %v2922 = vshrl.u32 %v2710, 16
        %v2924 = vrot.slane %v2922, 7
        %v2925 = vshll.u32 %v2710, 16
        %v2927 = vor.u32 %v2924, %v2925
        %v2928 = vsel %vm2725, %v2920, %v2927
        %v2929 = vrot.slane %v2924, 4
        %v2931 = vshrl.u32 %v2711, 16
        %v2933 = vrot.slane %v2931, 7
        %v2934 = vshll.u32 %v2711, 16
        %v2936 = vor.u32 %v2933, %v2934
        %v2937 = vrot.slane %v2933, 4
        %v2939 = vshrl.u32 %v2712, 16
        %v2941 = vrot.slane %v2939, 7
        %v2942 = vshll.u32 %v2712, 16
        %v2944 = vor.u32 %v2941, %v2942
        %v2945 = vsel %vm2725, %v2937, %v2944
        %v2946 = vrot.slane %v2941, 4
        %v2948 = vshrl.u32 %v2713, 16
        %v2950 = vrot.slane %v2948, 7
        %v2951 = vshll.u32 %v2713, 16
        %v2953 = vor.u32 %v2950, %v2951
        %v2954 = vrot.slane %v2950, 4
        %v2956 = vshrl.u32 %v2714, 16
        %v2958 = vrot.slane %v2956, 7
        %v2959 = vshll.u32 %v2714, 16
        %v2961 = vor.u32 %v2958, %v2959
        %v2962 = vsel %vm2725, %v2954, %v2961
        %v2963 = vrot.slane %v2958, 4
        %v2965 = vshrl.u32 %v2715, 16
        %v2967 = vrot.slane %v2965, 7
        %v2968 = vshll.u32 %v2715, 16
        %v2970 = vor.u32 %v2967, %v2968
        %v2971 = vrot.slane %v2967, 4
        %v2973 = vshrl.u32 %v2716, 16
        %v2975 = vrot.slane %v2973, 7
        %v2976 = vshll.u32 %v2716, 16
        %v2978 = vor.u32 %v2975, %v2976
        %v2979 = vsel %vm2725, %v2971, %v2978
        %v2980 = vrot.slane %v2975, 4
        %v2982 = vshrl.u32 %v2717, 16
        %v2984 = vrot.slane %v2982, 7
        %v2985 = vshll.u32 %v2717, 16
        %v2987 = vor.u32 %v2984, %v2985
        %v2988 = vrot.slane %v2984, 4
        %v2990 = vshrl.u32 %v2718, 16
        %v2992 = vrot.slane %v2990, 7
        %v2993 = vshll.u32 %v2718, 16
        %v2995 = vor.u32 %v2992, %v2993
        %v2996 = vsel %vm2725, %v2988, %v2995
        %v2997 = vrot.slane %v2992, 4
        %v2999 = vshrl.u32 %v2719, 16
        %v3001 = vrot.slane %v2999, 7
        %v3002 = vshll.u32 %v2719, 16
        %v3004 = vor.u32 %v3001, %v3002
        %v3005 = vrot.slane %v3001, 4
        %v3007 = vshrl.u32 %v2720, 16
        %v3009 = vrot.slane %v3007, 7
        %v3010 = vshll.u32 %v2720, 16
        %v3012 = vor.u32 %v3009, %v3010
        %v3013 = vsel %vm2725, %v3005, %v3012
        %v3014 = vrot.slane %v3009, 4
        %v3016 = vshrl.u32 %v2721, 16
        %v3018 = vrot.slane %v3016, 7
        %v3019 = vshll.u32 %v2721, 16
        %v3021 = vor.u32 %v3018, %v3019
        %v3022 = vrot.slane %v3018, 4
        %v3024 = vshrl.u32 %v2722, 16
        %v3026 = vrot.slane %v3024, 7
        %v3027 = vshll.u32 %v2722, 16
        %v3029 = vor.u32 %v3026, %v3027
        %v3030 = vsel %vm2725, %v3022, %v3029
        %v3031 = vrot.slane %v3026, 4
        %vm3086 = vcmask 1043456
        %vm3087 = vsmask.f32 7938
        %vm3088 = vmand %vm3086, %vm3087
        %v3089 = vld [vmem:[#allocation2] sm:$0xf]
        %v3090 = vsel %vm3088, %v2732, %v3089
        %3091 = vst [vmem:[#allocation2] sm:$0xf] %v3090
        %3092 = vst [vmem:[#allocation2 + $0x4] sm:$0xf] %v2741
        %vm3093 = vcmask 1040384
        %vm3094 = vmand %vm3093, %vm2723
        %v3095 = vld [vmem:[#allocation2 + $0x8] sm:$0x1]
        %v3096 = vsel %vm3094, %v2742, %v3095
        %3097 = vst [vmem:[#allocation2 + $0x8] sm:$0x1] %v3096
        %v3098 = vld [vmem:[#allocation2 + $0xc] sm:$0xf]
        %v3099 = vsel %vm3088, %v2749, %v3098
        %3100 = vst [vmem:[#allocation2 + $0xc] sm:$0xf] %v3099
        %3101 = vst [vmem:[#allocation2 + $0x10] sm:$0xf] %v2758
        %v3102 = vld [vmem:[#allocation2 + $0x14] sm:$0x1]
        %v3103 = vsel %vm3094, %v2759, %v3102
        %3104 = vst [vmem:[#allocation2 + $0x14] sm:$0x1] %v3103
        %v3105 = vld [vmem:[#allocation2 + $0x18] sm:$0xf]
        %v3106 = vsel %vm3088, %v2766, %v3105
        %3107 = vst [vmem:[#allocation2 + $0x18] sm:$0xf] %v3106
        %3108 = vst [vmem:[#allocation2 + $0x1c] sm:$0xf] %v2775
        %v3109 = vld [vmem:[#allocation2 + $0x20] sm:$0x1]
        %v3110 = vsel %vm3094, %v2776, %v3109
        %3111 = vst [vmem:[#allocation2 + $0x20] sm:$0x1] %v3110
        %v3112 = vld [vmem:[#allocation2 + $0x24] sm:$0xf]
        %v3113 = vsel %vm3088, %v2783, %v3112
        %3114 = vst [vmem:[#allocation2 + $0x24] sm:$0xf] %v3113
        %3115 = vst [vmem:[#allocation2 + $0x28] sm:$0xf] %v2792
        %v3116 = vld [vmem:[#allocation2 + $0x2c] sm:$0x1]
        %v3117 = vsel %vm3094, %v2793, %v3116
        %3118 = vst [vmem:[#allocation2 + $0x2c] sm:$0x1] %v3117
        %v3119 = vld [vmem:[#allocation2 + $0x30] sm:$0xf]
        %v3120 = vsel %vm3088, %v2800, %v3119
        %3121 = vst [vmem:[#allocation2 + $0x30] sm:$0xf] %v3120
        %3122 = vst [vmem:[#allocation2 + $0x34] sm:$0xf] %v2809
        %v3123 = vld [vmem:[#allocation2 + $0x38] sm:$0x1]
        %v3124 = vsel %vm3094, %v2810, %v3123
        %3125 = vst [vmem:[#allocation2 + $0x38] sm:$0x1] %v3124
        %v3126 = vld [vmem:[#allocation2 + $0x3c] sm:$0xf]
        %v3127 = vsel %vm3088, %v2817, %v3126
        %3128 = vst [vmem:[#allocation2 + $0x3c] sm:$0xf] %v3127
        %3129 = vst [vmem:[#allocation2 + $0x40] sm:$0xf] %v2826
        %v3130 = vld [vmem:[#allocation2 + $0x44] sm:$0x1]
        %v3131 = vsel %vm3094, %v2827, %v3130
        %3132 = vst [vmem:[#allocation2 + $0x44] sm:$0x1] %v3131
        %v3133 = vld [vmem:[#allocation2 + $0x48] sm:$0xf]
        %v3134 = vsel %vm3088, %v2834, %v3133
        %3135 = vst [vmem:[#allocation2 + $0x48] sm:$0xf] %v3134
        %3136 = vst [vmem:[#allocation2 + $0x4c] sm:$0xf] %v2843
        %v3137 = vld [vmem:[#allocation2 + $0x50] sm:$0x1]
        %v3138 = vsel %vm3094, %v2844, %v3137
        %3139 = vst [vmem:[#allocation2 + $0x50] sm:$0x1] %v3138
        %v3140 = vld [vmem:[#allocation2 + $0x54] sm:$0xf]
        %v3141 = vsel %vm3088, %v2851, %v3140
        %3142 = vst [vmem:[#allocation2 + $0x54] sm:$0xf] %v3141
        %3143 = vst [vmem:[#allocation2 + $0x58] sm:$0xf] %v2860
        %v3144 = vld [vmem:[#allocation2 + $0x5c] sm:$0x1]
        %v3145 = vsel %vm3094, %v2861, %v3144
        %3146 = vst [vmem:[#allocation2 + $0x5c] sm:$0x1] %v3145
        %v3147 = vld [vmem:[#allocation2 + $0x60] sm:$0xf]
        %v3148 = vsel %vm3088, %v2868, %v3147
        %3149 = vst [vmem:[#allocation2 + $0x60] sm:$0xf] %v3148
        %3150 = vst [vmem:[#allocation2 + $0x64] sm:$0xf] %v2877
        %v3151 = vld [vmem:[#allocation2 + $0x68] sm:$0x1]
        %v3152 = vsel %vm3094, %v2878, %v3151
        %3153 = vst [vmem:[#allocation2 + $0x68] sm:$0x1] %v3152
        %v3154 = vld [vmem:[#allocation2 + $0x6c] sm:$0xf]
        %v3155 = vsel %vm3088, %v2885, %v3154
        %3156 = vst [vmem:[#allocation2 + $0x6c] sm:$0xf] %v3155
        %3157 = vst [vmem:[#allocation2 + $0x70] sm:$0xf] %v2894
        %v3158 = vld [vmem:[#allocation2 + $0x74] sm:$0x1]
        %v3159 = vsel %vm3094, %v2895, %v3158
        %3160 = vst [vmem:[#allocation2 + $0x74] sm:$0x1] %v3159
        %v3161 = vld [vmem:[#allocation2 + $0x78] sm:$0xf]
        %v3162 = vsel %vm3088, %v2902, %v3161
        %3163 = vst [vmem:[#allocation2 + $0x78] sm:$0xf] %v3162
        %3164 = vst [vmem:[#allocation2 + $0x7c] sm:$0xf] %v2911
        %v3165 = vld [vmem:[#allocation2 + $0x80] sm:$0x1]
        %v3166 = vsel %vm3094, %v2912, %v3165
        %3167 = vst [vmem:[#allocation2 + $0x80] sm:$0x1] %v3166
        %v3168 = vld [vmem:[#allocation2 + $0x84] sm:$0xf]
        %v3169 = vsel %vm3088, %v2919, %v3168
        %3170 = vst [vmem:[#allocation2 + $0x84] sm:$0xf] %v3169
        %3171 = vst [vmem:[#allocation2 + $0x88] sm:$0xf] %v2928
        %v3172 = vld [vmem:[#allocation2 + $0x8c] sm:$0x1]
        %v3173 = vsel %vm3094, %v2929, %v3172
        %3174 = vst [vmem:[#allocation2 + $0x8c] sm:$0x1] %v3173
        %v3175 = vld [vmem:[#allocation2 + $0x90] sm:$0xf]
        %v3176 = vsel %vm3088, %v2936, %v3175
        %3177 = vst [vmem:[#allocation2 + $0x90] sm:$0xf] %v3176
        %3178 = vst [vmem:[#allocation2 + $0x94] sm:$0xf] %v2945
        %v3179 = vld [vmem:[#allocation2 + $0x98] sm:$0x1]
        %v3180 = vsel %vm3094, %v2946, %v3179
        %3181 = vst [vmem:[#allocation2 + $0x98] sm:$0x1] %v3180
        %v3182 = vld [vmem:[#allocation2 + $0x9c] sm:$0xf]
        %v3183 = vsel %vm3088, %v2953, %v3182
        %3184 = vst [vmem:[#allocation2 + $0x9c] sm:$0xf] %v3183
        %3185 = vst [vmem:[#allocation2 + $0xa0] sm:$0xf] %v2962
        %v3186 = vld [vmem:[#allocation2 + $0xa4] sm:$0x1]
        %v3187 = vsel %vm3094, %v2963, %v3186
        %3188 = vst [vmem:[#allocation2 + $0xa4] sm:$0x1] %v3187
        %v3189 = vld [vmem:[#allocation2 + $0xa8] sm:$0xf]
        %v3190 = vsel %vm3088, %v2970, %v3189
        %3191 = vst [vmem:[#allocation2 + $0xa8] sm:$0xf] %v3190
        %3192 = vst [vmem:[#allocation2 + $0xac] sm:$0xf] %v2979
        %v3193 = vld [vmem:[#allocation2 + $0xb0] sm:$0x1]
        %v3194 = vsel %vm3094, %v2980, %v3193
        %3195 = vst [vmem:[#allocation2 + $0xb0] sm:$0x1] %v3194
        %v3196 = vld [vmem:[#allocation2 + $0xb4] sm:$0xf]
        %v3197 = vsel %vm3088, %v2987, %v3196
        %3198 = vst [vmem:[#allocation2 + $0xb4] sm:$0xf] %v3197
        %3199 = vst [vmem:[#allocation2 + $0xb8] sm:$0xf] %v2996
        %v3200 = vld [vmem:[#allocation2 + $0xbc] sm:$0x1]
        %v3201 = vsel %vm3094, %v2997, %v3200
        %3202 = vst [vmem:[#allocation2 + $0xbc] sm:$0x1] %v3201
        %v3203 = vld [vmem:[#allocation2 + $0xc0] sm:$0xf]
        %v3204 = vsel %vm3088, %v3004, %v3203
        %3205 = vst [vmem:[#allocation2 + $0xc0] sm:$0xf] %v3204
        %3206 = vst [vmem:[#allocation2 + $0xc4] sm:$0xf] %v3013
        %v3207 = vld [vmem:[#allocation2 + $0xc8] sm:$0x1]
        %v3208 = vsel %vm3094, %v3014, %v3207
        %3209 = vst [vmem:[#allocation2 + $0xc8] sm:$0x1] %v3208
        %v3210 = vld [vmem:[#allocation2 + $0xcc] sm:$0xf]
        %v3211 = vsel %vm3088, %v3021, %v3210
        %3212 = vst [vmem:[#allocation2 + $0xcc] sm:$0xf] %v3211
        %3213 = vst [vmem:[#allocation2 + $0xd0] sm:$0xf] %v3030
        %v3214 = vld [vmem:[#allocation2 + $0xd4] sm:$0x1]
        %v3215 = vsel %vm3094, %v3031, %v3214
        %3216 = vst [vmem:[#allocation2 + $0xd4] sm:$0x1] %v3215
        %v3217 = vld [vmem:[#allocation2] sm:$0x1]
        %v3218 = vsel %vm3094, 0, %v3217
        %3219 = vst [vmem:[#allocation2] sm:$0x1] %v3218
        %v3220 = vld [vmem:[#allocation2 + $0xc] sm:$0x1]
        %v3221 = vsel %vm3094, 0, %v3220
        %3222 = vst [vmem:[#allocation2 + $0xc] sm:$0x1] %v3221
        %v3223 = vld [vmem:[#allocation2 + $0x18] sm:$0x1]
        %v3224 = vsel %vm3094, 0, %v3223
        %3225 = vst [vmem:[#allocation2 + $0x18] sm:$0x1] %v3224
        %v3226 = vld [vmem:[#allocation2 + $0x24] sm:$0x1]
        %v3227 = vsel %vm3094, 0, %v3226
        %3228 = vst [vmem:[#allocation2 + $0x24] sm:$0x1] %v3227
        %v3229 = vld [vmem:[#allocation2 + $0x30] sm:$0x1]
        %v3230 = vsel %vm3094, 0, %v3229
        %3231 = vst [vmem:[#allocation2 + $0x30] sm:$0x1] %v3230
        %v3232 = vld [vmem:[#allocation2 + $0x3c] sm:$0x1]
        %v3233 = vsel %vm3094, 0, %v3232
        %3234 = vst [vmem:[#allocation2 + $0x3c] sm:$0x1] %v3233
        %v3235 = vld [vmem:[#allocation2 + $0x48] sm:$0x1]
        %v3236 = vsel %vm3094, 0, %v3235
        %3237 = vst [vmem:[#allocation2 + $0x48] sm:$0x1] %v3236
        %v3238 = vld [vmem:[#allocation2 + $0x54] sm:$0x1]
        %v3239 = vsel %vm3094, 0, %v3238
        %3240 = vst [vmem:[#allocation2 + $0x54] sm:$0x1] %v3239
        %v3241 = vld [vmem:[#allocation2 + $0x60] sm:$0x1]
        %v3242 = vsel %vm3094, 0, %v3241
        %3243 = vst [vmem:[#allocation2 + $0x60] sm:$0x1] %v3242
        %v3244 = vld [vmem:[#allocation2 + $0x6c] sm:$0x1]
        %v3245 = vsel %vm3094, 0, %v3244
        %3246 = vst [vmem:[#allocation2 + $0x6c] sm:$0x1] %v3245
        %v3247 = vld [vmem:[#allocation2 + $0x78] sm:$0x1]
        %v3248 = vsel %vm3094, 0, %v3247
        %3249 = vst [vmem:[#allocation2 + $0x78] sm:$0x1] %v3248
        %v3250 = vld [vmem:[#allocation2 + $0x84] sm:$0x1]
        %v3251 = vsel %vm3094, 0, %v3250
        %3252 = vst [vmem:[#allocation2 + $0x84] sm:$0x1] %v3251
        %v3253 = vld [vmem:[#allocation2 + $0x90] sm:$0x1]
        %v3254 = vsel %vm3094, 0, %v3253
        %3255 = vst [vmem:[#allocation2 + $0x90] sm:$0x1] %v3254
        %v3256 = vld [vmem:[#allocation2 + $0x9c] sm:$0x1]
        %v3257 = vsel %vm3094, 0, %v3256
        %3258 = vst [vmem:[#allocation2 + $0x9c] sm:$0x1] %v3257
        %v3259 = vld [vmem:[#allocation2 + $0xa8] sm:$0x1]
        %v3260 = vsel %vm3094, 0, %v3259
        %3261 = vst [vmem:[#allocation2 + $0xa8] sm:$0x1] %v3260
        %v3262 = vld [vmem:[#allocation2 + $0xb4] sm:$0x1]
        %v3263 = vsel %vm3094, 0, %v3262
        %3264 = vst [vmem:[#allocation2 + $0xb4] sm:$0x1] %v3263
        %v3265 = vld [vmem:[#allocation2 + $0xc0] sm:$0x1]
        %v3266 = vsel %vm3094, 0, %v3265
        %3267 = vst [vmem:[#allocation2 + $0xc0] sm:$0x1] %v3266
        %v3268 = vld [vmem:[#allocation2 + $0xcc] sm:$0x1]
        %v3269 = vsel %vm3094, 0, %v3268
        %3270 = vst [vmem:[#allocation2 + $0xcc] sm:$0x1] %v3269
        %vm3271 = vmand %vm3093, %vm3087
        %v3272 = vld [vmem:[#allocation2 + $0x8] sm:$0x1]
        %v3273 = vsel %vm3271, 0, %v3272
        %3274 = vst [vmem:[#allocation2 + $0x8] sm:$0x1] %v3273
        %v3275 = vld [vmem:[#allocation2 + $0x14] sm:$0x1]
        %v3276 = vsel %vm3271, 0, %v3275
        %3277 = vst [vmem:[#allocation2 + $0x14] sm:$0x1] %v3276
        %v3278 = vld [vmem:[#allocation2 + $0x20] sm:$0x1]
        %v3279 = vsel %vm3271, 0, %v3278
        %3280 = vst [vmem:[#allocation2 + $0x20] sm:$0x1] %v3279
        %v3281 = vld [vmem:[#allocation2 + $0x2c] sm:$0x1]
        %v3282 = vsel %vm3271, 0, %v3281
        %3283 = vst [vmem:[#allocation2 + $0x2c] sm:$0x1] %v3282
        %v3284 = vld [vmem:[#allocation2 + $0x38] sm:$0x1]
        %v3285 = vsel %vm3271, 0, %v3284
        %3286 = vst [vmem:[#allocation2 + $0x38] sm:$0x1] %v3285
        %v3287 = vld [vmem:[#allocation2 + $0x44] sm:$0x1]
        %v3288 = vsel %vm3271, 0, %v3287
        %3289 = vst [vmem:[#allocation2 + $0x44] sm:$0x1] %v3288
        %v3290 = vld [vmem:[#allocation2 + $0x50] sm:$0x1]
        %v3291 = vsel %vm3271, 0, %v3290
        %3292 = vst [vmem:[#allocation2 + $0x50] sm:$0x1] %v3291
        %v3293 = vld [vmem:[#allocation2 + $0x5c] sm:$0x1]
        %v3294 = vsel %vm3271, 0, %v3293
        %3295 = vst [vmem:[#allocation2 + $0x5c] sm:$0x1] %v3294
        %v3296 = vld [vmem:[#allocation2 + $0x68] sm:$0x1]
        %v3297 = vsel %vm3271, 0, %v3296
        %3298 = vst [vmem:[#allocation2 + $0x68] sm:$0x1] %v3297
        %v3299 = vld [vmem:[#allocation2 + $0x74] sm:$0x1]
        %v3300 = vsel %vm3271, 0, %v3299
        %3301 = vst [vmem:[#allocation2 + $0x74] sm:$0x1] %v3300
        %v3302 = vld [vmem:[#allocation2 + $0x80] sm:$0x1]
        %v3303 = vsel %vm3271, 0, %v3302
        %3304 = vst [vmem:[#allocation2 + $0x80] sm:$0x1] %v3303
        %v3305 = vld [vmem:[#allocation2 + $0x8c] sm:$0x1]
        %v3306 = vsel %vm3271, 0, %v3305
        %3307 = vst [vmem:[#allocation2 + $0x8c] sm:$0x1] %v3306
        %v3308 = vld [vmem:[#allocation2 + $0x98] sm:$0x1]
        %v3309 = vsel %vm3271, 0, %v3308
        %3310 = vst [vmem:[#allocation2 + $0x98] sm:$0x1] %v3309
        %v3311 = vld [vmem:[#allocation2 + $0xa4] sm:$0x1]
        %v3312 = vsel %vm3271, 0, %v3311
        %3313 = vst [vmem:[#allocation2 + $0xa4] sm:$0x1] %v3312
        %v3314 = vld [vmem:[#allocation2 + $0xb0] sm:$0x1]
        %v3315 = vsel %vm3271, 0, %v3314
        %3316 = vst [vmem:[#allocation2 + $0xb0] sm:$0x1] %v3315
        %v3317 = vld [vmem:[#allocation2 + $0xbc] sm:$0x1]
        %v3318 = vsel %vm3271, 0, %v3317
        %3319 = vst [vmem:[#allocation2 + $0xbc] sm:$0x1] %v3318
        %v3320 = vld [vmem:[#allocation2 + $0xc8] sm:$0x1]
        %v3321 = vsel %vm3271, 0, %v3320
        %3322 = vst [vmem:[#allocation2 + $0xc8] sm:$0x1] %v3321
        %v3323 = vld [vmem:[#allocation2 + $0xd4] sm:$0x1]
        %v3324 = vsel %vm3271, 0, %v3323
        %3325 = vst [vmem:[#allocation2 + $0xd4] sm:$0x1] %v3324
        %p3326 = scmp.eq.s32.totalorder %s30, 0
        // Predicated region
        $region65: #{tpu_custom_call.1} parent=63 // pred_check
          %p3327 = pneg %p3326
        $region66: #{tpu_custom_call.1} parent=63 // pred_check_branch
          %3329 = sbr.rel (%p3327) target = $region68
        $region67: #{tpu_custom_call.1} parent=63 // pred_region
          %3330 = vst [vmem:[#allocation2] sm:$0xf] 0
          %3331 = vst [vmem:[#allocation2 + $0x4] sm:$0xf] 0
          %3332 = vst [vmem:[#allocation2 + $0x8] sm:$0x1] 0
          %s3333 = scalar_lea.vmem [#allocation2], 204
          %3334 = vst [vmem:[%s3333] sm:$0xf] 0
          %3335 = vst [vmem:[%s3333 + $0x4] sm:$0xf] 0
          %3336 = vst [vmem:[%s3333 + $0x8] sm:$0x1] 0
        $region68: #{tpu_custom_call.1} parent=63 // pred_fallthru
          _
        %v3337 = vld [vmem:[%s7] sm:$0xff]
        %v3338 = vld [vmem:[%s7 + $0x8] sm:$0x1]
        %v3339 = vld [vmem:[#allocation2] sm:$0xf]
        %v3340 = vld [vmem:[#allocation2 + $0x4] sm:$0xf]
        %v3341 = vld [vmem:[#allocation2 + $0xc] sm:$0xf]
        %v3342 = vld [vmem:[#allocation2 + $0x10] sm:$0xf]
        %v3343 = vld [vmem:[#allocation2 + $0x18] sm:$0xf]
        %v3344 = vld [vmem:[#allocation2 + $0x1c] sm:$0xf]
        %v3345 = vld [vmem:[#allocation2 + $0x24] sm:$0xf]
        %v3346 = vld [vmem:[#allocation2 + $0x28] sm:$0xf]
        %v3347 = vld [vmem:[#allocation2 + $0x30] sm:$0xf]
        %v3348 = vld [vmem:[#allocation2 + $0x34] sm:$0xf]
        %v3349 = vld [vmem:[#allocation2 + $0x3c] sm:$0xf]
        %v3350 = vld [vmem:[#allocation2 + $0x40] sm:$0xf]
        %v3351 = vld [vmem:[#allocation2 + $0x48] sm:$0xf]
        %v3352 = vld [vmem:[#allocation2 + $0x4c] sm:$0xf]
        %v3353 = vld [vmem:[#allocation2 + $0x54] sm:$0xf]
        %v3354 = vld [vmem:[#allocation2 + $0x58] sm:$0xf]
        %v3355 = vld [vmem:[#allocation2 + $0x60] sm:$0xf]
        %v3356 = vld [vmem:[#allocation2 + $0x64] sm:$0xf]
        %v3357 = vld [vmem:[#allocation2 + $0x6c] sm:$0xf]
        %v3358 = vld [vmem:[#allocation2 + $0x70] sm:$0xf]
        %v3359 = vld [vmem:[#allocation2 + $0x78] sm:$0xf]
        %v3360 = vld [vmem:[#allocation2 + $0x7c] sm:$0xf]
        %v3361 = vld [vmem:[#allocation2 + $0x84] sm:$0xf]
        %v3362 = vld [vmem:[#allocation2 + $0x88] sm:$0xf]
        %v3363 = vld [vmem:[#allocation2 + $0x90] sm:$0xf]
        %v3364 = vld [vmem:[#allocation2 + $0x94] sm:$0xf]
        %v3365 = vld [vmem:[#allocation2 + $0x9c] sm:$0xf]
        %v3366 = vld [vmem:[#allocation2 + $0xa0] sm:$0xf]
        %v3367 = vld [vmem:[#allocation2 + $0xa8] sm:$0xf]
        %v3368 = vld [vmem:[#allocation2 + $0xac] sm:$0xf]
        %v3369 = vld [vmem:[#allocation2 + $0xb4] sm:$0xf]
        %v3370 = vld [vmem:[#allocation2 + $0xb8] sm:$0xf]
        %v3371 = vunpack.c.l.bf16 %v3339
        %v3372 = vunpack.c.l.bf16 %v3340
        %v3373 = vunpack.c.l.bf16 %v3341
        %v3374 = vunpack.c.l.bf16 %v3342
        %v3375 = vunpack.c.l.bf16 %v3343
        %v3376 = vunpack.c.l.bf16 %v3344
        %v3377 = vunpack.c.l.bf16 %v3345
        %v3378 = vunpack.c.l.bf16 %v3346
        %v3379 = vunpack.c.l.bf16 %v3347
        %v3380 = vunpack.c.l.bf16 %v3348
        %v3381 = vunpack.c.l.bf16 %v3349
        %v3382 = vunpack.c.l.bf16 %v3350
        %v3383 = vunpack.c.l.bf16 %v3351
        %v3384 = vunpack.c.l.bf16 %v3352
        %v3385 = vunpack.c.l.bf16 %v3353
        %v3386 = vunpack.c.l.bf16 %v3354
        %v3387 = vunpack.c.l.bf16 %v3355
        %v3388 = vunpack.c.l.bf16 %v3356
        %v3389 = vunpack.c.l.bf16 %v3357
        %v3390 = vunpack.c.l.bf16 %v3358
        %v3391 = vunpack.c.l.bf16 %v3359
        %v3392 = vunpack.c.l.bf16 %v3360
        %v3393 = vunpack.c.l.bf16 %v3361
        %v3394 = vunpack.c.l.bf16 %v3362
        %v3395 = vunpack.c.l.bf16 %v3363
        %v3396 = vunpack.c.l.bf16 %v3364
        %v3397 = vunpack.c.l.bf16 %v3365
        %v3398 = vunpack.c.l.bf16 %v3366
        %v3399 = vunpack.c.l.bf16 %v3367
        %v3400 = vunpack.c.l.bf16 %v3368
        %v3401 = vunpack.c.l.bf16 %v3369
        %v3402 = vunpack.c.l.bf16 %v3370
        %v3403 = vlaneseq
        %v3404 = vshrl.u32 %v3403, 7
        %v3405 = vsub.s32 0, %v3404
        %v3406 = vrot.slane %v3337, %v3405
        %v3407 = vmul.f32 %v3371, %v3406
        %v3408 = vmul.f32 %v3372, %v3406
        %v3409 = vmul.f32 %v3373, %v3406
        %v3410 = vmul.f32 %v3374, %v3406
        %v3411 = vmul.f32 %v3375, %v3406
        %v3412 = vmul.f32 %v3376, %v3406
        %v3413 = vmul.f32 %v3377, %v3406
        %v3414 = vmul.f32 %v3378, %v3406
        %v3415 = vmul.f32 %v3379, %v3406
        %v3416 = vmul.f32 %v3380, %v3406
        %v3417 = vmul.f32 %v3381, %v3406
        %v3418 = vmul.f32 %v3382, %v3406
        %v3419 = vmul.f32 %v3383, %v3406
        %v3420 = vmul.f32 %v3384, %v3406
        %v3421 = vmul.f32 %v3385, %v3406
        %v3422 = vmul.f32 %v3386, %v3406
        %v3423 = vmul.f32 %v3387, %v3406
        %v3424 = vmul.f32 %v3388, %v3406
        %v3425 = vmul.f32 %v3389, %v3406
        %v3426 = vmul.f32 %v3390, %v3406
        %v3427 = vmul.f32 %v3391, %v3406
        %v3428 = vmul.f32 %v3392, %v3406
        %v3429 = vmul.f32 %v3393, %v3406
        %v3430 = vmul.f32 %v3394, %v3406
        %v3431 = vmul.f32 %v3395, %v3406
        %v3432 = vmul.f32 %v3396, %v3406
        %v3433 = vmul.f32 %v3397, %v3406
        %v3434 = vmul.f32 %v3398, %v3406
        %v3435 = vmul.f32 %v3399, %v3406
        %v3436 = vmul.f32 %v3400, %v3406
        %v3437 = vmul.f32 %v3401, %v3406
        %v3438 = vmul.f32 %v3402, %v3406
        %v3439 = vld [vmem:[%s8] sm:$0x1]
        %v3441 = vlaneseq
        %v3442 = vshrl.u32 %v3441, 7
        %v3443 = vsub.s32 0, %v3442
        %v3444 = vrot.slane %v3439, %v3443
        %v3446 = vadd.f32 %v3407, %v3444
        %v3447 = vadd.f32 %v3408, %v3444
        %v3448 = vadd.f32 %v3409, %v3444
        %v3449 = vadd.f32 %v3410, %v3444
        %v3450 = vadd.f32 %v3411, %v3444
        %v3451 = vadd.f32 %v3412, %v3444
        %v3452 = vadd.f32 %v3413, %v3444
        %v3453 = vadd.f32 %v3414, %v3444
        %v3454 = vadd.f32 %v3415, %v3444
        %v3455 = vadd.f32 %v3416, %v3444
        %v3456 = vadd.f32 %v3417, %v3444
        %v3457 = vadd.f32 %v3418, %v3444
        %v3458 = vadd.f32 %v3419, %v3444
        %v3459 = vadd.f32 %v3420, %v3444
        %v3460 = vadd.f32 %v3421, %v3444
        %v3461 = vadd.f32 %v3422, %v3444
        %v3462 = vadd.f32 %v3423, %v3444
        %v3463 = vadd.f32 %v3424, %v3444
        %v3464 = vadd.f32 %v3425, %v3444
        %v3465 = vadd.f32 %v3426, %v3444
        %v3466 = vadd.f32 %v3427, %v3444
        %v3467 = vadd.f32 %v3428, %v3444
        %v3468 = vadd.f32 %v3429, %v3444
        %v3469 = vadd.f32 %v3430, %v3444
        %v3470 = vadd.f32 %v3431, %v3444
        %v3471 = vadd.f32 %v3432, %v3444
        %v3472 = vadd.f32 %v3433, %v3444
        %v3473 = vadd.f32 %v3434, %v3444
        %v3474 = vadd.f32 %v3435, %v3444
        %v3475 = vadd.f32 %v3436, %v3444
        %v3476 = vadd.f32 %v3437, %v3444
        %v3477 = vadd.f32 %v3438, %v3444
        %v3478 = vld [vmem:[#allocation2 + $0x8] sm:$0x1]
        %v3479 = vld [vmem:[#allocation2 + $0x14] sm:$0x1]
        %v3480 = vld [vmem:[#allocation2 + $0x20] sm:$0x1]
        %v3481 = vld [vmem:[#allocation2 + $0x2c] sm:$0x1]
        %v3482 = vld [vmem:[#allocation2 + $0x38] sm:$0x1]
        %v3483 = vld [vmem:[#allocation2 + $0x44] sm:$0x1]
        %v3484 = vld [vmem:[#allocation2 + $0x50] sm:$0x1]
        %v3485 = vld [vmem:[#allocation2 + $0x5c] sm:$0x1]
        %v3486 = vld [vmem:[#allocation2 + $0x68] sm:$0x1]
        %v3487 = vld [vmem:[#allocation2 + $0x74] sm:$0x1]
        %v3488 = vld [vmem:[#allocation2 + $0x80] sm:$0x1]
        %v3489 = vld [vmem:[#allocation2 + $0x8c] sm:$0x1]
        %v3490 = vld [vmem:[#allocation2 + $0x98] sm:$0x1]
        %v3491 = vld [vmem:[#allocation2 + $0xa4] sm:$0x1]
        %v3492 = vld [vmem:[#allocation2 + $0xb0] sm:$0x1]
        %v3493 = vld [vmem:[#allocation2 + $0xbc] sm:$0x1]
        %v3494 = vunpack.c.l.bf16 %v3478
        %v3495 = vunpack.c.l.bf16 %v3479
        %v3496 = vunpack.c.l.bf16 %v3480
        %v3497 = vunpack.c.l.bf16 %v3481
        %v3498 = vunpack.c.l.bf16 %v3482
        %v3499 = vunpack.c.l.bf16 %v3483
        %v3500 = vunpack.c.l.bf16 %v3484
        %v3501 = vunpack.c.l.bf16 %v3485
        %v3502 = vunpack.c.l.bf16 %v3486
        %v3503 = vunpack.c.l.bf16 %v3487
        %v3504 = vunpack.c.l.bf16 %v3488
        %v3505 = vunpack.c.l.bf16 %v3489
        %v3506 = vunpack.c.l.bf16 %v3490
        %v3507 = vunpack.c.l.bf16 %v3491
        %v3508 = vunpack.c.l.bf16 %v3492
        %v3509 = vunpack.c.l.bf16 %v3493
        %v3510 = vlaneseq
        %v3511 = vshrl.u32 %v3510, 7
        %v3512 = vsub.s32 1, %v3511
        %v3513 = vrot.slane %v3337, %v3512
        %v3514 = vmul.f32 %v3371, %v3513
        %v3515 = vmul.f32 %v3372, %v3513
        %v3516 = vmul.f32 %v3494, %v3513
        %v3517 = vmul.f32 %v3373, %v3513
        %v3518 = vmul.f32 %v3374, %v3513
        %v3519 = vmul.f32 %v3495, %v3513
        %v3520 = vmul.f32 %v3375, %v3513
        %v3521 = vmul.f32 %v3376, %v3513
        %v3522 = vmul.f32 %v3496, %v3513
        %v3523 = vmul.f32 %v3377, %v3513
        %v3524 = vmul.f32 %v3378, %v3513
        %v3525 = vmul.f32 %v3497, %v3513
        %v3526 = vmul.f32 %v3379, %v3513
        %v3527 = vmul.f32 %v3380, %v3513
        %v3528 = vmul.f32 %v3498, %v3513
        %v3529 = vmul.f32 %v3381, %v3513
        %v3530 = vmul.f32 %v3382, %v3513
        %v3531 = vmul.f32 %v3499, %v3513
        %v3532 = vmul.f32 %v3383, %v3513
        %v3533 = vmul.f32 %v3384, %v3513
        %v3534 = vmul.f32 %v3500, %v3513
        %v3535 = vmul.f32 %v3385, %v3513
        %v3536 = vmul.f32 %v3386, %v3513
        %v3537 = vmul.f32 %v3501, %v3513
        %v3538 = vmul.f32 %v3387, %v3513
        %v3539 = vmul.f32 %v3388, %v3513
        %v3540 = vmul.f32 %v3502, %v3513
        %v3541 = vmul.f32 %v3389, %v3513
        %v3542 = vmul.f32 %v3390, %v3513
        %v3543 = vmul.f32 %v3503, %v3513
        %v3544 = vmul.f32 %v3391, %v3513
        %v3545 = vmul.f32 %v3392, %v3513
        %v3546 = vmul.f32 %v3504, %v3513
        %v3547 = vmul.f32 %v3393, %v3513
        %v3548 = vmul.f32 %v3394, %v3513
        %v3549 = vmul.f32 %v3505, %v3513
        %v3550 = vmul.f32 %v3395, %v3513
        %v3551 = vmul.f32 %v3396, %v3513
        %v3552 = vmul.f32 %v3506, %v3513
        %v3553 = vmul.f32 %v3397, %v3513
        %v3554 = vmul.f32 %v3398, %v3513
        %v3555 = vmul.f32 %v3507, %v3513
        %v3556 = vmul.f32 %v3399, %v3513
        %v3557 = vmul.f32 %v3400, %v3513
        %v3558 = vmul.f32 %v3508, %v3513
        %v3559 = vmul.f32 %v3401, %v3513
        %v3560 = vmul.f32 %v3402, %v3513
        %v3561 = vmul.f32 %v3509, %v3513
        %vm3610 = vcmask 1046528
        %v3611 = vrot.slane %v3514, 1
        %v3612 = vrot.slane %v3515, 1
        %v3613 = vsel %vm3610, %v3611, %v3612
        %v3614 = vrot.slane %v3516, 1
        %v3615 = vsel %vm3610, %v3612, %v3614
        %v3616 = vrot.slane %v3517, 1
        %v3617 = vrot.slane %v3518, 1
        %v3618 = vsel %vm3610, %v3616, %v3617
        %v3619 = vrot.slane %v3519, 1
        %v3620 = vsel %vm3610, %v3617, %v3619
        %v3621 = vrot.slane %v3520, 1
        %v3622 = vrot.slane %v3521, 1
        %v3623 = vsel %vm3610, %v3621, %v3622
        %v3624 = vrot.slane %v3522, 1
        %v3625 = vsel %vm3610, %v3622, %v3624
        %v3626 = vrot.slane %v3523, 1
        %v3627 = vrot.slane %v3524, 1
        %v3628 = vsel %vm3610, %v3626, %v3627
        %v3629 = vrot.slane %v3525, 1
        %v3630 = vsel %vm3610, %v3627, %v3629
        %v3631 = vrot.slane %v3526, 1
        %v3632 = vrot.slane %v3527, 1
        %v3633 = vsel %vm3610, %v3631, %v3632
        %v3634 = vrot.slane %v3528, 1
        %v3635 = vsel %vm3610, %v3632, %v3634
        %v3636 = vrot.slane %v3529, 1
        %v3637 = vrot.slane %v3530, 1
        %v3638 = vsel %vm3610, %v3636, %v3637
        %v3639 = vrot.slane %v3531, 1
        %v3640 = vsel %vm3610, %v3637, %v3639
        %v3641 = vrot.slane %v3532, 1
        %v3642 = vrot.slane %v3533, 1
        %v3643 = vsel %vm3610, %v3641, %v3642
        %v3644 = vrot.slane %v3534, 1
        %v3645 = vsel %vm3610, %v3642, %v3644
        %v3646 = vrot.slane %v3535, 1
        %v3647 = vrot.slane %v3536, 1
        %v3648 = vsel %vm3610, %v3646, %v3647
        %v3649 = vrot.slane %v3537, 1
        %v3650 = vsel %vm3610, %v3647, %v3649
        %v3651 = vrot.slane %v3538, 1
        %v3652 = vrot.slane %v3539, 1
        %v3653 = vsel %vm3610, %v3651, %v3652
        %v3654 = vrot.slane %v3540, 1
        %v3655 = vsel %vm3610, %v3652, %v3654
        %v3656 = vrot.slane %v3541, 1
        %v3657 = vrot.slane %v3542, 1
        %v3658 = vsel %vm3610, %v3656, %v3657
        %v3659 = vrot.slane %v3543, 1
        %v3660 = vsel %vm3610, %v3657, %v3659
        %v3661 = vrot.slane %v3544, 1
        %v3662 = vrot.slane %v3545, 1
        %v3663 = vsel %vm3610, %v3661, %v3662
        %v3664 = vrot.slane %v3546, 1
        %v3665 = vsel %vm3610, %v3662, %v3664
        %v3666 = vrot.slane %v3547, 1
        %v3667 = vrot.slane %v3548, 1
        %v3668 = vsel %vm3610, %v3666, %v3667
        %v3669 = vrot.slane %v3549, 1
        %v3670 = vsel %vm3610, %v3667, %v3669
        %v3671 = vrot.slane %v3550, 1
        %v3672 = vrot.slane %v3551, 1
        %v3673 = vsel %vm3610, %v3671, %v3672
        %v3674 = vrot.slane %v3552, 1
        %v3675 = vsel %vm3610, %v3672, %v3674
        %v3676 = vrot.slane %v3553, 1
        %v3677 = vrot.slane %v3554, 1
        %v3678 = vsel %vm3610, %v3676, %v3677
        %v3679 = vrot.slane %v3555, 1
        %v3680 = vsel %vm3610, %v3677, %v3679
        %v3681 = vrot.slane %v3556, 1
        %v3682 = vrot.slane %v3557, 1
        %v3683 = vsel %vm3610, %v3681, %v3682
        %v3684 = vrot.slane %v3558, 1
        %v3685 = vsel %vm3610, %v3682, %v3684
        %v3686 = vrot.slane %v3559, 1
        %v3687 = vrot.slane %v3560, 1
        %v3688 = vsel %vm3610, %v3686, %v3687
        %v3689 = vrot.slane %v3561, 1
        %v3690 = vsel %vm3610, %v3687, %v3689
        %v3723 = vadd.f32 %v3446, %v3613
        %v3724 = vadd.f32 %v3447, %v3615
        %v3725 = vadd.f32 %v3448, %v3618
        %v3726 = vadd.f32 %v3449, %v3620
        %v3727 = vadd.f32 %v3450, %v3623
        %v3728 = vadd.f32 %v3451, %v3625
        %v3729 = vadd.f32 %v3452, %v3628
        %v3730 = vadd.f32 %v3453, %v3630
        %v3731 = vadd.f32 %v3454, %v3633
        %v3732 = vadd.f32 %v3455, %v3635
        %v3733 = vadd.f32 %v3456, %v3638
        %v3734 = vadd.f32 %v3457, %v3640
        %v3735 = vadd.f32 %v3458, %v3643
        %v3736 = vadd.f32 %v3459, %v3645
        %v3737 = vadd.f32 %v3460, %v3648
        %v3738 = vadd.f32 %v3461, %v3650
        %v3739 = vadd.f32 %v3462, %v3653
        %v3740 = vadd.f32 %v3463, %v3655
        %v3741 = vadd.f32 %v3464, %v3658
        %v3742 = vadd.f32 %v3465, %v3660
        %v3743 = vadd.f32 %v3466, %v3663
        %v3744 = vadd.f32 %v3467, %v3665
        %v3745 = vadd.f32 %v3468, %v3668
        %v3746 = vadd.f32 %v3469, %v3670
        %v3747 = vadd.f32 %v3470, %v3673
        %v3748 = vadd.f32 %v3471, %v3675
        %v3749 = vadd.f32 %v3472, %v3678
        %v3750 = vadd.f32 %v3473, %v3680
        %v3751 = vadd.f32 %v3474, %v3683
        %v3752 = vadd.f32 %v3475, %v3685
        %v3753 = vadd.f32 %v3476, %v3688
        %v3754 = vadd.f32 %v3477, %v3690
        %v3755 = vld [vmem:[#allocation2] sm:$0xe]
        %v3756 = vld [vmem:[#allocation2 + $0xc] sm:$0xe]
        %v3757 = vld [vmem:[#allocation2 + $0x18] sm:$0xe]
        %v3758 = vld [vmem:[#allocation2 + $0x24] sm:$0xe]
        %v3759 = vld [vmem:[#allocation2 + $0x30] sm:$0xe]
        %v3760 = vld [vmem:[#allocation2 + $0x3c] sm:$0xe]
        %v3761 = vld [vmem:[#allocation2 + $0x48] sm:$0xe]
        %v3762 = vld [vmem:[#allocation2 + $0x54] sm:$0xe]
        %v3763 = vld [vmem:[#allocation2 + $0x60] sm:$0xe]
        %v3764 = vld [vmem:[#allocation2 + $0x6c] sm:$0xe]
        %v3765 = vld [vmem:[#allocation2 + $0x78] sm:$0xe]
        %v3766 = vld [vmem:[#allocation2 + $0x84] sm:$0xe]
        %v3767 = vld [vmem:[#allocation2 + $0x90] sm:$0xe]
        %v3768 = vld [vmem:[#allocation2 + $0x9c] sm:$0xe]
        %v3769 = vld [vmem:[#allocation2 + $0xa8] sm:$0xe]
        %v3770 = vld [vmem:[#allocation2 + $0xb4] sm:$0xe]
        %v3771 = vunpack.c.l.bf16 %v3755
        %v3772 = vunpack.c.l.bf16 %v3756
        %v3773 = vunpack.c.l.bf16 %v3757
        %v3774 = vunpack.c.l.bf16 %v3758
        %v3775 = vunpack.c.l.bf16 %v3759
        %v3776 = vunpack.c.l.bf16 %v3760
        %v3777 = vunpack.c.l.bf16 %v3761
        %v3778 = vunpack.c.l.bf16 %v3762
        %v3779 = vunpack.c.l.bf16 %v3763
        %v3780 = vunpack.c.l.bf16 %v3764
        %v3781 = vunpack.c.l.bf16 %v3765
        %v3782 = vunpack.c.l.bf16 %v3766
        %v3783 = vunpack.c.l.bf16 %v3767
        %v3784 = vunpack.c.l.bf16 %v3768
        %v3785 = vunpack.c.l.bf16 %v3769
        %v3786 = vunpack.c.l.bf16 %v3770
        %v3787 = vlaneseq
        %v3788 = vshrl.u32 %v3787, 7
        %v3789 = vsub.s32 2, %v3788
        %v3790 = vrot.slane %v3337, %v3789
        %v3791 = vmul.f32 %v3771, %v3790
        %v3792 = vmul.f32 %v3372, %v3790
        %v3793 = vmul.f32 %v3494, %v3790
        %v3794 = vmul.f32 %v3772, %v3790
        %v3795 = vmul.f32 %v3374, %v3790
        %v3796 = vmul.f32 %v3495, %v3790
        %v3797 = vmul.f32 %v3773, %v3790
        %v3798 = vmul.f32 %v3376, %v3790
        %v3799 = vmul.f32 %v3496, %v3790
        %v3800 = vmul.f32 %v3774, %v3790
        %v3801 = vmul.f32 %v3378, %v3790
        %v3802 = vmul.f32 %v3497, %v3790
        %v3803 = vmul.f32 %v3775, %v3790
        %v3804 = vmul.f32 %v3380, %v3790
        %v3805 = vmul.f32 %v3498, %v3790
        %v3806 = vmul.f32 %v3776, %v3790
        %v3807 = vmul.f32 %v3382, %v3790
        %v3808 = vmul.f32 %v3499, %v3790
        %v3809 = vmul.f32 %v3777, %v3790
        %v3810 = vmul.f32 %v3384, %v3790
        %v3811 = vmul.f32 %v3500, %v3790
        %v3812 = vmul.f32 %v3778, %v3790
        %v3813 = vmul.f32 %v3386, %v3790
        %v3814 = vmul.f32 %v3501, %v3790
        %v3815 = vmul.f32 %v3779, %v3790
        %v3816 = vmul.f32 %v3388, %v3790
        %v3817 = vmul.f32 %v3502, %v3790
        %v3818 = vmul.f32 %v3780, %v3790
        %v3819 = vmul.f32 %v3390, %v3790
        %v3820 = vmul.f32 %v3503, %v3790
        %v3821 = vmul.f32 %v3781, %v3790
        %v3822 = vmul.f32 %v3392, %v3790
        %v3823 = vmul.f32 %v3504, %v3790
        %v3824 = vmul.f32 %v3782, %v3790
        %v3825 = vmul.f32 %v3394, %v3790
        %v3826 = vmul.f32 %v3505, %v3790
        %v3827 = vmul.f32 %v3783, %v3790
        %v3828 = vmul.f32 %v3396, %v3790
        %v3829 = vmul.f32 %v3506, %v3790
        %v3830 = vmul.f32 %v3784, %v3790
        %v3831 = vmul.f32 %v3398, %v3790
        %v3832 = vmul.f32 %v3507, %v3790
        %v3833 = vmul.f32 %v3785, %v3790
        %v3834 = vmul.f32 %v3400, %v3790
        %v3835 = vmul.f32 %v3508, %v3790
        %v3836 = vmul.f32 %v3786, %v3790
        %v3837 = vmul.f32 %v3402, %v3790
        %v3838 = vmul.f32 %v3509, %v3790
        %vm3887 = vcmask 1045504
        %v3888 = vrot.slane %v3791, 2
        %v3889 = vrot.slane %v3792, 2
        %v3890 = vsel %vm3887, %v3888, %v3889
        %v3891 = vrot.slane %v3793, 2
        %v3892 = vsel %vm3887, %v3889, %v3891
        %v3893 = vrot.slane %v3794, 2
        %v3894 = vrot.slane %v3795, 2
        %v3895 = vsel %vm3887, %v3893, %v3894
        %v3896 = vrot.slane %v3796, 2
        %v3897 = vsel %vm3887, %v3894, %v3896
        %v3898 = vrot.slane %v3797, 2
        %v3899 = vrot.slane %v3798, 2
        %v3900 = vsel %vm3887, %v3898, %v3899
        %v3901 = vrot.slane %v3799, 2
        %v3902 = vsel %vm3887, %v3899, %v3901
        %v3903 = vrot.slane %v3800, 2
        %v3904 = vrot.slane %v3801, 2
        %v3905 = vsel %vm3887, %v3903, %v3904
        %v3906 = vrot.slane %v3802, 2
        %v3907 = vsel %vm3887, %v3904, %v3906
        %v3908 = vrot.slane %v3803, 2
        %v3909 = vrot.slane %v3804, 2
        %v3910 = vsel %vm3887, %v3908, %v3909
        %v3911 = vrot.slane %v3805, 2
        %v3912 = vsel %vm3887, %v3909, %v3911
        %v3913 = vrot.slane %v3806, 2
        %v3914 = vrot.slane %v3807, 2
        %v3915 = vsel %vm3887, %v3913, %v3914
        %v3916 = vrot.slane %v3808, 2
        %v3917 = vsel %vm3887, %v3914, %v3916
        %v3918 = vrot.slane %v3809, 2
        %v3919 = vrot.slane %v3810, 2
        %v3920 = vsel %vm3887, %v3918, %v3919
        %v3921 = vrot.slane %v3811, 2
        %v3922 = vsel %vm3887, %v3919, %v3921
        %v3923 = vrot.slane %v3812, 2
        %v3924 = vrot.slane %v3813, 2
        %v3925 = vsel %vm3887, %v3923, %v3924
        %v3926 = vrot.slane %v3814, 2
        %v3927 = vsel %vm3887, %v3924, %v3926
        %v3928 = vrot.slane %v3815, 2
        %v3929 = vrot.slane %v3816, 2
        %v3930 = vsel %vm3887, %v3928, %v3929
        %v3931 = vrot.slane %v3817, 2
        %v3932 = vsel %vm3887, %v3929, %v3931
        %v3933 = vrot.slane %v3818, 2
        %v3934 = vrot.slane %v3819, 2
        %v3935 = vsel %vm3887, %v3933, %v3934
        %v3936 = vrot.slane %v3820, 2
        %v3937 = vsel %vm3887, %v3934, %v3936
        %v3938 = vrot.slane %v3821, 2
        %v3939 = vrot.slane %v3822, 2
        %v3940 = vsel %vm3887, %v3938, %v3939
        %v3941 = vrot.slane %v3823, 2
        %v3942 = vsel %vm3887, %v3939, %v3941
        %v3943 = vrot.slane %v3824, 2
        %v3944 = vrot.slane %v3825, 2
        %v3945 = vsel %vm3887, %v3943, %v3944
        %v3946 = vrot.slane %v3826, 2
        %v3947 = vsel %vm3887, %v3944, %v3946
        %v3948 = vrot.slane %v3827, 2
        %v3949 = vrot.slane %v3828, 2
        %v3950 = vsel %vm3887, %v3948, %v3949
        %v3951 = vrot.slane %v3829, 2
        %v3952 = vsel %vm3887, %v3949, %v3951
        %v3953 = vrot.slane %v3830, 2
        %v3954 = vrot.slane %v3831, 2
        %v3955 = vsel %vm3887, %v3953, %v3954
        %v3956 = vrot.slane %v3832, 2
        %v3957 = vsel %vm3887, %v3954, %v3956
        %v3958 = vrot.slane %v3833, 2
        %v3959 = vrot.slane %v3834, 2
        %v3960 = vsel %vm3887, %v3958, %v3959
        %v3961 = vrot.slane %v3835, 2
        %v3962 = vsel %vm3887, %v3959, %v3961
        %v3963 = vrot.slane %v3836, 2
        %v3964 = vrot.slane %v3837, 2
        %v3965 = vsel %vm3887, %v3963, %v3964
        %v3966 = vrot.slane %v3838, 2
        %v3967 = vsel %vm3887, %v3964, %v3966
        %v4000 = vadd.f32 %v3723, %v3890
        %v4001 = vadd.f32 %v3724, %v3892
        %v4002 = vadd.f32 %v3725, %v3895
        %v4003 = vadd.f32 %v3726, %v3897
        %v4004 = vadd.f32 %v3727, %v3900
        %v4005 = vadd.f32 %v3728, %v3902
        %v4006 = vadd.f32 %v3729, %v3905
        %v4007 = vadd.f32 %v3730, %v3907
        %v4008 = vadd.f32 %v3731, %v3910
        %v4009 = vadd.f32 %v3732, %v3912
        %v4010 = vadd.f32 %v3733, %v3915
        %v4011 = vadd.f32 %v3734, %v3917
        %v4012 = vadd.f32 %v3735, %v3920
        %v4013 = vadd.f32 %v3736, %v3922
        %v4014 = vadd.f32 %v3737, %v3925
        %v4015 = vadd.f32 %v3738, %v3927
        %v4016 = vadd.f32 %v3739, %v3930
        %v4017 = vadd.f32 %v3740, %v3932
        %v4018 = vadd.f32 %v3741, %v3935
        %v4019 = vadd.f32 %v3742, %v3937
        %v4020 = vadd.f32 %v3743, %v3940
        %v4021 = vadd.f32 %v3744, %v3942
        %v4022 = vadd.f32 %v3745, %v3945
        %v4023 = vadd.f32 %v3746, %v3947
        %v4024 = vadd.f32 %v3747, %v3950
        %v4025 = vadd.f32 %v3748, %v3952
        %v4026 = vadd.f32 %v3749, %v3955
        %v4027 = vadd.f32 %v3750, %v3957
        %v4028 = vadd.f32 %v3751, %v3960
        %v4029 = vadd.f32 %v3752, %v3962
        %v4030 = vadd.f32 %v3753, %v3965
        %v4031 = vadd.f32 %v3754, %v3967
        %s4032 = scalar_lea.vmem [#allocation2], 12
        %v4033 = vld [vmem:[%s4032] sm:$0xf]
        %v4034 = vld [vmem:[%s4032 + $0x4] sm:$0xf]
        %v4035 = vld [vmem:[%s4032 + $0xc] sm:$0xf]
        %v4036 = vld [vmem:[%s4032 + $0x10] sm:$0xf]
        %v4037 = vld [vmem:[%s4032 + $0x18] sm:$0xf]
        %v4038 = vld [vmem:[%s4032 + $0x1c] sm:$0xf]
        %v4039 = vld [vmem:[%s4032 + $0x24] sm:$0xf]
        %v4040 = vld [vmem:[%s4032 + $0x28] sm:$0xf]
        %v4041 = vld [vmem:[%s4032 + $0x30] sm:$0xf]
        %v4042 = vld [vmem:[%s4032 + $0x34] sm:$0xf]
        %v4043 = vld [vmem:[%s4032 + $0x3c] sm:$0xf]
        %v4044 = vld [vmem:[%s4032 + $0x40] sm:$0xf]
        %v4045 = vld [vmem:[%s4032 + $0x48] sm:$0xf]
        %v4046 = vld [vmem:[%s4032 + $0x4c] sm:$0xf]
        %v4047 = vld [vmem:[%s4032 + $0x54] sm:$0xf]
        %v4048 = vld [vmem:[%s4032 + $0x58] sm:$0xf]
        %v4049 = vld [vmem:[%s4032 + $0x60] sm:$0xf]
        %v4050 = vld [vmem:[%s4032 + $0x64] sm:$0xf]
        %v4051 = vld [vmem:[%s4032 + $0x6c] sm:$0xf]
        %v4052 = vld [vmem:[%s4032 + $0x70] sm:$0xf]
        %v4053 = vld [vmem:[%s4032 + $0x78] sm:$0xf]
        %v4054 = vld [vmem:[%s4032 + $0x7c] sm:$0xf]
        %v4055 = vld [vmem:[%s4032 + $0x84] sm:$0xf]
        %v4056 = vld [vmem:[%s4032 + $0x88] sm:$0xf]
        %v4057 = vld [vmem:[%s4032 + $0x90] sm:$0xf]
        %v4058 = vld [vmem:[%s4032 + $0x94] sm:$0xf]
        %v4059 = vld [vmem:[%s4032 + $0x9c] sm:$0xf]
        %v4060 = vld [vmem:[%s4032 + $0xa0] sm:$0xf]
        %v4061 = vld [vmem:[%s4032 + $0xa8] sm:$0xf]
        %v4062 = vld [vmem:[%s4032 + $0xac] sm:$0xf]
        %v4063 = vld [vmem:[%s4032 + $0xb4] sm:$0xf]
        %v4064 = vld [vmem:[%s4032 + $0xb8] sm:$0xf]
        %v4065 = vunpack.c.l.bf16 %v4033
        %v4066 = vunpack.c.l.bf16 %v4034
        %v4067 = vunpack.c.l.bf16 %v4035
        %v4068 = vunpack.c.l.bf16 %v4036
        %v4069 = vunpack.c.l.bf16 %v4037
        %v4070 = vunpack.c.l.bf16 %v4038
        %v4071 = vunpack.c.l.bf16 %v4039
        %v4072 = vunpack.c.l.bf16 %v4040
        %v4073 = vunpack.c.l.bf16 %v4041
        %v4074 = vunpack.c.l.bf16 %v4042
        %v4075 = vunpack.c.l.bf16 %v4043
        %v4076 = vunpack.c.l.bf16 %v4044
        %v4077 = vunpack.c.l.bf16 %v4045
        %v4078 = vunpack.c.l.bf16 %v4046
        %v4079 = vunpack.c.l.bf16 %v4047
        %v4080 = vunpack.c.l.bf16 %v4048
        %v4081 = vunpack.c.l.bf16 %v4049
        %v4082 = vunpack.c.l.bf16 %v4050
        %v4083 = vunpack.c.l.bf16 %v4051
        %v4084 = vunpack.c.l.bf16 %v4052
        %v4085 = vunpack.c.l.bf16 %v4053
        %v4086 = vunpack.c.l.bf16 %v4054
        %v4087 = vunpack.c.l.bf16 %v4055
        %v4088 = vunpack.c.l.bf16 %v4056
        %v4089 = vunpack.c.l.bf16 %v4057
        %v4090 = vunpack.c.l.bf16 %v4058
        %v4091 = vunpack.c.l.bf16 %v4059
        %v4092 = vunpack.c.l.bf16 %v4060
        %v4093 = vunpack.c.l.bf16 %v4061
        %v4094 = vunpack.c.l.bf16 %v4062
        %v4095 = vunpack.c.l.bf16 %v4063
        %v4096 = vunpack.c.l.bf16 %v4064
        %v4097 = vlaneseq
        %v4098 = vshrl.u32 %v4097, 7
        %v4099 = vsub.s32 3, %v4098
        %v4100 = vrot.slane %v3337, %v4099
        %v4101 = vmul.f32 %v4065, %v4100
        %v4102 = vmul.f32 %v4066, %v4100
        %v4103 = vmul.f32 %v4067, %v4100
        %v4104 = vmul.f32 %v4068, %v4100
        %v4105 = vmul.f32 %v4069, %v4100
        %v4106 = vmul.f32 %v4070, %v4100
        %v4107 = vmul.f32 %v4071, %v4100
        %v4108 = vmul.f32 %v4072, %v4100
        %v4109 = vmul.f32 %v4073, %v4100
        %v4110 = vmul.f32 %v4074, %v4100
        %v4111 = vmul.f32 %v4075, %v4100
        %v4112 = vmul.f32 %v4076, %v4100
        %v4113 = vmul.f32 %v4077, %v4100
        %v4114 = vmul.f32 %v4078, %v4100
        %v4115 = vmul.f32 %v4079, %v4100
        %v4116 = vmul.f32 %v4080, %v4100
        %v4117 = vmul.f32 %v4081, %v4100
        %v4118 = vmul.f32 %v4082, %v4100
        %v4119 = vmul.f32 %v4083, %v4100
        %v4120 = vmul.f32 %v4084, %v4100
        %v4121 = vmul.f32 %v4085, %v4100
        %v4122 = vmul.f32 %v4086, %v4100
        %v4123 = vmul.f32 %v4087, %v4100
        %v4124 = vmul.f32 %v4088, %v4100
        %v4125 = vmul.f32 %v4089, %v4100
        %v4126 = vmul.f32 %v4090, %v4100
        %v4127 = vmul.f32 %v4091, %v4100
        %v4128 = vmul.f32 %v4092, %v4100
        %v4129 = vmul.f32 %v4093, %v4100
        %v4130 = vmul.f32 %v4094, %v4100
        %v4131 = vmul.f32 %v4095, %v4100
        %v4132 = vmul.f32 %v4096, %v4100
        %v4133 = vadd.f32 %v4000, %v4101
        %v4134 = vadd.f32 %v4001, %v4102
        %v4135 = vadd.f32 %v4002, %v4103
        %v4136 = vadd.f32 %v4003, %v4104
        %v4137 = vadd.f32 %v4004, %v4105
        %v4138 = vadd.f32 %v4005, %v4106
        %v4139 = vadd.f32 %v4006, %v4107
        %v4140 = vadd.f32 %v4007, %v4108
        %v4141 = vadd.f32 %v4008, %v4109
        %v4142 = vadd.f32 %v4009, %v4110
        %v4143 = vadd.f32 %v4010, %v4111
        %v4144 = vadd.f32 %v4011, %v4112
        %v4145 = vadd.f32 %v4012, %v4113
        %v4146 = vadd.f32 %v4013, %v4114
        %v4147 = vadd.f32 %v4014, %v4115
        %v4148 = vadd.f32 %v4015, %v4116
        %v4149 = vadd.f32 %v4016, %v4117
        %v4150 = vadd.f32 %v4017, %v4118
        %v4151 = vadd.f32 %v4018, %v4119
        %v4152 = vadd.f32 %v4019, %v4120
        %v4153 = vadd.f32 %v4020, %v4121
        %v4154 = vadd.f32 %v4021, %v4122
        %v4155 = vadd.f32 %v4022, %v4123
        %v4156 = vadd.f32 %v4023, %v4124
        %v4157 = vadd.f32 %v4024, %v4125
        %v4158 = vadd.f32 %v4025, %v4126
        %v4159 = vadd.f32 %v4026, %v4127
        %v4160 = vadd.f32 %v4027, %v4128
        %v4161 = vadd.f32 %v4028, %v4129
        %v4162 = vadd.f32 %v4029, %v4130
        %v4163 = vadd.f32 %v4030, %v4131
        %v4164 = vadd.f32 %v4031, %v4132
        %v4165 = vld [vmem:[%s4032 + $0x8] sm:$0x1]
        %v4166 = vld [vmem:[%s4032 + $0x14] sm:$0x1]
        %v4167 = vld [vmem:[%s4032 + $0x20] sm:$0x1]
        %v4168 = vld [vmem:[%s4032 + $0x2c] sm:$0x1]
        %v4169 = vld [vmem:[%s4032 + $0x38] sm:$0x1]
        %v4170 = vld [vmem:[%s4032 + $0x44] sm:$0x1]
        %v4171 = vld [vmem:[%s4032 + $0x50] sm:$0x1]
        %v4172 = vld [vmem:[%s4032 + $0x5c] sm:$0x1]
        %v4173 = vld [vmem:[%s4032 + $0x68] sm:$0x1]
        %v4174 = vld [vmem:[%s4032 + $0x74] sm:$0x1]
        %v4175 = vld [vmem:[%s4032 + $0x80] sm:$0x1]
        %v4176 = vld [vmem:[%s4032 + $0x8c] sm:$0x1]
        %v4177 = vld [vmem:[%s4032 + $0x98] sm:$0x1]
        %v4178 = vld [vmem:[%s4032 + $0xa4] sm:$0x1]
        %v4179 = vld [vmem:[%s4032 + $0xb0] sm:$0x1]
        %v4180 = vld [vmem:[%s4032 + $0xbc] sm:$0x1]
        %v4181 = vunpack.c.l.bf16 %v4165
        %v4182 = vunpack.c.l.bf16 %v4166
        %v4183 = vunpack.c.l.bf16 %v4167
        %v4184 = vunpack.c.l.bf16 %v4168
        %v4185 = vunpack.c.l.bf16 %v4169
        %v4186 = vunpack.c.l.bf16 %v4170
        %v4187 = vunpack.c.l.bf16 %v4171
        %v4188 = vunpack.c.l.bf16 %v4172
        %v4189 = vunpack.c.l.bf16 %v4173
        %v4190 = vunpack.c.l.bf16 %v4174
        %v4191 = vunpack.c.l.bf16 %v4175
        %v4192 = vunpack.c.l.bf16 %v4176
        %v4193 = vunpack.c.l.bf16 %v4177
        %v4194 = vunpack.c.l.bf16 %v4178
        %v4195 = vunpack.c.l.bf16 %v4179
        %v4196 = vunpack.c.l.bf16 %v4180
        %v4197 = vlaneseq
        %v4198 = vshrl.u32 %v4197, 7
        %v4199 = vsub.s32 4, %v4198
        %v4200 = vrot.slane %v3337, %v4199
        %v4201 = vmul.f32 %v4065, %v4200
        %v4202 = vmul.f32 %v4066, %v4200
        %v4203 = vmul.f32 %v4181, %v4200
        %v4204 = vmul.f32 %v4067, %v4200
        %v4205 = vmul.f32 %v4068, %v4200
        %v4206 = vmul.f32 %v4182, %v4200
        %v4207 = vmul.f32 %v4069, %v4200
        %v4208 = vmul.f32 %v4070, %v4200
        %v4209 = vmul.f32 %v4183, %v4200
        %v4210 = vmul.f32 %v4071, %v4200
        %v4211 = vmul.f32 %v4072, %v4200
        %v4212 = vmul.f32 %v4184, %v4200
        %v4213 = vmul.f32 %v4073, %v4200
        %v4214 = vmul.f32 %v4074, %v4200
        %v4215 = vmul.f32 %v4185, %v4200
        %v4216 = vmul.f32 %v4075, %v4200
        %v4217 = vmul.f32 %v4076, %v4200
        %v4218 = vmul.f32 %v4186, %v4200
        %v4219 = vmul.f32 %v4077, %v4200
        %v4220 = vmul.f32 %v4078, %v4200
        %v4221 = vmul.f32 %v4187, %v4200
        %v4222 = vmul.f32 %v4079, %v4200
        %v4223 = vmul.f32 %v4080, %v4200
        %v4224 = vmul.f32 %v4188, %v4200
        %v4225 = vmul.f32 %v4081, %v4200
        %v4226 = vmul.f32 %v4082, %v4200
        %v4227 = vmul.f32 %v4189, %v4200
        %v4228 = vmul.f32 %v4083, %v4200
        %v4229 = vmul.f32 %v4084, %v4200
        %v4230 = vmul.f32 %v4190, %v4200
        %v4231 = vmul.f32 %v4085, %v4200
        %v4232 = vmul.f32 %v4086, %v4200
        %v4233 = vmul.f32 %v4191, %v4200
        %v4234 = vmul.f32 %v4087, %v4200
        %v4235 = vmul.f32 %v4088, %v4200
        %v4236 = vmul.f32 %v4192, %v4200
        %v4237 = vmul.f32 %v4089, %v4200
        %v4238 = vmul.f32 %v4090, %v4200
        %v4239 = vmul.f32 %v4193, %v4200
        %v4240 = vmul.f32 %v4091, %v4200
        %v4241 = vmul.f32 %v4092, %v4200
        %v4242 = vmul.f32 %v4194, %v4200
        %v4243 = vmul.f32 %v4093, %v4200
        %v4244 = vmul.f32 %v4094, %v4200
        %v4245 = vmul.f32 %v4195, %v4200
        %v4246 = vmul.f32 %v4095, %v4200
        %v4247 = vmul.f32 %v4096, %v4200
        %v4248 = vmul.f32 %v4196, %v4200
        %v4297 = vrot.slane %v4201, 1
        %v4298 = vrot.slane %v4202, 1
        %v4299 = vsel %vm3610, %v4297, %v4298
        %v4300 = vrot.slane %v4203, 1
        %v4301 = vsel %vm3610, %v4298, %v4300
        %v4302 = vrot.slane %v4204, 1
        %v4303 = vrot.slane %v4205, 1
        %v4304 = vsel %vm3610, %v4302, %v4303
        %v4305 = vrot.slane %v4206, 1
        %v4306 = vsel %vm3610, %v4303, %v4305
        %v4307 = vrot.slane %v4207, 1
        %v4308 = vrot.slane %v4208, 1
        %v4309 = vsel %vm3610, %v4307, %v4308
        %v4310 = vrot.slane %v4209, 1
        %v4311 = vsel %vm3610, %v4308, %v4310
        %v4312 = vrot.slane %v4210, 1
        %v4313 = vrot.slane %v4211, 1
        %v4314 = vsel %vm3610, %v4312, %v4313
        %v4315 = vrot.slane %v4212, 1
        %v4316 = vsel %vm3610, %v4313, %v4315
        %v4317 = vrot.slane %v4213, 1
        %v4318 = vrot.slane %v4214, 1
        %v4319 = vsel %vm3610, %v4317, %v4318
        %v4320 = vrot.slane %v4215, 1
        %v4321 = vsel %vm3610, %v4318, %v4320
        %v4322 = vrot.slane %v4216, 1
        %v4323 = vrot.slane %v4217, 1
        %v4324 = vsel %vm3610, %v4322, %v4323
        %v4325 = vrot.slane %v4218, 1
        %v4326 = vsel %vm3610, %v4323, %v4325
        %v4327 = vrot.slane %v4219, 1
        %v4328 = vrot.slane %v4220, 1
        %v4329 = vsel %vm3610, %v4327, %v4328
        %v4330 = vrot.slane %v4221, 1
        %v4331 = vsel %vm3610, %v4328, %v4330
        %v4332 = vrot.slane %v4222, 1
        %v4333 = vrot.slane %v4223, 1
        %v4334 = vsel %vm3610, %v4332, %v4333
        %v4335 = vrot.slane %v4224, 1
        %v4336 = vsel %vm3610, %v4333, %v4335
        %v4337 = vrot.slane %v4225, 1
        %v4338 = vrot.slane %v4226, 1
        %v4339 = vsel %vm3610, %v4337, %v4338
        %v4340 = vrot.slane %v4227, 1
        %v4341 = vsel %vm3610, %v4338, %v4340
        %v4342 = vrot.slane %v4228, 1
        %v4343 = vrot.slane %v4229, 1
        %v4344 = vsel %vm3610, %v4342, %v4343
        %v4345 = vrot.slane %v4230, 1
        %v4346 = vsel %vm3610, %v4343, %v4345
        %v4347 = vrot.slane %v4231, 1
        %v4348 = vrot.slane %v4232, 1
        %v4349 = vsel %vm3610, %v4347, %v4348
        %v4350 = vrot.slane %v4233, 1
        %v4351 = vsel %vm3610, %v4348, %v4350
        %v4352 = vrot.slane %v4234, 1
        %v4353 = vrot.slane %v4235, 1
        %v4354 = vsel %vm3610, %v4352, %v4353
        %v4355 = vrot.slane %v4236, 1
        %v4356 = vsel %vm3610, %v4353, %v4355
        %v4357 = vrot.slane %v4237, 1
        %v4358 = vrot.slane %v4238, 1
        %v4359 = vsel %vm3610, %v4357, %v4358
        %v4360 = vrot.slane %v4239, 1
        %v4361 = vsel %vm3610, %v4358, %v4360
        %v4362 = vrot.slane %v4240, 1
        %v4363 = vrot.slane %v4241, 1
        %v4364 = vsel %vm3610, %v4362, %v4363
        %v4365 = vrot.slane %v4242, 1
        %v4366 = vsel %vm3610, %v4363, %v4365
        %v4367 = vrot.slane %v4243, 1
        %v4368 = vrot.slane %v4244, 1
        %v4369 = vsel %vm3610, %v4367, %v4368
        %v4370 = vrot.slane %v4245, 1
        %v4371 = vsel %vm3610, %v4368, %v4370
        %v4372 = vrot.slane %v4246, 1
        %v4373 = vrot.slane %v4247, 1
        %v4374 = vsel %vm3610, %v4372, %v4373
        %v4375 = vrot.slane %v4248, 1
        %v4376 = vsel %vm3610, %v4373, %v4375
        %v4409 = vadd.f32 %v4133, %v4299
        %v4410 = vadd.f32 %v4134, %v4301
        %v4411 = vadd.f32 %v4135, %v4304
        %v4412 = vadd.f32 %v4136, %v4306
        %v4413 = vadd.f32 %v4137, %v4309
        %v4414 = vadd.f32 %v4138, %v4311
        %v4415 = vadd.f32 %v4139, %v4314
        %v4416 = vadd.f32 %v4140, %v4316
        %v4417 = vadd.f32 %v4141, %v4319
        %v4418 = vadd.f32 %v4142, %v4321
        %v4419 = vadd.f32 %v4143, %v4324
        %v4420 = vadd.f32 %v4144, %v4326
        %v4421 = vadd.f32 %v4145, %v4329
        %v4422 = vadd.f32 %v4146, %v4331
        %v4423 = vadd.f32 %v4147, %v4334
        %v4424 = vadd.f32 %v4148, %v4336
        %v4425 = vadd.f32 %v4149, %v4339
        %v4426 = vadd.f32 %v4150, %v4341
        %v4427 = vadd.f32 %v4151, %v4344
        %v4428 = vadd.f32 %v4152, %v4346
        %v4429 = vadd.f32 %v4153, %v4349
        %v4430 = vadd.f32 %v4154, %v4351
        %v4431 = vadd.f32 %v4155, %v4354
        %v4432 = vadd.f32 %v4156, %v4356
        %v4433 = vadd.f32 %v4157, %v4359
        %v4434 = vadd.f32 %v4158, %v4361
        %v4435 = vadd.f32 %v4159, %v4364
        %v4436 = vadd.f32 %v4160, %v4366
        %v4437 = vadd.f32 %v4161, %v4369
        %v4438 = vadd.f32 %v4162, %v4371
        %v4439 = vadd.f32 %v4163, %v4374
        %v4440 = vadd.f32 %v4164, %v4376
        %v4441 = vld [vmem:[%s4032] sm:$0xe]
        %v4442 = vld [vmem:[%s4032 + $0xc] sm:$0xe]
        %v4443 = vld [vmem:[%s4032 + $0x18] sm:$0xe]
        %v4444 = vld [vmem:[%s4032 + $0x24] sm:$0xe]
        %v4445 = vld [vmem:[%s4032 + $0x30] sm:$0xe]
        %v4446 = vld [vmem:[%s4032 + $0x3c] sm:$0xe]
        %v4447 = vld [vmem:[%s4032 + $0x48] sm:$0xe]
        %v4448 = vld [vmem:[%s4032 + $0x54] sm:$0xe]
        %v4449 = vld [vmem:[%s4032 + $0x60] sm:$0xe]
        %v4450 = vld [vmem:[%s4032 + $0x6c] sm:$0xe]
        %v4451 = vld [vmem:[%s4032 + $0x78] sm:$0xe]
        %v4452 = vld [vmem:[%s4032 + $0x84] sm:$0xe]
        %v4453 = vld [vmem:[%s4032 + $0x90] sm:$0xe]
        %v4454 = vld [vmem:[%s4032 + $0x9c] sm:$0xe]
        %v4455 = vld [vmem:[%s4032 + $0xa8] sm:$0xe]
        %v4456 = vld [vmem:[%s4032 + $0xb4] sm:$0xe]
        %v4457 = vunpack.c.l.bf16 %v4441
        %v4458 = vunpack.c.l.bf16 %v4442
        %v4459 = vunpack.c.l.bf16 %v4443
        %v4460 = vunpack.c.l.bf16 %v4444
        %v4461 = vunpack.c.l.bf16 %v4445
        %v4462 = vunpack.c.l.bf16 %v4446
        %v4463 = vunpack.c.l.bf16 %v4447
        %v4464 = vunpack.c.l.bf16 %v4448
        %v4465 = vunpack.c.l.bf16 %v4449
        %v4466 = vunpack.c.l.bf16 %v4450
        %v4467 = vunpack.c.l.bf16 %v4451
        %v4468 = vunpack.c.l.bf16 %v4452
        %v4469 = vunpack.c.l.bf16 %v4453
        %v4470 = vunpack.c.l.bf16 %v4454
        %v4471 = vunpack.c.l.bf16 %v4455
        %v4472 = vunpack.c.l.bf16 %v4456
        %v4473 = vlaneseq
        %v4474 = vshrl.u32 %v4473, 7
        %v4475 = vsub.s32 5, %v4474
        %v4476 = vrot.slane %v3337, %v4475
        %v4477 = vmul.f32 %v4457, %v4476
        %v4478 = vmul.f32 %v4066, %v4476
        %v4479 = vmul.f32 %v4181, %v4476
        %v4480 = vmul.f32 %v4458, %v4476
        %v4481 = vmul.f32 %v4068, %v4476
        %v4482 = vmul.f32 %v4182, %v4476
        %v4483 = vmul.f32 %v4459, %v4476
        %v4484 = vmul.f32 %v4070, %v4476
        %v4485 = vmul.f32 %v4183, %v4476
        %v4486 = vmul.f32 %v4460, %v4476
        %v4487 = vmul.f32 %v4072, %v4476
        %v4488 = vmul.f32 %v4184, %v4476
        %v4489 = vmul.f32 %v4461, %v4476
        %v4490 = vmul.f32 %v4074, %v4476
        %v4491 = vmul.f32 %v4185, %v4476
        %v4492 = vmul.f32 %v4462, %v4476
        %v4493 = vmul.f32 %v4076, %v4476
        %v4494 = vmul.f32 %v4186, %v4476
        %v4495 = vmul.f32 %v4463, %v4476
        %v4496 = vmul.f32 %v4078, %v4476
        %v4497 = vmul.f32 %v4187, %v4476
        %v4498 = vmul.f32 %v4464, %v4476
        %v4499 = vmul.f32 %v4080, %v4476
        %v4500 = vmul.f32 %v4188, %v4476
        %v4501 = vmul.f32 %v4465, %v4476
        %v4502 = vmul.f32 %v4082, %v4476
        %v4503 = vmul.f32 %v4189, %v4476
        %v4504 = vmul.f32 %v4466, %v4476
        %v4505 = vmul.f32 %v4084, %v4476
        %v4506 = vmul.f32 %v4190, %v4476
        %v4507 = vmul.f32 %v4467, %v4476
        %v4508 = vmul.f32 %v4086, %v4476
        %v4509 = vmul.f32 %v4191, %v4476
        %v4510 = vmul.f32 %v4468, %v4476
        %v4511 = vmul.f32 %v4088, %v4476
        %v4512 = vmul.f32 %v4192, %v4476
        %v4513 = vmul.f32 %v4469, %v4476
        %v4514 = vmul.f32 %v4090, %v4476
        %v4515 = vmul.f32 %v4193, %v4476
        %v4516 = vmul.f32 %v4470, %v4476
        %v4517 = vmul.f32 %v4092, %v4476
        %v4518 = vmul.f32 %v4194, %v4476
        %v4519 = vmul.f32 %v4471, %v4476
        %v4520 = vmul.f32 %v4094, %v4476
        %v4521 = vmul.f32 %v4195, %v4476
        %v4522 = vmul.f32 %v4472, %v4476
        %v4523 = vmul.f32 %v4096, %v4476
        %v4524 = vmul.f32 %v4196, %v4476
        %v4573 = vrot.slane %v4477, 2
        %v4574 = vrot.slane %v4478, 2
        %v4575 = vsel %vm3887, %v4573, %v4574
        %v4576 = vrot.slane %v4479, 2
        %v4577 = vsel %vm3887, %v4574, %v4576
        %v4578 = vrot.slane %v4480, 2
        %v4579 = vrot.slane %v4481, 2
        %v4580 = vsel %vm3887, %v4578, %v4579
        %v4581 = vrot.slane %v4482, 2
        %v4582 = vsel %vm3887, %v4579, %v4581
        %v4583 = vrot.slane %v4483, 2
        %v4584 = vrot.slane %v4484, 2
        %v4585 = vsel %vm3887, %v4583, %v4584
        %v4586 = vrot.slane %v4485, 2
        %v4587 = vsel %vm3887, %v4584, %v4586
        %v4588 = vrot.slane %v4486, 2
        %v4589 = vrot.slane %v4487, 2
        %v4590 = vsel %vm3887, %v4588, %v4589
        %v4591 = vrot.slane %v4488, 2
        %v4592 = vsel %vm3887, %v4589, %v4591
        %v4593 = vrot.slane %v4489, 2
        %v4594 = vrot.slane %v4490, 2
        %v4595 = vsel %vm3887, %v4593, %v4594
        %v4596 = vrot.slane %v4491, 2
        %v4597 = vsel %vm3887, %v4594, %v4596
        %v4598 = vrot.slane %v4492, 2
        %v4599 = vrot.slane %v4493, 2
        %v4600 = vsel %vm3887, %v4598, %v4599
        %v4601 = vrot.slane %v4494, 2
        %v4602 = vsel %vm3887, %v4599, %v4601
        %v4603 = vrot.slane %v4495, 2
        %v4604 = vrot.slane %v4496, 2
        %v4605 = vsel %vm3887, %v4603, %v4604
        %v4606 = vrot.slane %v4497, 2
        %v4607 = vsel %vm3887, %v4604, %v4606
        %v4608 = vrot.slane %v4498, 2
        %v4609 = vrot.slane %v4499, 2
        %v4610 = vsel %vm3887, %v4608, %v4609
        %v4611 = vrot.slane %v4500, 2
        %v4612 = vsel %vm3887, %v4609, %v4611
        %v4613 = vrot.slane %v4501, 2
        %v4614 = vrot.slane %v4502, 2
        %v4615 = vsel %vm3887, %v4613, %v4614
        %v4616 = vrot.slane %v4503, 2
        %v4617 = vsel %vm3887, %v4614, %v4616
        %v4618 = vrot.slane %v4504, 2
        %v4619 = vrot.slane %v4505, 2
        %v4620 = vsel %vm3887, %v4618, %v4619
        %v4621 = vrot.slane %v4506, 2
        %v4622 = vsel %vm3887, %v4619, %v4621
        %v4623 = vrot.slane %v4507, 2
        %v4624 = vrot.slane %v4508, 2
        %v4625 = vsel %vm3887, %v4623, %v4624
        %v4626 = vrot.slane %v4509, 2
        %v4627 = vsel %vm3887, %v4624, %v4626
        %v4628 = vrot.slane %v4510, 2
        %v4629 = vrot.slane %v4511, 2
        %v4630 = vsel %vm3887, %v4628, %v4629
        %v4631 = vrot.slane %v4512, 2
        %v4632 = vsel %vm3887, %v4629, %v4631
        %v4633 = vrot.slane %v4513, 2
        %v4634 = vrot.slane %v4514, 2
        %v4635 = vsel %vm3887, %v4633, %v4634
        %v4636 = vrot.slane %v4515, 2
        %v4637 = vsel %vm3887, %v4634, %v4636
        %v4638 = vrot.slane %v4516, 2
        %v4639 = vrot.slane %v4517, 2
        %v4640 = vsel %vm3887, %v4638, %v4639
        %v4641 = vrot.slane %v4518, 2
        %v4642 = vsel %vm3887, %v4639, %v4641
        %v4643 = vrot.slane %v4519, 2
        %v4644 = vrot.slane %v4520, 2
        %v4645 = vsel %vm3887, %v4643, %v4644
        %v4646 = vrot.slane %v4521, 2
        %v4647 = vsel %vm3887, %v4644, %v4646
        %v4648 = vrot.slane %v4522, 2
        %v4649 = vrot.slane %v4523, 2
        %v4650 = vsel %vm3887, %v4648, %v4649
        %v4651 = vrot.slane %v4524, 2
        %v4652 = vsel %vm3887, %v4649, %v4651
        %v4685 = vadd.f32 %v4409, %v4575
        %v4686 = vadd.f32 %v4410, %v4577
        %v4687 = vadd.f32 %v4411, %v4580
        %v4688 = vadd.f32 %v4412, %v4582
        %v4689 = vadd.f32 %v4413, %v4585
        %v4690 = vadd.f32 %v4414, %v4587
        %v4691 = vadd.f32 %v4415, %v4590
        %v4692 = vadd.f32 %v4416, %v4592
        %v4693 = vadd.f32 %v4417, %v4595
        %v4694 = vadd.f32 %v4418, %v4597
        %v4695 = vadd.f32 %v4419, %v4600
        %v4696 = vadd.f32 %v4420, %v4602
        %v4697 = vadd.f32 %v4421, %v4605
        %v4698 = vadd.f32 %v4422, %v4607
        %v4699 = vadd.f32 %v4423, %v4610
        %v4700 = vadd.f32 %v4424, %v4612
        %v4701 = vadd.f32 %v4425, %v4615
        %v4702 = vadd.f32 %v4426, %v4617
        %v4703 = vadd.f32 %v4427, %v4620
        %v4704 = vadd.f32 %v4428, %v4622
        %v4705 = vadd.f32 %v4429, %v4625
        %v4706 = vadd.f32 %v4430, %v4627
        %v4707 = vadd.f32 %v4431, %v4630
        %v4708 = vadd.f32 %v4432, %v4632
        %v4709 = vadd.f32 %v4433, %v4635
        %v4710 = vadd.f32 %v4434, %v4637
        %v4711 = vadd.f32 %v4435, %v4640
        %v4712 = vadd.f32 %v4436, %v4642
        %v4713 = vadd.f32 %v4437, %v4645
        %v4714 = vadd.f32 %v4438, %v4647
        %v4715 = vadd.f32 %v4439, %v4650
        %v4716 = vadd.f32 %v4440, %v4652
        %s4717 = scalar_lea.vmem [#allocation2], 24
        %v4718 = vld [vmem:[%s4717] sm:$0xf]
        %v4719 = vld [vmem:[%s4717 + $0x4] sm:$0xf]
        %v4720 = vld [vmem:[%s4717 + $0xc] sm:$0xf]
        %v4721 = vld [vmem:[%s4717 + $0x10] sm:$0xf]
        %v4722 = vld [vmem:[%s4717 + $0x18] sm:$0xf]
        %v4723 = vld [vmem:[%s4717 + $0x1c] sm:$0xf]
        %v4724 = vld [vmem:[%s4717 + $0x24] sm:$0xf]
        %v4725 = vld [vmem:[%s4717 + $0x28] sm:$0xf]
        %v4726 = vld [vmem:[%s4717 + $0x30] sm:$0xf]
        %v4727 = vld [vmem:[%s4717 + $0x34] sm:$0xf]
        %v4728 = vld [vmem:[%s4717 + $0x3c] sm:$0xf]
        %v4729 = vld [vmem:[%s4717 + $0x40] sm:$0xf]
        %v4730 = vld [vmem:[%s4717 + $0x48] sm:$0xf]
        %v4731 = vld [vmem:[%s4717 + $0x4c] sm:$0xf]
        %v4732 = vld [vmem:[%s4717 + $0x54] sm:$0xf]
        %v4733 = vld [vmem:[%s4717 + $0x58] sm:$0xf]
        %v4734 = vld [vmem:[%s4717 + $0x60] sm:$0xf]
        %v4735 = vld [vmem:[%s4717 + $0x64] sm:$0xf]
        %v4736 = vld [vmem:[%s4717 + $0x6c] sm:$0xf]
        %v4737 = vld [vmem:[%s4717 + $0x70] sm:$0xf]
        %v4738 = vld [vmem:[%s4717 + $0x78] sm:$0xf]
        %v4739 = vld [vmem:[%s4717 + $0x7c] sm:$0xf]
        %v4740 = vld [vmem:[%s4717 + $0x84] sm:$0xf]
        %v4741 = vld [vmem:[%s4717 + $0x88] sm:$0xf]
        %v4742 = vld [vmem:[%s4717 + $0x90] sm:$0xf]
        %v4743 = vld [vmem:[%s4717 + $0x94] sm:$0xf]
        %v4744 = vld [vmem:[%s4717 + $0x9c] sm:$0xf]
        %v4745 = vld [vmem:[%s4717 + $0xa0] sm:$0xf]
        %v4746 = vld [vmem:[%s4717 + $0xa8] sm:$0xf]
        %v4747 = vld [vmem:[%s4717 + $0xac] sm:$0xf]
        %v4748 = vld [vmem:[%s4717 + $0xb4] sm:$0xf]
        %v4749 = vld [vmem:[%s4717 + $0xb8] sm:$0xf]
        %v4750 = vunpack.c.l.bf16 %v4718
        %v4751 = vunpack.c.l.bf16 %v4719
        %v4752 = vunpack.c.l.bf16 %v4720
        %v4753 = vunpack.c.l.bf16 %v4721
        %v4754 = vunpack.c.l.bf16 %v4722
        %v4755 = vunpack.c.l.bf16 %v4723
        %v4756 = vunpack.c.l.bf16 %v4724
        %v4757 = vunpack.c.l.bf16 %v4725
        %v4758 = vunpack.c.l.bf16 %v4726
        %v4759 = vunpack.c.l.bf16 %v4727
        %v4760 = vunpack.c.l.bf16 %v4728
        %v4761 = vunpack.c.l.bf16 %v4729
        %v4762 = vunpack.c.l.bf16 %v4730
        %v4763 = vunpack.c.l.bf16 %v4731
        %v4764 = vunpack.c.l.bf16 %v4732
        %v4765 = vunpack.c.l.bf16 %v4733
        %v4766 = vunpack.c.l.bf16 %v4734
        %v4767 = vunpack.c.l.bf16 %v4735
        %v4768 = vunpack.c.l.bf16 %v4736
        %v4769 = vunpack.c.l.bf16 %v4737
        %v4770 = vunpack.c.l.bf16 %v4738
        %v4771 = vunpack.c.l.bf16 %v4739
        %v4772 = vunpack.c.l.bf16 %v4740
        %v4773 = vunpack.c.l.bf16 %v4741
        %v4774 = vunpack.c.l.bf16 %v4742
        %v4775 = vunpack.c.l.bf16 %v4743
        %v4776 = vunpack.c.l.bf16 %v4744
        %v4777 = vunpack.c.l.bf16 %v4745
        %v4778 = vunpack.c.l.bf16 %v4746
        %v4779 = vunpack.c.l.bf16 %v4747
        %v4780 = vunpack.c.l.bf16 %v4748
        %v4781 = vunpack.c.l.bf16 %v4749
        %v4782 = vlaneseq
        %v4783 = vshrl.u32 %v4782, 7
        %v4784 = vsub.s32 6, %v4783
        %v4785 = vrot.slane %v3337, %v4784
        %v4786 = vmul.f32 %v4750, %v4785
        %v4787 = vmul.f32 %v4751, %v4785
        %v4788 = vmul.f32 %v4752, %v4785
        %v4789 = vmul.f32 %v4753, %v4785
        %v4790 = vmul.f32 %v4754, %v4785
        %v4791 = vmul.f32 %v4755, %v4785
        %v4792 = vmul.f32 %v4756, %v4785
        %v4793 = vmul.f32 %v4757, %v4785
        %v4794 = vmul.f32 %v4758, %v4785
        %v4795 = vmul.f32 %v4759, %v4785
        %v4796 = vmul.f32 %v4760, %v4785
        %v4797 = vmul.f32 %v4761, %v4785
        %v4798 = vmul.f32 %v4762, %v4785
        %v4799 = vmul.f32 %v4763, %v4785
        %v4800 = vmul.f32 %v4764, %v4785
        %v4801 = vmul.f32 %v4765, %v4785
        %v4802 = vmul.f32 %v4766, %v4785
        %v4803 = vmul.f32 %v4767, %v4785
        %v4804 = vmul.f32 %v4768, %v4785
        %v4805 = vmul.f32 %v4769, %v4785
        %v4806 = vmul.f32 %v4770, %v4785
        %v4807 = vmul.f32 %v4771, %v4785
        %v4808 = vmul.f32 %v4772, %v4785
        %v4809 = vmul.f32 %v4773, %v4785
        %v4810 = vmul.f32 %v4774, %v4785
        %v4811 = vmul.f32 %v4775, %v4785
        %v4812 = vmul.f32 %v4776, %v4785
        %v4813 = vmul.f32 %v4777, %v4785
        %v4814 = vmul.f32 %v4778, %v4785
        %v4815 = vmul.f32 %v4779, %v4785
        %v4816 = vmul.f32 %v4780, %v4785
        %v4817 = vmul.f32 %v4781, %v4785
        %v4818 = vadd.f32 %v4685, %v4786
        %v4819 = vadd.f32 %v4686, %v4787
        %v4820 = vadd.f32 %v4687, %v4788
        %v4821 = vadd.f32 %v4688, %v4789
        %v4822 = vadd.f32 %v4689, %v4790
        %v4823 = vadd.f32 %v4690, %v4791
        %v4824 = vadd.f32 %v4691, %v4792
        %v4825 = vadd.f32 %v4692, %v4793
        %v4826 = vadd.f32 %v4693, %v4794
        %v4827 = vadd.f32 %v4694, %v4795
        %v4828 = vadd.f32 %v4695, %v4796
        %v4829 = vadd.f32 %v4696, %v4797
        %v4830 = vadd.f32 %v4697, %v4798
        %v4831 = vadd.f32 %v4698, %v4799
        %v4832 = vadd.f32 %v4699, %v4800
        %v4833 = vadd.f32 %v4700, %v4801
        %v4834 = vadd.f32 %v4701, %v4802
        %v4835 = vadd.f32 %v4702, %v4803
        %v4836 = vadd.f32 %v4703, %v4804
        %v4837 = vadd.f32 %v4704, %v4805
        %v4838 = vadd.f32 %v4705, %v4806
        %v4839 = vadd.f32 %v4706, %v4807
        %v4840 = vadd.f32 %v4707, %v4808
        %v4841 = vadd.f32 %v4708, %v4809
        %v4842 = vadd.f32 %v4709, %v4810
        %v4843 = vadd.f32 %v4710, %v4811
        %v4844 = vadd.f32 %v4711, %v4812
        %v4845 = vadd.f32 %v4712, %v4813
        %v4846 = vadd.f32 %v4713, %v4814
        %v4847 = vadd.f32 %v4714, %v4815
        %v4848 = vadd.f32 %v4715, %v4816
        %v4849 = vadd.f32 %v4716, %v4817
        %v4850 = vld [vmem:[%s4717 + $0x8] sm:$0x1]
        %v4851 = vld [vmem:[%s4717 + $0x14] sm:$0x1]
        %v4852 = vld [vmem:[%s4717 + $0x20] sm:$0x1]
        %v4853 = vld [vmem:[%s4717 + $0x2c] sm:$0x1]
        %v4854 = vld [vmem:[%s4717 + $0x38] sm:$0x1]
        %v4855 = vld [vmem:[%s4717 + $0x44] sm:$0x1]
        %v4856 = vld [vmem:[%s4717 + $0x50] sm:$0x1]
        %v4857 = vld [vmem:[%s4717 + $0x5c] sm:$0x1]
        %v4858 = vld [vmem:[%s4717 + $0x68] sm:$0x1]
        %v4859 = vld [vmem:[%s4717 + $0x74] sm:$0x1]
        %v4860 = vld [vmem:[%s4717 + $0x80] sm:$0x1]
        %v4861 = vld [vmem:[%s4717 + $0x8c] sm:$0x1]
        %v4862 = vld [vmem:[%s4717 + $0x98] sm:$0x1]
        %v4863 = vld [vmem:[%s4717 + $0xa4] sm:$0x1]
        %v4864 = vld [vmem:[%s4717 + $0xb0] sm:$0x1]
        %v4865 = vld [vmem:[%s4717 + $0xbc] sm:$0x1]
        %v4866 = vunpack.c.l.bf16 %v4850
        %v4867 = vunpack.c.l.bf16 %v4851
        %v4868 = vunpack.c.l.bf16 %v4852
        %v4869 = vunpack.c.l.bf16 %v4853
        %v4870 = vunpack.c.l.bf16 %v4854
        %v4871 = vunpack.c.l.bf16 %v4855
        %v4872 = vunpack.c.l.bf16 %v4856
        %v4873 = vunpack.c.l.bf16 %v4857
        %v4874 = vunpack.c.l.bf16 %v4858
        %v4875 = vunpack.c.l.bf16 %v4859
        %v4876 = vunpack.c.l.bf16 %v4860
        %v4877 = vunpack.c.l.bf16 %v4861
        %v4878 = vunpack.c.l.bf16 %v4862
        %v4879 = vunpack.c.l.bf16 %v4863
        %v4880 = vunpack.c.l.bf16 %v4864
        %v4881 = vunpack.c.l.bf16 %v4865
        %v4882 = vlaneseq
        %v4883 = vshrl.u32 %v4882, 7
        %v4884 = vsub.s32 7, %v4883
        %v4885 = vrot.slane %v3337, %v4884
        %v4886 = vmul.f32 %v4750, %v4885
        %v4887 = vmul.f32 %v4751, %v4885
        %v4888 = vmul.f32 %v4866, %v4885
        %v4889 = vmul.f32 %v4752, %v4885
        %v4890 = vmul.f32 %v4753, %v4885
        %v4891 = vmul.f32 %v4867, %v4885
        %v4892 = vmul.f32 %v4754, %v4885
        %v4893 = vmul.f32 %v4755, %v4885
        %v4894 = vmul.f32 %v4868, %v4885
        %v4895 = vmul.f32 %v4756, %v4885
        %v4896 = vmul.f32 %v4757, %v4885
        %v4897 = vmul.f32 %v4869, %v4885
        %v4898 = vmul.f32 %v4758, %v4885
        %v4899 = vmul.f32 %v4759, %v4885
        %v4900 = vmul.f32 %v4870, %v4885
        %v4901 = vmul.f32 %v4760, %v4885
        %v4902 = vmul.f32 %v4761, %v4885
        %v4903 = vmul.f32 %v4871, %v4885
        %v4904 = vmul.f32 %v4762, %v4885
        %v4905 = vmul.f32 %v4763, %v4885
        %v4906 = vmul.f32 %v4872, %v4885
        %v4907 = vmul.f32 %v4764, %v4885
        %v4908 = vmul.f32 %v4765, %v4885
        %v4909 = vmul.f32 %v4873, %v4885
        %v4910 = vmul.f32 %v4766, %v4885
        %v4911 = vmul.f32 %v4767, %v4885
        %v4912 = vmul.f32 %v4874, %v4885
        %v4913 = vmul.f32 %v4768, %v4885
        %v4914 = vmul.f32 %v4769, %v4885
        %v4915 = vmul.f32 %v4875, %v4885
        %v4916 = vmul.f32 %v4770, %v4885
        %v4917 = vmul.f32 %v4771, %v4885
        %v4918 = vmul.f32 %v4876, %v4885
        %v4919 = vmul.f32 %v4772, %v4885
        %v4920 = vmul.f32 %v4773, %v4885
        %v4921 = vmul.f32 %v4877, %v4885
        %v4922 = vmul.f32 %v4774, %v4885
        %v4923 = vmul.f32 %v4775, %v4885
        %v4924 = vmul.f32 %v4878, %v4885
        %v4925 = vmul.f32 %v4776, %v4885
        %v4926 = vmul.f32 %v4777, %v4885
        %v4927 = vmul.f32 %v4879, %v4885
        %v4928 = vmul.f32 %v4778, %v4885
        %v4929 = vmul.f32 %v4779, %v4885
        %v4930 = vmul.f32 %v4880, %v4885
        %v4931 = vmul.f32 %v4780, %v4885
        %v4932 = vmul.f32 %v4781, %v4885
        %v4933 = vmul.f32 %v4881, %v4885
        %v4982 = vrot.slane %v4886, 1
        %v4983 = vrot.slane %v4887, 1
        %v4984 = vsel %vm3610, %v4982, %v4983
        %v4985 = vrot.slane %v4888, 1
        %v4986 = vsel %vm3610, %v4983, %v4985
        %v4987 = vrot.slane %v4889, 1
        %v4988 = vrot.slane %v4890, 1
        %v4989 = vsel %vm3610, %v4987, %v4988
        %v4990 = vrot.slane %v4891, 1
        %v4991 = vsel %vm3610, %v4988, %v4990
        %v4992 = vrot.slane %v4892, 1
        %v4993 = vrot.slane %v4893, 1
        %v4994 = vsel %vm3610, %v4992, %v4993
        %v4995 = vrot.slane %v4894, 1
        %v4996 = vsel %vm3610, %v4993, %v4995
        %v4997 = vrot.slane %v4895, 1
        %v4998 = vrot.slane %v4896, 1
        %v4999 = vsel %vm3610, %v4997, %v4998
        %v5000 = vrot.slane %v4897, 1
        %v5001 = vsel %vm3610, %v4998, %v5000
        %v5002 = vrot.slane %v4898, 1
        %v5003 = vrot.slane %v4899, 1
        %v5004 = vsel %vm3610, %v5002, %v5003
        %v5005 = vrot.slane %v4900, 1
        %v5006 = vsel %vm3610, %v5003, %v5005
        %v5007 = vrot.slane %v4901, 1
        %v5008 = vrot.slane %v4902, 1
        %v5009 = vsel %vm3610, %v5007, %v5008
        %v5010 = vrot.slane %v4903, 1
        %v5011 = vsel %vm3610, %v5008, %v5010
        %v5012 = vrot.slane %v4904, 1
        %v5013 = vrot.slane %v4905, 1
        %v5014 = vsel %vm3610, %v5012, %v5013
        %v5015 = vrot.slane %v4906, 1
        %v5016 = vsel %vm3610, %v5013, %v5015
        %v5017 = vrot.slane %v4907, 1
        %v5018 = vrot.slane %v4908, 1
        %v5019 = vsel %vm3610, %v5017, %v5018
        %v5020 = vrot.slane %v4909, 1
        %v5021 = vsel %vm3610, %v5018, %v5020
        %v5022 = vrot.slane %v4910, 1
        %v5023 = vrot.slane %v4911, 1
        %v5024 = vsel %vm3610, %v5022, %v5023
        %v5025 = vrot.slane %v4912, 1
        %v5026 = vsel %vm3610, %v5023, %v5025
        %v5027 = vrot.slane %v4913, 1
        %v5028 = vrot.slane %v4914, 1
        %v5029 = vsel %vm3610, %v5027, %v5028
        %v5030 = vrot.slane %v4915, 1
        %v5031 = vsel %vm3610, %v5028, %v5030
        %v5032 = vrot.slane %v4916, 1
        %v5033 = vrot.slane %v4917, 1
        %v5034 = vsel %vm3610, %v5032, %v5033
        %v5035 = vrot.slane %v4918, 1
        %v5036 = vsel %vm3610, %v5033, %v5035
        %v5037 = vrot.slane %v4919, 1
        %v5038 = vrot.slane %v4920, 1
        %v5039 = vsel %vm3610, %v5037, %v5038
        %v5040 = vrot.slane %v4921, 1
        %v5041 = vsel %vm3610, %v5038, %v5040
        %v5042 = vrot.slane %v4922, 1
        %v5043 = vrot.slane %v4923, 1
        %v5044 = vsel %vm3610, %v5042, %v5043
        %v5045 = vrot.slane %v4924, 1
        %v5046 = vsel %vm3610, %v5043, %v5045
        %v5047 = vrot.slane %v4925, 1
        %v5048 = vrot.slane %v4926, 1
        %v5049 = vsel %vm3610, %v5047, %v5048
        %v5050 = vrot.slane %v4927, 1
        %v5051 = vsel %vm3610, %v5048, %v5050
        %v5052 = vrot.slane %v4928, 1
        %v5053 = vrot.slane %v4929, 1
        %v5054 = vsel %vm3610, %v5052, %v5053
        %v5055 = vrot.slane %v4930, 1
        %v5056 = vsel %vm3610, %v5053, %v5055
        %v5057 = vrot.slane %v4931, 1
        %v5058 = vrot.slane %v4932, 1
        %v5059 = vsel %vm3610, %v5057, %v5058
        %v5060 = vrot.slane %v4933, 1
        %v5061 = vsel %vm3610, %v5058, %v5060
        %v5094 = vadd.f32 %v4818, %v4984
        %v5095 = vadd.f32 %v4819, %v4986
        %v5096 = vadd.f32 %v4820, %v4989
        %v5097 = vadd.f32 %v4821, %v4991
        %v5098 = vadd.f32 %v4822, %v4994
        %v5099 = vadd.f32 %v4823, %v4996
        %v5100 = vadd.f32 %v4824, %v4999
        %v5101 = vadd.f32 %v4825, %v5001
        %v5102 = vadd.f32 %v4826, %v5004
        %v5103 = vadd.f32 %v4827, %v5006
        %v5104 = vadd.f32 %v4828, %v5009
        %v5105 = vadd.f32 %v4829, %v5011
        %v5106 = vadd.f32 %v4830, %v5014
        %v5107 = vadd.f32 %v4831, %v5016
        %v5108 = vadd.f32 %v4832, %v5019
        %v5109 = vadd.f32 %v4833, %v5021
        %v5110 = vadd.f32 %v4834, %v5024
        %v5111 = vadd.f32 %v4835, %v5026
        %v5112 = vadd.f32 %v4836, %v5029
        %v5113 = vadd.f32 %v4837, %v5031
        %v5114 = vadd.f32 %v4838, %v5034
        %v5115 = vadd.f32 %v4839, %v5036
        %v5116 = vadd.f32 %v4840, %v5039
        %v5117 = vadd.f32 %v4841, %v5041
        %v5118 = vadd.f32 %v4842, %v5044
        %v5119 = vadd.f32 %v4843, %v5046
        %v5120 = vadd.f32 %v4844, %v5049
        %v5121 = vadd.f32 %v4845, %v5051
        %v5122 = vadd.f32 %v4846, %v5054
        %v5123 = vadd.f32 %v4847, %v5056
        %v5124 = vadd.f32 %v4848, %v5059
        %v5125 = vadd.f32 %v4849, %v5061
        %v5126 = vld [vmem:[%s4717] sm:$0xe]
        %v5127 = vld [vmem:[%s4717 + $0xc] sm:$0xe]
        %v5128 = vld [vmem:[%s4717 + $0x18] sm:$0xe]
        %v5129 = vld [vmem:[%s4717 + $0x24] sm:$0xe]
        %v5130 = vld [vmem:[%s4717 + $0x30] sm:$0xe]
        %v5131 = vld [vmem:[%s4717 + $0x3c] sm:$0xe]
        %v5132 = vld [vmem:[%s4717 + $0x48] sm:$0xe]
        %v5133 = vld [vmem:[%s4717 + $0x54] sm:$0xe]
        %v5134 = vld [vmem:[%s4717 + $0x60] sm:$0xe]
        %v5135 = vld [vmem:[%s4717 + $0x6c] sm:$0xe]
        %v5136 = vld [vmem:[%s4717 + $0x78] sm:$0xe]
        %v5137 = vld [vmem:[%s4717 + $0x84] sm:$0xe]
        %v5138 = vld [vmem:[%s4717 + $0x90] sm:$0xe]
        %v5139 = vld [vmem:[%s4717 + $0x9c] sm:$0xe]
        %v5140 = vld [vmem:[%s4717 + $0xa8] sm:$0xe]
        %v5141 = vld [vmem:[%s4717 + $0xb4] sm:$0xe]
        %v5142 = vunpack.c.l.bf16 %v5126
        %v5143 = vunpack.c.l.bf16 %v5127
        %v5144 = vunpack.c.l.bf16 %v5128
        %v5145 = vunpack.c.l.bf16 %v5129
        %v5146 = vunpack.c.l.bf16 %v5130
        %v5147 = vunpack.c.l.bf16 %v5131
        %v5148 = vunpack.c.l.bf16 %v5132
        %v5149 = vunpack.c.l.bf16 %v5133
        %v5150 = vunpack.c.l.bf16 %v5134
        %v5151 = vunpack.c.l.bf16 %v5135
        %v5152 = vunpack.c.l.bf16 %v5136
        %v5153 = vunpack.c.l.bf16 %v5137
        %v5154 = vunpack.c.l.bf16 %v5138
        %v5155 = vunpack.c.l.bf16 %v5139
        %v5156 = vunpack.c.l.bf16 %v5140
        %v5157 = vunpack.c.l.bf16 %v5141
        %v5158 = vlaneseq
        %v5159 = vshrl.u32 %v5158, 7
        %v5160 = vsub.s32 0, %v5159
        %v5161 = vrot.slane %v3338, %v5160
        %v5162 = vmul.f32 %v5142, %v5161
        %v5163 = vmul.f32 %v4751, %v5161
        %v5164 = vmul.f32 %v4866, %v5161
        %v5165 = vmul.f32 %v5143, %v5161
        %v5166 = vmul.f32 %v4753, %v5161
        %v5167 = vmul.f32 %v4867, %v5161
        %v5168 = vmul.f32 %v5144, %v5161
        %v5169 = vmul.f32 %v4755, %v5161
        %v5170 = vmul.f32 %v4868, %v5161
        %v5171 = vmul.f32 %v5145, %v5161
        %v5172 = vmul.f32 %v4757, %v5161
        %v5173 = vmul.f32 %v4869, %v5161
        %v5174 = vmul.f32 %v5146, %v5161
        %v5175 = vmul.f32 %v4759, %v5161
        %v5176 = vmul.f32 %v4870, %v5161
        %v5177 = vmul.f32 %v5147, %v5161
        %v5178 = vmul.f32 %v4761, %v5161
        %v5179 = vmul.f32 %v4871, %v5161
        %v5180 = vmul.f32 %v5148, %v5161
        %v5181 = vmul.f32 %v4763, %v5161
        %v5182 = vmul.f32 %v4872, %v5161
        %v5183 = vmul.f32 %v5149, %v5161
        %v5184 = vmul.f32 %v4765, %v5161
        %v5185 = vmul.f32 %v4873, %v5161
        %v5186 = vmul.f32 %v5150, %v5161
        %v5187 = vmul.f32 %v4767, %v5161
        %v5188 = vmul.f32 %v4874, %v5161
        %v5189 = vmul.f32 %v5151, %v5161
        %v5190 = vmul.f32 %v4769, %v5161
        %v5191 = vmul.f32 %v4875, %v5161
        %v5192 = vmul.f32 %v5152, %v5161
        %v5193 = vmul.f32 %v4771, %v5161
        %v5194 = vmul.f32 %v4876, %v5161
        %v5195 = vmul.f32 %v5153, %v5161
        %v5196 = vmul.f32 %v4773, %v5161
        %v5197 = vmul.f32 %v4877, %v5161
        %v5198 = vmul.f32 %v5154, %v5161
        %v5199 = vmul.f32 %v4775, %v5161
        %v5200 = vmul.f32 %v4878, %v5161
        %v5201 = vmul.f32 %v5155, %v5161
        %v5202 = vmul.f32 %v4777, %v5161
        %v5203 = vmul.f32 %v4879, %v5161
        %v5204 = vmul.f32 %v5156, %v5161
        %v5205 = vmul.f32 %v4779, %v5161
        %v5206 = vmul.f32 %v4880, %v5161
        %v5207 = vmul.f32 %v5157, %v5161
        %v5208 = vmul.f32 %v4781, %v5161
        %v5209 = vmul.f32 %v4881, %v5161
        %v5258 = vrot.slane %v5162, 2
        %v5259 = vrot.slane %v5163, 2
        %v5260 = vsel %vm3887, %v5258, %v5259
        %v5261 = vrot.slane %v5164, 2
        %v5262 = vsel %vm3887, %v5259, %v5261
        %v5263 = vrot.slane %v5165, 2
        %v5264 = vrot.slane %v5166, 2
        %v5265 = vsel %vm3887, %v5263, %v5264
        %v5266 = vrot.slane %v5167, 2
        %v5267 = vsel %vm3887, %v5264, %v5266
        %v5268 = vrot.slane %v5168, 2
        %v5269 = vrot.slane %v5169, 2
        %v5270 = vsel %vm3887, %v5268, %v5269
        %v5271 = vrot.slane %v5170, 2
        %v5272 = vsel %vm3887, %v5269, %v5271
        %v5273 = vrot.slane %v5171, 2
        %v5274 = vrot.slane %v5172, 2
        %v5275 = vsel %vm3887, %v5273, %v5274
        %v5276 = vrot.slane %v5173, 2
        %v5277 = vsel %vm3887, %v5274, %v5276
        %v5278 = vrot.slane %v5174, 2
        %v5279 = vrot.slane %v5175, 2
        %v5280 = vsel %vm3887, %v5278, %v5279
        %v5281 = vrot.slane %v5176, 2
        %v5282 = vsel %vm3887, %v5279, %v5281
        %v5283 = vrot.slane %v5177, 2
        %v5284 = vrot.slane %v5178, 2
        %v5285 = vsel %vm3887, %v5283, %v5284
        %v5286 = vrot.slane %v5179, 2
        %v5287 = vsel %vm3887, %v5284, %v5286
        %v5288 = vrot.slane %v5180, 2
        %v5289 = vrot.slane %v5181, 2
        %v5290 = vsel %vm3887, %v5288, %v5289
        %v5291 = vrot.slane %v5182, 2
        %v5292 = vsel %vm3887, %v5289, %v5291
        %v5293 = vrot.slane %v5183, 2
        %v5294 = vrot.slane %v5184, 2
        %v5295 = vsel %vm3887, %v5293, %v5294
        %v5296 = vrot.slane %v5185, 2
        %v5297 = vsel %vm3887, %v5294, %v5296
        %v5298 = vrot.slane %v5186, 2
        %v5299 = vrot.slane %v5187, 2
        %v5300 = vsel %vm3887, %v5298, %v5299
        %v5301 = vrot.slane %v5188, 2
        %v5302 = vsel %vm3887, %v5299, %v5301
        %v5303 = vrot.slane %v5189, 2
        %v5304 = vrot.slane %v5190, 2
        %v5305 = vsel %vm3887, %v5303, %v5304
        %v5306 = vrot.slane %v5191, 2
        %v5307 = vsel %vm3887, %v5304, %v5306
        %v5308 = vrot.slane %v5192, 2
        %v5309 = vrot.slane %v5193, 2
        %v5310 = vsel %vm3887, %v5308, %v5309
        %v5311 = vrot.slane %v5194, 2
        %v5312 = vsel %vm3887, %v5309, %v5311
        %v5313 = vrot.slane %v5195, 2
        %v5314 = vrot.slane %v5196, 2
        %v5315 = vsel %vm3887, %v5313, %v5314
        %v5316 = vrot.slane %v5197, 2
        %v5317 = vsel %vm3887, %v5314, %v5316
        %v5318 = vrot.slane %v5198, 2
        %v5319 = vrot.slane %v5199, 2
        %v5320 = vsel %vm3887, %v5318, %v5319
        %v5321 = vrot.slane %v5200, 2
        %v5322 = vsel %vm3887, %v5319, %v5321
        %v5323 = vrot.slane %v5201, 2
        %v5324 = vrot.slane %v5202, 2
        %v5325 = vsel %vm3887, %v5323, %v5324
        %v5326 = vrot.slane %v5203, 2
        %v5327 = vsel %vm3887, %v5324, %v5326
        %v5328 = vrot.slane %v5204, 2
        %v5329 = vrot.slane %v5205, 2
        %v5330 = vsel %vm3887, %v5328, %v5329
        %v5331 = vrot.slane %v5206, 2
        %v5332 = vsel %vm3887, %v5329, %v5331
        %v5333 = vrot.slane %v5207, 2
        %v5334 = vrot.slane %v5208, 2
        %v5335 = vsel %vm3887, %v5333, %v5334
        %v5336 = vrot.slane %v5209, 2
        %v5337 = vsel %vm3887, %v5334, %v5336
        %v5370 = vadd.f32 %v5094, %v5260
        %v5371 = vadd.f32 %v5095, %v5262
        %v5372 = vadd.f32 %v5096, %v5265
        %v5373 = vadd.f32 %v5097, %v5267
        %v5374 = vadd.f32 %v5098, %v5270
        %v5375 = vadd.f32 %v5099, %v5272
        %v5376 = vadd.f32 %v5100, %v5275
        %v5377 = vadd.f32 %v5101, %v5277
        %v5378 = vadd.f32 %v5102, %v5280
        %v5379 = vadd.f32 %v5103, %v5282
        %v5380 = vadd.f32 %v5104, %v5285
        %v5381 = vadd.f32 %v5105, %v5287
        %v5382 = vadd.f32 %v5106, %v5290
        %v5383 = vadd.f32 %v5107, %v5292
        %v5384 = vadd.f32 %v5108, %v5295
        %v5385 = vadd.f32 %v5109, %v5297
        %v5386 = vadd.f32 %v5110, %v5300
        %v5387 = vadd.f32 %v5111, %v5302
        %v5388 = vadd.f32 %v5112, %v5305
        %v5389 = vadd.f32 %v5113, %v5307
        %v5390 = vadd.f32 %v5114, %v5310
        %v5391 = vadd.f32 %v5115, %v5312
        %v5392 = vadd.f32 %v5116, %v5315
        %v5393 = vadd.f32 %v5117, %v5317
        %v5394 = vadd.f32 %v5118, %v5320
        %v5395 = vadd.f32 %v5119, %v5322
        %v5396 = vadd.f32 %v5120, %v5325
        %v5397 = vadd.f32 %v5121, %v5327
        %v5398 = vadd.f32 %v5122, %v5330
        %v5399 = vadd.f32 %v5123, %v5332
        %v5400 = vadd.f32 %v5124, %v5335
        %v5401 = vadd.f32 %v5125, %v5337
        %v5402 = vpack.c.bf16 %v5371, %v5370
        %v5403 = vpack.c.bf16 %v5373, %v5372
        %v5404 = vpack.c.bf16 %v5375, %v5374
        %v5405 = vpack.c.bf16 %v5377, %v5376
        %v5406 = vpack.c.bf16 %v5379, %v5378
        %v5407 = vpack.c.bf16 %v5381, %v5380
        %v5408 = vpack.c.bf16 %v5383, %v5382
        %v5409 = vpack.c.bf16 %v5385, %v5384
        %v5410 = vpack.c.bf16 %v5387, %v5386
        %v5411 = vpack.c.bf16 %v5389, %v5388
        %v5412 = vpack.c.bf16 %v5391, %v5390
        %v5413 = vpack.c.bf16 %v5393, %v5392
        %v5414 = vpack.c.bf16 %v5395, %v5394
        %v5415 = vpack.c.bf16 %v5397, %v5396
        %v5416 = vpack.c.bf16 %v5399, %v5398
        %v5417 = vpack.c.bf16 %v5401, %v5400
        %v5418 = vld [vmem:[%s9] sm:$0xf]
        %v5419 = vld [vmem:[%s9 + $0x4] sm:$0xf]
        %v5420 = vld [vmem:[%s9 + $0x8] sm:$0xf]
        %v5421 = vld [vmem:[%s9 + $0xc] sm:$0xf]
        %v5422 = vld [vmem:[%s9 + $0x10] sm:$0xf]
        %v5423 = vld [vmem:[%s9 + $0x14] sm:$0xf]
        %v5424 = vld [vmem:[%s9 + $0x18] sm:$0xf]
        %v5425 = vld [vmem:[%s9 + $0x1c] sm:$0xf]
        %v5426 = vld [vmem:[%s9 + $0x20] sm:$0xf]
        %v5427 = vld [vmem:[%s9 + $0x24] sm:$0xf]
        %v5428 = vld [vmem:[%s9 + $0x28] sm:$0xf]
        %v5429 = vld [vmem:[%s9 + $0x2c] sm:$0xf]
        %v5430 = vld [vmem:[%s9 + $0x30] sm:$0xf]
        %v5431 = vld [vmem:[%s9 + $0x34] sm:$0xf]
        %v5432 = vld [vmem:[%s9 + $0x38] sm:$0xf]
        %v5433 = vld [vmem:[%s9 + $0x3c] sm:$0xf]
        %v5434 = vld [vmem:[%s10] sm:$0x1]
        %v5436 = vlaneseq
        %v5437 = vshrl.u32 %v5436, 7
        %v5438 = vsub.s32 0, %v5437
        %v5439 = vrot.slane %v5434, %v5438
        %v5457 = vunpack.c.l.b16 %v5418
        %v5458 = vunpack.c.l.b16 %v5419
        %v5459 = vunpack.c.l.b16 %v5420
        %v5460 = vunpack.c.l.b16 %v5421
        %v5461 = vunpack.c.l.b16 %v5422
        %v5462 = vunpack.c.l.b16 %v5423
        %v5463 = vunpack.c.l.b16 %v5424
        %v5464 = vunpack.c.l.b16 %v5425
        %v5465 = vunpack.c.l.b16 %v5426
        %v5466 = vunpack.c.l.b16 %v5427
        %v5467 = vunpack.c.l.b16 %v5428
        %v5468 = vunpack.c.l.b16 %v5429
        %v5469 = vunpack.c.l.b16 %v5430
        %v5470 = vunpack.c.l.b16 %v5431
        %v5471 = vunpack.c.l.b16 %v5432
        %v5472 = vunpack.c.l.b16 %v5433
        %v5473 = vpack.c.b16 %v5458, %v5457
        %v5474 = vpack.c.b16 %v5460, %v5459
        %v5475 = vpack.c.b16 %v5462, %v5461
        %v5476 = vpack.c.b16 %v5464, %v5463
        %v5477 = vpack.c.b16 %v5466, %v5465
        %v5478 = vpack.c.b16 %v5468, %v5467
        %v5479 = vpack.c.b16 %v5470, %v5469
        %v5480 = vpack.c.b16 %v5472, %v5471
        %5489 = vmatprep.subr.bf16.mxu0 0
        %5490 = vmatpush1.bf16.msra.mxu0 %v5480
        %5491 = vmatprep.subr.bf16.mxu0 0
        %5492 = vmatpush1.bf16.msra.mxu0 %v5479
        %5493 = vmatprep.subr.bf16.mxu0 0
        %5494 = vmatpush1.bf16.msra.mxu0 %v5478
        %5495 = vmatprep.subr.bf16.mxu0 0
        %5496 = vmatpush1.bf16.msra.mxu0 %v5477
        %5497 = vmatprep.subr.bf16.mxu0 0
        %5498 = vmatpush1.bf16.msra.mxu0 %v5476
        %5499 = vmatprep.subr.bf16.mxu0 0
        %5500 = vmatpush1.bf16.msra.mxu0 %v5475
        %5501 = vmatprep.subr.bf16.mxu0 0
        %5502 = vmatpush1.bf16.msra.mxu0 %v5474
        %5503 = vmatprep.subr.bf16.mxu0 0
        %5504 = vmatpush1.bf16.msra.mxu0 %v5473
        %5505 = vmatprep.subr.bf16.mxu0 0
        %5506 = vmatpush2.bf16.msra.mxu0 0
        %5507 = vmatprep.subr.bf16.mxu0 0
        %5508 = vmatpush2.bf16.msra.mxu0 0
        %5509 = vmatprep.subr.bf16.mxu0 0
        %5510 = vmatpush2.bf16.msra.mxu0 0
        %5511 = vmatprep.subr.bf16.mxu0 0
        %5512 = vmatpush2.bf16.msra.mxu0 0
        %5513 = vmatprep.subr.bf16.mxu0 0
        %5514 = vmatpush2.bf16.msra.mxu0 0
        %5515 = vmatprep.subr.bf16.mxu0 0
        %5516 = vmatpush2.bf16.msra.mxu0 0
        %5517 = vmatprep.subr.bf16.mxu0 0
        %5518 = vmatpush2.bf16.msra.mxu0 0
        %5519 = vmatprep.subr.bf16.mxu0 0
        %5520 = vmatpush2.bf16.msra.mxu0 0
        %5521 = vmatprep.mubr.bf16.mxu0 0
        %5522 = vmatmul.mubr.bf16.gmra.mxu0 %v5402
        %v5523 = vpop.f32.mrf.mxu0
        %v5524 = vadd.f32 %v5439, %v5523
        %v5525 = vpop.f32.mrf.mxu0
        %v5526 = vpop.f32.mrf.mxu0
        %v5527 = vadd.f32 %v5439, %v5526
        %v5528 = vpop.f32.mrf.mxu0
        %5529 = vmatprep.mubr.bf16.mxu0 0
        %5530 = vmatmul.mubr.bf16.gmra.mxu0 %v5403
        %v5531 = vpop.f32.mrf.mxu0
        %v5532 = vadd.f32 %v5439, %v5531
        %v5533 = vpop.f32.mrf.mxu0
        %v5534 = vpop.f32.mrf.mxu0
        %v5535 = vadd.f32 %v5439, %v5534
        %v5536 = vpop.f32.mrf.mxu0
        %5537 = vmatprep.mubr.bf16.mxu0 0
        %5538 = vmatmul.mubr.bf16.gmra.mxu0 %v5404
        %v5539 = vpop.f32.mrf.mxu0
        %v5540 = vadd.f32 %v5439, %v5539
        %v5541 = vpop.f32.mrf.mxu0
        %v5542 = vpop.f32.mrf.mxu0
        %v5543 = vadd.f32 %v5439, %v5542
        %v5544 = vpop.f32.mrf.mxu0
        %5545 = vmatprep.mubr.bf16.mxu0 0
        %5546 = vmatmul.mubr.bf16.gmra.mxu0 %v5405
        %v5547 = vpop.f32.mrf.mxu0
        %v5548 = vadd.f32 %v5439, %v5547
        %v5549 = vpop.f32.mrf.mxu0
        %v5550 = vpop.f32.mrf.mxu0
        %v5551 = vadd.f32 %v5439, %v5550
        %v5552 = vpop.f32.mrf.mxu0
        %5553 = vmatprep.mubr.bf16.mxu0 0
        %5554 = vmatmul.mubr.bf16.gmra.mxu0 %v5406
        %v5555 = vpop.f32.mrf.mxu0
        %v5556 = vadd.f32 %v5439, %v5555
        %v5557 = vpop.f32.mrf.mxu0
        %v5558 = vpop.f32.mrf.mxu0
        %v5559 = vadd.f32 %v5439, %v5558
        %v5560 = vpop.f32.mrf.mxu0
        %5561 = vmatprep.mubr.bf16.mxu0 0
        %5562 = vmatmul.mubr.bf16.gmra.mxu0 %v5407
        %v5563 = vpop.f32.mrf.mxu0
        %v5564 = vadd.f32 %v5439, %v5563
        %v5565 = vpop.f32.mrf.mxu0
        %v5566 = vpop.f32.mrf.mxu0
        %v5567 = vadd.f32 %v5439, %v5566
        %v5568 = vpop.f32.mrf.mxu0
        %5569 = vmatprep.mubr.bf16.mxu0 0
        %5570 = vmatmul.mubr.bf16.gmra.mxu0 %v5408
        %v5571 = vpop.f32.mrf.mxu0
        %v5572 = vadd.f32 %v5439, %v5571
        %v5573 = vpop.f32.mrf.mxu0
        %v5574 = vpop.f32.mrf.mxu0
        %v5575 = vadd.f32 %v5439, %v5574
        %v5576 = vpop.f32.mrf.mxu0
        %5577 = vmatprep.mubr.bf16.mxu0 0
        %5578 = vmatmul.mubr.bf16.gmra.mxu0 %v5409
        %v5579 = vpop.f32.mrf.mxu0
        %v5580 = vadd.f32 %v5439, %v5579
        %v5581 = vpop.f32.mrf.mxu0
        %v5582 = vpop.f32.mrf.mxu0
        %v5583 = vadd.f32 %v5439, %v5582
        %v5584 = vpop.f32.mrf.mxu0
        %5585 = vmatprep.mubr.bf16.mxu0 0
        %5586 = vmatmul.mubr.bf16.gmra.mxu0 %v5410
        %v5587 = vpop.f32.mrf.mxu0
        %v5588 = vadd.f32 %v5439, %v5587
        %v5589 = vpop.f32.mrf.mxu0
        %v5590 = vpop.f32.mrf.mxu0
        %v5591 = vadd.f32 %v5439, %v5590
        %v5592 = vpop.f32.mrf.mxu0
        %5593 = vmatprep.mubr.bf16.mxu0 0
        %5594 = vmatmul.mubr.bf16.gmra.mxu0 %v5411
        %v5595 = vpop.f32.mrf.mxu0
        %v5596 = vadd.f32 %v5439, %v5595
        %v5597 = vpop.f32.mrf.mxu0
        %v5598 = vpop.f32.mrf.mxu0
        %v5599 = vadd.f32 %v5439, %v5598
        %v5600 = vpop.f32.mrf.mxu0
        %5601 = vmatprep.mubr.bf16.mxu0 0
        %5602 = vmatmul.mubr.bf16.gmra.mxu0 %v5412
        %v5603 = vpop.f32.mrf.mxu0
        %v5604 = vadd.f32 %v5439, %v5603
        %v5605 = vpop.f32.mrf.mxu0
        %v5606 = vpop.f32.mrf.mxu0
        %v5607 = vadd.f32 %v5439, %v5606
        %v5608 = vpop.f32.mrf.mxu0
        %5609 = vmatprep.mubr.bf16.mxu0 0
        %5610 = vmatmul.mubr.bf16.gmra.mxu0 %v5413
        %v5611 = vpop.f32.mrf.mxu0
        %v5612 = vadd.f32 %v5439, %v5611
        %v5613 = vpop.f32.mrf.mxu0
        %v5614 = vpop.f32.mrf.mxu0
        %v5615 = vadd.f32 %v5439, %v5614
        %v5616 = vpop.f32.mrf.mxu0
        %5617 = vmatprep.mubr.bf16.mxu0 0
        %5618 = vmatmul.mubr.bf16.gmra.mxu0 %v5414
        %v5619 = vpop.f32.mrf.mxu0
        %v5620 = vadd.f32 %v5439, %v5619
        %v5621 = vpop.f32.mrf.mxu0
        %v5622 = vpop.f32.mrf.mxu0
        %v5623 = vadd.f32 %v5439, %v5622
        %v5624 = vpop.f32.mrf.mxu0
        %5625 = vmatprep.mubr.bf16.mxu0 0
        %5626 = vmatmul.mubr.bf16.gmra.mxu0 %v5415
        %v5627 = vpop.f32.mrf.mxu0
        %v5628 = vadd.f32 %v5439, %v5627
        %v5629 = vpop.f32.mrf.mxu0
        %v5630 = vpop.f32.mrf.mxu0
        %v5631 = vadd.f32 %v5439, %v5630
        %v5632 = vpop.f32.mrf.mxu0
        %5633 = vmatprep.mubr.bf16.mxu0 0
        %5634 = vmatmul.mubr.bf16.gmra.mxu0 %v5416
        %v5635 = vpop.f32.mrf.mxu0
        %v5636 = vadd.f32 %v5439, %v5635
        %v5637 = vpop.f32.mrf.mxu0
        %v5638 = vpop.f32.mrf.mxu0
        %v5639 = vadd.f32 %v5439, %v5638
        %v5640 = vpop.f32.mrf.mxu0
        %5641 = vmatprep.mubr.bf16.mxu0 0
        %5642 = vmatmul.mubr.bf16.gmra.mxu0 %v5417
        %v5643 = vpop.f32.mrf.mxu0
        %v5644 = vadd.f32 %v5439, %v5643
        %v5645 = vpop.f32.mrf.mxu0
        %v5646 = vpop.f32.mrf.mxu0
        %v5647 = vadd.f32 %v5439, %v5646
        %v5648 = vpop.f32.mrf.mxu0
        %5649 = vdwg.mxu0
        %v5650 = vadd.f32 %v1985, %v5524
        %v5651 = vadd.f32 %v1986, %v5527
        %v5652 = vadd.f32 %v1987, %v5532
        %v5653 = vadd.f32 %v1988, %v5535
        %v5654 = vadd.f32 %v1989, %v5540
        %v5655 = vadd.f32 %v1990, %v5543
        %v5656 = vadd.f32 %v1991, %v5548
        %v5657 = vadd.f32 %v1992, %v5551
        %v5658 = vadd.f32 %v1993, %v5556
        %v5659 = vadd.f32 %v1994, %v5559
        %v5660 = vadd.f32 %v1995, %v5564
        %v5661 = vadd.f32 %v1996, %v5567
        %v5662 = vadd.f32 %v1997, %v5572
        %v5663 = vadd.f32 %v1998, %v5575
        %v5664 = vadd.f32 %v1999, %v5580
        %v5665 = vadd.f32 %v2000, %v5583
        %v5666 = vadd.f32 %v2001, %v5588
        %v5667 = vadd.f32 %v2002, %v5591
        %v5668 = vadd.f32 %v2003, %v5596
        %v5669 = vadd.f32 %v2004, %v5599
        %v5670 = vadd.f32 %v2005, %v5604
        %v5671 = vadd.f32 %v2006, %v5607
        %v5672 = vadd.f32 %v2007, %v5612
        %v5673 = vadd.f32 %v2008, %v5615
        %v5674 = vadd.f32 %v2009, %v5620
        %v5675 = vadd.f32 %v2010, %v5623
        %v5676 = vadd.f32 %v2011, %v5628
        %v5677 = vadd.f32 %v2012, %v5631
        %v5678 = vadd.f32 %v2013, %v5636
        %v5679 = vadd.f32 %v2014, %v5639
        %v5680 = vadd.f32 %v2015, %v5644
        %v5681 = vadd.f32 %v2016, %v5647
        %5682 = vst.msk [vmem:[%s393] sm:$0xff] %vm1427, %v5650
        %5683 = vst.msk [vmem:[%s393 + $0x8] sm:$0xff] %vm1427, %v5651
        %5684 = vst.msk [vmem:[%s393 + $0x10] sm:$0xff] %vm1427, %v5652
        %5685 = vst.msk [vmem:[%s393 + $0x18] sm:$0xff] %vm1427, %v5653
        %5686 = vst.msk [vmem:[%s393 + $0x20] sm:$0xff] %vm1427, %v5654
        %5687 = vst.msk [vmem:[%s393 + $0x28] sm:$0xff] %vm1427, %v5655
        %5688 = vst.msk [vmem:[%s393 + $0x30] sm:$0xff] %vm1427, %v5656
        %5689 = vst.msk [vmem:[%s393 + $0x38] sm:$0xff] %vm1427, %v5657
        %5690 = vst.msk [vmem:[%s393 + $0x40] sm:$0xff] %vm1427, %v5658
        %5691 = vst.msk [vmem:[%s393 + $0x48] sm:$0xff] %vm1427, %v5659
        %5692 = vst.msk [vmem:[%s393 + $0x50] sm:$0xff] %vm1427, %v5660
        %5693 = vst.msk [vmem:[%s393 + $0x58] sm:$0xff] %vm1427, %v5661
        %5694 = vst.msk [vmem:[%s393 + $0x60] sm:$0xff] %vm1427, %v5662
        %5695 = vst.msk [vmem:[%s393 + $0x68] sm:$0xff] %vm1427, %v5663
        %5696 = vst.msk [vmem:[%s393 + $0x70] sm:$0xff] %vm1427, %v5664
        %5697 = vst.msk [vmem:[%s393 + $0x78] sm:$0xff] %vm1427, %v5665
        %5698 = vst.msk [vmem:[%s393 + $0x80] sm:$0xff] %vm1427, %v5666
        %5699 = vst.msk [vmem:[%s393 + $0x88] sm:$0xff] %vm1427, %v5667
        %5700 = vst.msk [vmem:[%s393 + $0x90] sm:$0xff] %vm1427, %v5668
        %5701 = vst.msk [vmem:[%s393 + $0x98] sm:$0xff] %vm1427, %v5669
        %5702 = vst.msk [vmem:[%s393 + $0xa0] sm:$0xff] %vm1427, %v5670
        %5703 = vst.msk [vmem:[%s393 + $0xa8] sm:$0xff] %vm1427, %v5671
        %5704 = vst.msk [vmem:[%s393 + $0xb0] sm:$0xff] %vm1427, %v5672
        %5705 = vst.msk [vmem:[%s393 + $0xb8] sm:$0xff] %vm1427, %v5673
        %5706 = vst.msk [vmem:[%s393 + $0xc0] sm:$0xff] %vm1427, %v5674
        %5707 = vst.msk [vmem:[%s393 + $0xc8] sm:$0xff] %vm1427, %v5675
        %5708 = vst.msk [vmem:[%s393 + $0xd0] sm:$0xff] %vm1427, %v5676
        %5709 = vst.msk [vmem:[%s393 + $0xd8] sm:$0xff] %vm1427, %v5677
        %5710 = vst.msk [vmem:[%s393 + $0xe0] sm:$0xff] %vm1427, %v5678
        %5711 = vst.msk [vmem:[%s393 + $0xe8] sm:$0xff] %vm1427, %v5679
        %5712 = vst.msk [vmem:[%s393 + $0xf0] sm:$0xff] %vm1427, %v5680
        %5713 = vst.msk [vmem:[%s393 + $0xf8] sm:$0xff] %vm1427, %v5681
        %s5714 = sand.u32 %s283, 1
        %s5715 = scalar_lea.sflag [#allocation4], %s5714
        %s5716 = sand.u32 %s283, 1
        %s5717 = smul.addr %s5716, 256
        %s5718 = scalar_lea.vmem [#allocation3], %s5717
        // Predicated region
        $region69: #{tpu_custom_call.1} parent=63 // pred_check
          %p5719 = pneg %p293
        $region70: #{tpu_custom_call.1} parent=63 // pred_check_branch
          %5721 = sbr.rel (%p5719) target = $region72
        $region71: #{tpu_custom_call.1} parent=63 // pred_region
          %s5722 = smul.u32 16, %s30
          %s5724 = ssub.s32 4096, 4096
          %5725 = vsyncadd %s5715, %s5724
          %s5726 = smul.addr %s5722, 2
          %s5727 = smul.addr %s29, 32
          %s5728 = sadd.s32 %s5726, %s5727
          %s5729 = smul.addr %s5728, 128
          %s5730 = scalar_lea.hbm %s11, %s5729
          %s5731 = sshll.u32 %s5718, 4
          %s5732 = int_to_ptr.vmem [resolvable:$true] %s5731
          %5737 = dma.vmem_to_hbm [thread:$0]  %s5732, 4096, %s5730, %s5715, 128, 128, 8
        $region72: #{tpu_custom_call.1} parent=63 // pred_fallthru
          _
      $region64: #{tpu_custom_call.1} parent=5 // pred_fallthru
        _
      %p5738 = scmp.le.s32.totalorder 2, %s20
      // Predicated region
      $region73: #{tpu_custom_call.1} parent=5 // pred_check
        %p5739 = pneg %p5738
      $region74: #{tpu_custom_call.1} parent=5 // pred_check_branch
        %5741 = sbr.rel (%p5739) target = $region76
      $region75: #{tpu_custom_call.1} parent=5 // pred_region
        %s5742 = ssub.s32 %s20, 2
        // Predicated region
        $region77: #{tpu_custom_call.1} parent=75 // pred_check
          %p5743 = pneg %p299
        $region78: #{tpu_custom_call.1} parent=75 // pred_check_branch
          %5745 = sbr.rel (%p5743) target = $region80
        $region79: #{tpu_custom_call.1} parent=75 // pred_region
          %s5746 = sand.u32 %s284, 1
          %s5747 = scalar_lea.sflag [#allocation4], %s5746
          %s5748 = sand.u32 %s284, 1
          %s5749 = smul.addr %s5748, 256
          %s5750 = scalar_lea.vmem [#allocation3], %s5749
          %5751 = dma.done %s5747, 4096
        $region80: #{tpu_custom_call.1} parent=75 // pred_fallthru
          _
      $region76: #{tpu_custom_call.1} parent=5 // pred_fallthru
        _
    $region6: #{tpu_custom_call.1} parent=1 // loop_footer
      %s24 = sadd.s32 1, %s20
    $region7: #{tpu_custom_call.1} parent=1 // loop_footer_branch
      %19 = sbr.rel target = $region3
    $region8: #{tpu_custom_call.1} parent=1 // loop_exit
      _
    %5752 = vsyncpa [#allocation4], 1
    %s5753 = scalar_lea.sflag [#allocation4], 1
    %5754 = vsyncpa %s5753, 1

</llo_original>
